<compile_context>
chip_gen: v6e
topology: v6e:2x2x1
jax: 0.10.0
libtpu: 0.0.40
codegen_flags: <defaults>
</compile_context>

<pallas_src>
import jax
import jax.numpy as jnp
from jax.experimental import pallas as pl
from jax.experimental.pallas import tpu as pltpu

LANE = 128                          # lane width / channel padding target
ROW_TILE = 512                      # adjacency row tile (output rows per step)
NBR_TILE = 1024                     # adjacency neighbor (reduction) tile
VMEM_LIMIT = 48 * 1024 * 1024       # scoped-VMEM cap, safe on v7x's 64 MiB
FUSED_ADJ_BYTES = 24 * 1024 * 1024  # bf16 adjacency budget for the fused path
HW_RESIDENT_BYTES = 16 * 1024 * 1024  # budget (x2 buffers) for resident h@W


def _round_up(v, m):
    return (v + m - 1) // m * m


def _pad2d(a, rows, cols, dtype):
    out = jnp.zeros((rows, cols), dtype)
    return out.at[: a.shape[0], : a.shape[1]].set(a.astype(dtype))


def _pad_rows(a, rows):
    if a.shape[0] == rows:
        return a
    return jnp.zeros((rows, a.shape[1]), a.dtype).at[: a.shape[0]].set(a)


def _pad_w(w):
    return _pad2d(w, _round_up(w.shape[0], LANE),
                  _round_up(w.shape[1], LANE), jnp.bfloat16)


def _pad_b(b):
    return _pad2d(b.reshape(1, -1), 1, _round_up(b.shape[-1], LANE),
                  jnp.float32)


def _masked_log_softmax(logits, num_valid):
    """log_softmax over the last axis, masking zero-padded class lanes (f32)."""
    lane = jax.lax.broadcasted_iota(jnp.int32, logits.shape, 1)
    logits = jnp.where(lane < num_valid, logits,
                       jnp.full_like(logits, -1e30))
    m = jnp.max(logits, axis=-1, keepdims=True)
    s = logits - m
    lse = jnp.log(jnp.sum(jnp.exp(s), axis=-1, keepdims=True))
    return s - lse


# ---------------------------------------------------------------------------
# fused path (small graphs): everything VMEM-resident, single launch
# ---------------------------------------------------------------------------
def make_fused_kernel(num_layers, num_classes):
    def kernel(*refs):
        adj_ref, x_ref = refs[0], refs[1]
        out_ref = refs[-1]
        p = refs[2:-1]                       # per-layer (W, b), then head params

        h = x_ref[...]                       # bf16 activations
        for l in range(num_layers):
            w_ref, b_ref = p[2 * l], p[2 * l + 1]
            hw = jnp.dot(h, w_ref[...],
                         preferred_element_type=jnp.float32).astype(jnp.bfloat16)
            agg = jnp.dot(adj_ref[...], hw,
                          preferred_element_type=jnp.float32)
            h = jnp.maximum(agg + b_ref[...], 0.0).astype(jnp.bfloat16)

        w1_ref, b1_ref, w2_ref, b2_ref = p[2 * num_layers: 2 * num_layers + 4]
        z = jnp.maximum(
            jnp.dot(h, w1_ref[...], preferred_element_type=jnp.float32)
            + b1_ref[...], 0.0)
        logits = jnp.dot(z.astype(jnp.bfloat16), w2_ref[...],
                         preferred_element_type=jnp.float32) + b2_ref[...]
        out_ref[...] = _masked_log_softmax(logits, num_classes).astype(out_ref.dtype)

    return kernel


def _gcn_fused_forward(adj_norm, x, conv_params, lin1, lin2, num_classes):
    n = x.shape[0]
    n_pad = _round_up(n, LANE)
    adj_pad = _pad2d(adj_norm, n_pad, n_pad, jnp.bfloat16)
    x_pad = _pad2d(x, n_pad, _round_up(x.shape[1], LANE), jnp.bfloat16)

    params = []
    for w, b in conv_params:
        params += [_pad_w(w), _pad_b(b)]
    for w, b in (lin1, lin2):
        params += [_pad_w(w), _pad_b(b)]

    c_pad = _round_up(num_classes, LANE)
    vspec = pl.BlockSpec(memory_space=pltpu.MemorySpace.VMEM)
    out = pl.pallas_call(
        make_fused_kernel(len(conv_params), num_classes),
        out_shape=jax.ShapeDtypeStruct((n_pad, c_pad), jnp.float32),
        in_specs=[vspec] * (2 + len(params)),
        out_specs=vspec,
        compiler_params=pltpu.CompilerParams(vmem_limit_bytes=VMEM_LIMIT),
    )(adj_pad, x_pad, *params)
    return out[:n, :num_classes]


# ---------------------------------------------------------------------------
# tiled streaming path (large graphs): per-layer A_hat @ (h @ W) aggregation
# ---------------------------------------------------------------------------
def make_agg_relu_kernel(*, n_true, tk, hw_resident):
    """o = relu((A_hat @ hw) + b), tiled over (row tile i, neighbor tile k)."""

    def kernel(adj_ref, hw_ref, b_ref, o_ref, acc_ref):
        k = pl.program_id(1)

        @pl.when(k == 0)
        def _():
            acc_ref[...] = jnp.zeros_like(acc_ref)

        @pl.when(k * tk < n_true)            # skip all-padding neighbor tiles
        def _():
            if hw_resident:
                hw = hw_ref[pl.ds(pl.multiple_of(k * tk, tk), tk), :]
            else:
                hw = hw_ref[...]
            acc_ref[...] += jnp.dot(adj_ref[...], hw,
                                    preferred_element_type=jnp.float32)

        @pl.when(k == pl.num_programs(1) - 1)
        def _():
            o_ref[...] = jnp.maximum(acc_ref[...] + b_ref[...], 0.0
                                     ).astype(o_ref.dtype)

    return kernel


def make_agg_head_kernel(*, n_true, tk, hw_resident, num_classes):
    """Final conv aggregation fused with lin1 -> ReLU -> lin2 -> log_softmax."""

    def kernel(adj_ref, hw_ref, b_ref, w1_ref, b1_ref, w2_ref, b2_ref,
               o_ref, acc_ref):
        k = pl.program_id(1)

        @pl.when(k == 0)
        def _():
            acc_ref[...] = jnp.zeros_like(acc_ref)

        @pl.when(k * tk < n_true)
        def _():
            if hw_resident:
                hw = hw_ref[pl.ds(pl.multiple_of(k * tk, tk), tk), :]
            else:
                hw = hw_ref[...]
            acc_ref[...] += jnp.dot(adj_ref[...], hw,
                                    preferred_element_type=jnp.float32)

        @pl.when(k == pl.num_programs(1) - 1)
        def _():
            h = jnp.maximum(acc_ref[...] + b_ref[...], 0.0)
            h = jnp.maximum(
                jnp.dot(h.astype(jnp.bfloat16), w1_ref[...],
                        preferred_element_type=jnp.float32) + b1_ref[...], 0.0)
            logits = jnp.dot(h.astype(jnp.bfloat16), w2_ref[...],
                             preferred_element_type=jnp.float32) + b2_ref[...]
            o_ref[...] = _masked_log_softmax(logits, num_classes
                                             ).astype(o_ref.dtype)

    return kernel


def _pick_tiles(n):
    tm = ROW_TILE
    # keep >= 2 row tiles where possible so both v7x TensorCores get work
    while tm > 256 and _round_up(n, tm) // tm < 2:
        tm //= 2
    tk = max(NBR_TILE, tm)
    # shrink the neighbor tile while it would add more padding than the rows
    while tk > tm and _round_up(n, tk) > _round_up(n, tm):
        tk //= 2
    return tm, tk                            # tm | tk (both powers of two)


def _gcn_tiled_forward(adj_norm, x, conv_params, lin1, lin2, num_classes):
    n = x.shape[0]
    tm, tk = _pick_tiles(n)
    nr_pad = _round_up(n, tm)                # row (output) padding
    nc_pad = _round_up(n, tk)                # neighbor (reduction) padding
    adj_pad = _pad2d(adj_norm, nr_pad, nc_pad, jnp.bfloat16)
    h = _pad2d(x, nr_pad, _round_up(x.shape[1], LANE), jnp.bfloat16)

    def feat_transform(h_cur, w):
        # Hoisted per-layer feature transform (tiny XLA matmul); the Pallas
        # kernel then only streams the A_hat @ (h @ W) aggregation.
        h_nc = _pad_rows(h_cur, nc_pad)
        return jnp.dot(h_nc, _pad_w(w),
                       preferred_element_type=jnp.float32).astype(jnp.bfloat16)

    def is_resident(hw):
        # Resident activation slab (count x2 for pipeline buffers).
        return 2 * hw.size * hw.dtype.itemsize <= HW_RESIDENT_BYTES

    def run_layer(kernel, hw, resident_params, out_cols, out_dtype, hw_resident):
        f_pad = hw.shape[1]
        grid = (nr_pad // tm, nc_pad // tk)
        if hw_resident:
            hw_spec = pl.BlockSpec((nc_pad, f_pad), lambda i, k: (0, 0))
        else:
            hw_spec = pl.BlockSpec((tk, f_pad), lambda i, k: (k, 0))
        in_specs = [pl.BlockSpec((tm, tk), lambda i, k: (i, k)), hw_spec]
        in_specs += [pl.BlockSpec(p.shape, lambda i, k: (0, 0))
                     for p in resident_params]
        return pl.pallas_call(
            kernel,
            out_shape=jax.ShapeDtypeStruct((nr_pad, out_cols), out_dtype),
            grid_spec=pltpu.PrefetchScalarGridSpec(
                num_scalar_prefetch=0,
                grid=grid,
                in_specs=in_specs,
                out_specs=pl.BlockSpec((tm, out_cols), lambda i, k: (i, 0)),
                scratch_shapes=[pltpu.VMEM((tm, f_pad), jnp.float32)],
            ),
            compiler_params=pltpu.CompilerParams(
                dimension_semantics=("parallel", "arbitrary"),
                vmem_limit_bytes=VMEM_LIMIT,
            ),
        )(adj_pad, hw, *resident_params)

    # Hidden GCN layers: relu(A_hat @ (h @ W) + b), bf16 lane-dense outputs.
    for (w, b) in conv_params[:-1]:
        hw = feat_transform(h, w)
        res = is_resident(hw)
        kern = make_agg_relu_kernel(n_true=n, tk=tk, hw_resident=res)
        h = run_layer(kern, hw, [_pad_b(b)], hw.shape[1], jnp.bfloat16, res)

    # Final GCN layer fused with the MLP head + log_softmax (f32 output).
    (w, b) = conv_params[-1]
    w1, b1 = lin1
    w2, b2 = lin2
    hw = feat_transform(h, w)
    res = is_resident(hw)
    kern = make_agg_head_kernel(n_true=n, tk=tk, hw_resident=res,
                                num_classes=num_classes)
    c_pad = _round_up(num_classes, LANE)
    out = run_layer(kern, hw,
                    [_pad_b(b), _pad_w(w1), _pad_b(b1), _pad_w(w2), _pad_b(b2)],
                    c_pad, jnp.float32, res)
    return out[:n, :num_classes]


# ---------------------------------------------------------------------------
# public entry point
# ---------------------------------------------------------------------------
def gcn_forward(adj_norm, x, conv_params, lin1, lin2, num_classes,
                force_tiled=False):
    """adj_norm: [N,N] sym-normalized adjacency (with self loops); x: [N,F];
    conv_params: list of (W [in,out], b [out]); lin1/lin2: (W [in,out], b [out])."""
    n = x.shape[0]
    n_pad = _round_up(n, LANE)
    if not force_tiled and 2 * n_pad * n_pad <= FUSED_ADJ_BYTES:
        return _gcn_fused_forward(adj_norm, x, conv_params, lin1, lin2,
                                  num_classes)
    return _gcn_tiled_forward(adj_norm, x, conv_params, lin1, lin2, num_classes)


# ---------------------------------------------------------------------------
# reference / setup helpers
# ---------------------------------------------------------------------------
def gcn_reference(adj_norm, x, conv_params, lin1, lin2):
    h = x
    for w, b in conv_params:
        h = jnp.maximum(adj_norm @ (h @ w) + b, 0.0)
    w1, b1 = lin1
    w2, b2 = lin2
    h = jnp.maximum(h @ w1 + b1, 0.0)
    logits = h @ w2 + b2
    return jax.nn.log_softmax(logits, axis=-1)


def build_gcn_adjacency(edge_index, num_nodes):
    """Dense A_hat = D^-1/2 (A + I) D^-1/2 (GCNConv default normalization)."""
    src, dst = edge_index
    a = jnp.zeros((num_nodes, num_nodes), jnp.float32).at[dst, src].add(1.0)
    a = a + jnp.eye(num_nodes, dtype=jnp.float32)     # self loops
    deg = jnp.sum(a, axis=1)
    d = jnp.where(deg > 0, jax.lax.rsqrt(jnp.maximum(deg, 1.0)), 0.0)
    return a * d[:, None] * d[None, :]


def make_params(key, num_features, num_layers, hidden_dim, hidden_dim_post,
                num_classes):
    """Deterministic init; weights stored as [in, out], biases as [out]."""
    conv_params = []
    in_dim = num_features
    for _ in range(num_layers):
        key, kw, kb = jax.random.split(key, 3)
        w = 0.1 * jax.random.normal(kw, (in_dim, hidden_dim), jnp.float32)
        b = 0.1 * jax.random.normal(kb, (hidden_dim,), jnp.float32)
        conv_params.append((w, b))
        in_dim = hidden_dim
    key, k1, k2, k3, k4 = jax.random.split(key, 5)
    lin1 = (0.1 * jax.random.normal(k1, (hidden_dim, hidden_dim_post), jnp.float32),
            0.1 * jax.random.normal(k2, (hidden_dim_post,), jnp.float32))
    lin2 = (0.1 * jax.random.normal(k3, (hidden_dim_post, num_classes), jnp.float32),
            0.1 * jax.random.normal(k4, (num_classes,), jnp.float32))
    return conv_params, lin1, lin2


if __name__ == "__main__":
    NUM_FEATURES = 8    # dataset.num_features
    NUM_LAYERS = 2      # num_layers
    HIDDEN = 32         # hidden_dim
    HIDDEN_POST = 16    # hidden_dim_post
    NUM_CLASSES = 4     # dataset.num_classes

    key = jax.random.PRNGKey(0)
    key, kp = jax.random.split(key)
    conv_params, lin1, lin2 = make_params(kp, NUM_FEATURES, NUM_LAYERS,
                                          HIDDEN, HIDDEN_POST, NUM_CLASSES)

    def make_graph(kx, n):
        x = jax.random.normal(kx, (n, NUM_FEATURES), jnp.float32)
        idx = jnp.arange(n)                 # bidirectional ring graph [2, E]
        src = jnp.concatenate([idx, (idx + 1) % n])
        dst = jnp.concatenate([(idx + 1) % n, idx])
        edge_index = jnp.stack([src, dst], axis=0)
        # (data.batch is accepted by the torch forward but unused: no pooling.)
        return x, build_gcn_adjacency(edge_index, n)

    # 1) Small graph -> fully fused, single-launch, VMEM-resident path.
    key, kx = jax.random.split(key)
    x, adj = make_graph(kx, 300)
    out = jax.block_until_ready(
        gcn_forward(adj, x, conv_params, lin1, lin2, NUM_CLASSES))
    assert out.shape == (300, NUM_CLASSES)
    ref = gcn_reference(adj, x, conv_params, lin1, lin2)
    err = float(jnp.max(jnp.abs(out - ref)))
    assert err < 5e-2, f"fused path: max abs error vs reference too large: {err}"

    # 2) Larger graph forced through the tiled streaming path
    #    (hoisted h @ W, resident activations, 2 parallel row tiles).
    key, kx = jax.random.split(key)
    x2, adj2 = make_graph(kx, 600)
    out2 = jax.block_until_ready(
        gcn_forward(adj2, x2, conv_params, lin1, lin2, NUM_CLASSES,
                    force_tiled=True))
    assert out2.shape == (600, NUM_CLASSES)
    ref2 = gcn_reference(adj2, x2, conv_params, lin1, lin2)
    err2 = float(jnp.max(jnp.abs(out2 - ref2)))
    assert err2 < 5e-2, f"tiled path: max abs error vs reference too large: {err2}"

    print("KERNEL_OK")
</pallas_src>

<mosaic_0001>
module attributes {stable_mosaic.version = 11 : i64} {
  func.func @kernel(%arg0: memref<384x384xbf16, #tpu.memory_space<vmem>>, %arg1: memref<384x128xbf16, #tpu.memory_space<vmem>>, %arg2: memref<128x128xbf16, #tpu.memory_space<vmem>>, %arg3: memref<1x128xf32, #tpu.memory_space<vmem>>, %arg4: memref<128x128xbf16, #tpu.memory_space<vmem>>, %arg5: memref<1x128xf32, #tpu.memory_space<vmem>>, %arg6: memref<128x128xbf16, #tpu.memory_space<vmem>>, %arg7: memref<1x128xf32, #tpu.memory_space<vmem>>, %arg8: memref<128x128xbf16, #tpu.memory_space<vmem>>, %arg9: memref<1x128xf32, #tpu.memory_space<vmem>>, %arg10: memref<384x128xf32, #tpu.memory_space<vmem>>) attributes {dimension_semantics = [], scalar_prefetch = 0 : i64, scratch_operands = 0 : i64, tpu.core_type = #tpu.core_type<tc>} {
    %c0 = arith.constant 0 : index
    %c0_0 = arith.constant 0 : index
    %0 = vector.load %arg1[%c0, %c0_0] : memref<384x128xbf16, #tpu.memory_space<vmem>>, vector<384x128xbf16>
    %c0_1 = arith.constant 0 : index
    %c0_2 = arith.constant 0 : index
    %1 = vector.load %arg2[%c0_1, %c0_2] : memref<128x128xbf16, #tpu.memory_space<vmem>>, vector<128x128xbf16>
    %cst = arith.constant dense<0.000000e+00> : vector<384x128xf32>
    %2 = tpu.matmul %0, %1, %cst {dimension_numbers = #tpu.dot_dimension_numbers<[1], [0], [0], [1], [0, 0, 1, 1], [], []>} : vector<384x128xbf16>, vector<128x128xbf16>, vector<384x128xf32> -> vector<384x128xf32>
    %3 = arith.truncf %2 : vector<384x128xf32> to vector<384x128xbf16>
    %c0_3 = arith.constant 0 : index
    %c0_4 = arith.constant 0 : index
    %4 = vector.load %arg0[%c0_3, %c0_4] : memref<384x384xbf16, #tpu.memory_space<vmem>>, vector<384x384xbf16>
    %cst_5 = arith.constant dense<0.000000e+00> : vector<384x128xf32>
    %5 = tpu.matmul %4, %3, %cst_5 {dimension_numbers = #tpu.dot_dimension_numbers<[1], [0], [0], [1], [0, 0, 1, 1], [], []>} : vector<384x384xbf16>, vector<384x128xbf16>, vector<384x128xf32> -> vector<384x128xf32>
    %c0_6 = arith.constant 0 : index
    %c0_7 = arith.constant 0 : index
    %6 = vector.load %arg3[%c0_6, %c0_7] : memref<1x128xf32, #tpu.memory_space<vmem>>, vector<1x128xf32>
    %7 = vector.broadcast %6 : vector<1x128xf32> to vector<384x128xf32>
    %8 = arith.addf %5, %7 : vector<384x128xf32>
    %cst_8 = arith.constant 0.000000e+00 : f32
    %9 = vector.broadcast %cst_8 : f32 to vector<384x128xf32>
    %10 = arith.maximumf %8, %9 : vector<384x128xf32>
    %11 = arith.truncf %10 : vector<384x128xf32> to vector<384x128xbf16>
    %c0_9 = arith.constant 0 : index
    %c0_10 = arith.constant 0 : index
    %12 = vector.load %arg4[%c0_9, %c0_10] : memref<128x128xbf16, #tpu.memory_space<vmem>>, vector<128x128xbf16>
    %cst_11 = arith.constant dense<0.000000e+00> : vector<384x128xf32>
    %13 = tpu.matmul %11, %12, %cst_11 {dimension_numbers = #tpu.dot_dimension_numbers<[1], [0], [0], [1], [0, 0, 1, 1], [], []>} : vector<384x128xbf16>, vector<128x128xbf16>, vector<384x128xf32> -> vector<384x128xf32>
    %14 = arith.truncf %13 : vector<384x128xf32> to vector<384x128xbf16>
    %c0_12 = arith.constant 0 : index
    %c0_13 = arith.constant 0 : index
    %15 = vector.load %arg0[%c0_12, %c0_13] : memref<384x384xbf16, #tpu.memory_space<vmem>>, vector<384x384xbf16>
    %cst_14 = arith.constant dense<0.000000e+00> : vector<384x128xf32>
    %16 = tpu.matmul %15, %14, %cst_14 {dimension_numbers = #tpu.dot_dimension_numbers<[1], [0], [0], [1], [0, 0, 1, 1], [], []>} : vector<384x384xbf16>, vector<384x128xbf16>, vector<384x128xf32> -> vector<384x128xf32>
    %c0_15 = arith.constant 0 : index
    %c0_16 = arith.constant 0 : index
    %17 = vector.load %arg5[%c0_15, %c0_16] : memref<1x128xf32, #tpu.memory_space<vmem>>, vector<1x128xf32>
    %18 = vector.broadcast %17 : vector<1x128xf32> to vector<384x128xf32>
    %19 = arith.addf %16, %18 : vector<384x128xf32>
    %cst_17 = arith.constant 0.000000e+00 : f32
    %20 = vector.broadcast %cst_17 : f32 to vector<384x128xf32>
    %21 = arith.maximumf %19, %20 : vector<384x128xf32>
    %22 = arith.truncf %21 : vector<384x128xf32> to vector<384x128xbf16>
    %c0_18 = arith.constant 0 : index
    %c0_19 = arith.constant 0 : index
    %23 = vector.load %arg6[%c0_18, %c0_19] : memref<128x128xbf16, #tpu.memory_space<vmem>>, vector<128x128xbf16>
    %cst_20 = arith.constant dense<0.000000e+00> : vector<384x128xf32>
    %24 = tpu.matmul %22, %23, %cst_20 {dimension_numbers = #tpu.dot_dimension_numbers<[1], [0], [0], [1], [0, 0, 1, 1], [], []>} : vector<384x128xbf16>, vector<128x128xbf16>, vector<384x128xf32> -> vector<384x128xf32>
    %c0_21 = arith.constant 0 : index
    %c0_22 = arith.constant 0 : index
    %25 = vector.load %arg7[%c0_21, %c0_22] : memref<1x128xf32, #tpu.memory_space<vmem>>, vector<1x128xf32>
    %26 = vector.broadcast %25 : vector<1x128xf32> to vector<384x128xf32>
    %27 = arith.addf %24, %26 : vector<384x128xf32>
    %cst_23 = arith.constant 0.000000e+00 : f32
    %28 = vector.broadcast %cst_23 : f32 to vector<384x128xf32>
    %29 = arith.maximumf %27, %28 : vector<384x128xf32>
    %30 = arith.truncf %29 : vector<384x128xf32> to vector<384x128xbf16>
    %c0_24 = arith.constant 0 : index
    %c0_25 = arith.constant 0 : index
    %31 = vector.load %arg8[%c0_24, %c0_25] : memref<128x128xbf16, #tpu.memory_space<vmem>>, vector<128x128xbf16>
    %cst_26 = arith.constant dense<0.000000e+00> : vector<384x128xf32>
    %32 = tpu.matmul %30, %31, %cst_26 {dimension_numbers = #tpu.dot_dimension_numbers<[1], [0], [0], [1], [0, 0, 1, 1], [], []>} : vector<384x128xbf16>, vector<128x128xbf16>, vector<384x128xf32> -> vector<384x128xf32>
    %c0_27 = arith.constant 0 : index
    %c0_28 = arith.constant 0 : index
    %33 = vector.load %arg9[%c0_27, %c0_28] : memref<1x128xf32, #tpu.memory_space<vmem>>, vector<1x128xf32>
    %34 = vector.broadcast %33 : vector<1x128xf32> to vector<384x128xf32>
    %35 = arith.addf %32, %34 : vector<384x128xf32>
    %36 = tpu.iota {dimensions = array<i32: 1>} : vector<384x128xi32>
    %c4_i32 = arith.constant 4 : i32
    %37 = vector.broadcast %c4_i32 : i32 to vector<384x128xi32>
    %38 = arith.cmpi slt, %36, %37 : vector<384x128xi32>
    %cst_29 = arith.constant -1.000000e+30 : f32
    %39 = vector.broadcast %cst_29 : f32 to vector<384x128xf32>
    %40 = arith.select %38, %35, %39 : vector<384x128xi1>, vector<384x128xf32>
    %cst_30 = arith.constant dense<0xFF800000> : vector<384xf32>
    %41 = vector.multi_reduction <maximumf>, %40, %cst_30 [1] : vector<384x128xf32> to vector<384xf32>
    %42 = vector.shape_cast %41 : vector<384xf32> to vector<384x1xf32>
    %43 = vector.broadcast %42 : vector<384x1xf32> to vector<384x128xf32>
    %44 = arith.subf %40, %43 : vector<384x128xf32>
    %45 = math.exp %44 : vector<384x128xf32>
    %cst_31 = arith.constant dense<0.000000e+00> : vector<384xf32>
    %46 = vector.multi_reduction <add>, %45, %cst_31 [1] : vector<384x128xf32> to vector<384xf32>
    %47 = vector.shape_cast %46 : vector<384xf32> to vector<384x1xf32>
    %48 = math.log %47 : vector<384x1xf32>
    %49 = vector.broadcast %48 : vector<384x1xf32> to vector<384x128xf32>
    %50 = arith.subf %44, %49 : vector<384x128xf32>
    %c0_32 = arith.constant 0 : index
    %c0_33 = arith.constant 0 : index
    %51 = vector.load %arg10[%c0_32, %c0_33] : memref<384x128xf32, #tpu.memory_space<vmem>>, vector<384x128xf32>
    tpu.vector_store %arg10[%c0_32, %c0_33], %50 {strides = array<i32>} : memref<384x128xf32, #tpu.memory_space<vmem>>, vector<384x128xf32>,
    return
  }
}

</mosaic_0001>

<llo_original>
// kernel: tpu_custom_call.1
$region0: #{tpu_custom_call.1}
  #allocation0 [shape = 'u32[]', space=smem, size = 0x4, offset = 0x4, fixed_abs, tag = 'smem constant byte address 0x4 - core index']
  #allocation1 [shape = 'u32[144,128]{1,0:T(1,128)}', space=vmem, size = 0x12000, scoped, tag = 'internal scratch']
  %s0 = inlined_call_operand.hbm [shape: bf16[384,384], index: 0, kind: input, shape index: {}]
  %s1 = inlined_call_operand.hbm [shape: bf16[384,128], index: 1, kind: input, shape index: {}]
  %s2 = inlined_call_operand.hbm [shape: bf16[128,128], index: 2, kind: input, shape index: {}]
  %s3 = inlined_call_operand.vmem [shape: f32[1,128], index: 3, kind: input, shape index: {}]
  %s4 = inlined_call_operand.hbm [shape: bf16[128,128], index: 4, kind: input, shape index: {}]
  %s5 = inlined_call_operand.vmem [shape: f32[1,128], index: 5, kind: input, shape index: {}]
  %s6 = inlined_call_operand.hbm [shape: bf16[128,128], index: 6, kind: input, shape index: {}]
  %s7 = inlined_call_operand.vmem [shape: f32[1,128], index: 7, kind: input, shape index: {}]
  %s8 = inlined_call_operand.hbm [shape: bf16[128,128], index: 8, kind: input, shape index: {}]
  %s9 = inlined_call_operand.vmem [shape: f32[1,128], index: 9, kind: input, shape index: {}]
  %s10 = inlined_call_operand.hbm [shape: f32[384,128], index: 10, kind: output, shape index: {}]
  %s11 = sld [smem:[#allocation0]]
  $region74: #{tpu_custom_call.1} parent=0
    _
  %s13 = ssub.s32 1, %s11
  %s14 = scalar_select 0, %s13, %s11
  $region1: #{tpu_custom_call.1} parent=0
    #allocation2 [shape = 'u8[294912]{0}', space=vmem, size = 0x48000, scoped, tag = 'input window, operand 0, single buffered']
    #allocation3 [shape = 's32[1]{0}', space=sflag, size = 0x4, scoped, tag = 'scoped memory for tpu_custom_call.1']
    #allocation4 [shape = 's32[1]{0}', space=sflag, size = 0x4, scoped, tag = 'scoped memory for tpu_custom_call.1']
    #allocation5 [shape = 'u8[98304]{0}', space=vmem, size = 0x18000, scoped, tag = 'input window, operand 1, single buffered']
    #allocation6 [shape = 's32[1]{0}', space=sflag, size = 0x4, scoped, tag = 'scoped memory for tpu_custom_call.1']
    #allocation7 [shape = 'u8[32768]{0}', space=vmem, size = 0x8000, scoped, tag = 'input window, operand 2, single buffered']
    #allocation8 [shape = 'u8[32768]{0}', space=vmem, size = 0x8000, scoped, tag = 'input window, operand 4, single buffered']
    #allocation9 [shape = 's32[1]{0}', space=sflag, size = 0x4, scoped, tag = 'scoped memory for tpu_custom_call.1']
    #allocation10 [shape = 'u8[32768]{0}', space=vmem, size = 0x8000, scoped, tag = 'input window, operand 6, single buffered']
    #allocation11 [shape = 'u8[32768]{0}', space=vmem, size = 0x8000, scoped, tag = 'input window, operand 8, single buffered']
    #allocation12 [shape = 's32[1]{0}', space=sflag, size = 0x4, scoped, tag = 'scoped memory for tpu_custom_call.1']
    #allocation13 [shape = 'u8[196608]{0}', space=vmem, size = 0x30000, scoped, tag = 'output window, operand 0, single buffered']
    %15 = vsyncpa [#allocation3], 0
    %16 = vsyncpa [#allocation6], 0
    %17 = vsyncpa [#allocation9], 0
    %18 = vsyncpa [#allocation12], 0
    %19 = vsyncpa [#allocation4], 0
    // Predicated region
    $region2: #{tpu_custom_call.1} parent=1 // pred_check
      _
    $region3: #{tpu_custom_call.1} parent=1 // pred_check_branch
      %21 = sbr.rel (0) target = $region5
    $region4: #{tpu_custom_call.1} parent=1 // pred_region
      %s23 = ssub.s32 9216, 9216
      %24 = vsyncadd [#allocation3], %s23
      %s25 = sshll.u32 [#allocation2], 4
      %s26 = int_to_ptr.vmem [resolvable:$true] %s25
      %31 = dma.hbm_to_vmem [thread:$0]  %s0, 9216, %s26, [#allocation3], 192, 192, 12
    $region5: #{tpu_custom_call.1} parent=1 // pred_fallthru
      _
    // Predicated region
    $region6: #{tpu_custom_call.1} parent=1 // pred_check
      _
    $region7: #{tpu_custom_call.1} parent=1 // pred_check_branch
      %33 = sbr.rel (0) target = $region9
    $region8: #{tpu_custom_call.1} parent=1 // pred_region
      %s35 = ssub.s32 3072, 3072
      %36 = vsyncadd [#allocation6], %s35
      %s37 = sshll.u32 [#allocation5], 4
      %s38 = int_to_ptr.vmem [resolvable:$true] %s37
      %43 = dma.hbm_to_vmem [thread:$0]  %s1, 3072, %s38, [#allocation6], 64, 64, 4
    $region9: #{tpu_custom_call.1} parent=1 // pred_fallthru
      _
    // Predicated region
    $region10: #{tpu_custom_call.1} parent=1 // pred_check
      _
    $region11: #{tpu_custom_call.1} parent=1 // pred_check_branch
      %45 = sbr.rel (0) target = $region13
    $region12: #{tpu_custom_call.1} parent=1 // pred_region
      %s47 = ssub.s32 1024, 1024
      %48 = vsyncadd [#allocation6], %s47
      %s49 = sshll.u32 [#allocation7], 4
      %s50 = int_to_ptr.vmem [resolvable:$true] %s49
      %55 = dma.hbm_to_vmem [thread:$0]  %s2, 1024, %s50, [#allocation6], 64, 64, 4
    $region13: #{tpu_custom_call.1} parent=1 // pred_fallthru
      _
    // Predicated region
    $region14: #{tpu_custom_call.1} parent=1 // pred_check
      _
    $region15: #{tpu_custom_call.1} parent=1 // pred_check_branch
      %57 = sbr.rel (0) target = $region17
    $region16: #{tpu_custom_call.1} parent=1 // pred_region
      _
    $region17: #{tpu_custom_call.1} parent=1 // pred_fallthru
      _
    // Predicated region
    $region18: #{tpu_custom_call.1} parent=1 // pred_check
      _
    $region19: #{tpu_custom_call.1} parent=1 // pred_check_branch
      %59 = sbr.rel (0) target = $region21
    $region20: #{tpu_custom_call.1} parent=1 // pred_region
      %s61 = ssub.s32 1024, 1024
      %62 = vsyncadd [#allocation9], %s61
      %s63 = sshll.u32 [#allocation8], 4
      %s64 = int_to_ptr.vmem [resolvable:$true] %s63
      %69 = dma.hbm_to_vmem [thread:$0]  %s4, 1024, %s64, [#allocation9], 64, 64, 4
    $region21: #{tpu_custom_call.1} parent=1 // pred_fallthru
      _
    // Predicated region
    $region22: #{tpu_custom_call.1} parent=1 // pred_check
      _
    $region23: #{tpu_custom_call.1} parent=1 // pred_check_branch
      %71 = sbr.rel (0) target = $region25
    $region24: #{tpu_custom_call.1} parent=1 // pred_region
      _
    $region25: #{tpu_custom_call.1} parent=1 // pred_fallthru
      _
    // Predicated region
    $region26: #{tpu_custom_call.1} parent=1 // pred_check
      _
    $region27: #{tpu_custom_call.1} parent=1 // pred_check_branch
      %73 = sbr.rel (0) target = $region29
    $region28: #{tpu_custom_call.1} parent=1 // pred_region
      %s75 = ssub.s32 1024, 1024
      %76 = vsyncadd [#allocation9], %s75
      %s77 = sshll.u32 [#allocation10], 4
      %s78 = int_to_ptr.vmem [resolvable:$true] %s77
      %83 = dma.hbm_to_vmem [thread:$0]  %s6, 1024, %s78, [#allocation9], 64, 64, 4
    $region29: #{tpu_custom_call.1} parent=1 // pred_fallthru
      _
    // Predicated region
    $region30: #{tpu_custom_call.1} parent=1 // pred_check
      _
    $region31: #{tpu_custom_call.1} parent=1 // pred_check_branch
      %85 = sbr.rel (0) target = $region33
    $region32: #{tpu_custom_call.1} parent=1 // pred_region
      _
    $region33: #{tpu_custom_call.1} parent=1 // pred_fallthru
      _
    // Predicated region
    $region34: #{tpu_custom_call.1} parent=1 // pred_check
      _
    $region35: #{tpu_custom_call.1} parent=1 // pred_check_branch
      %87 = sbr.rel (0) target = $region37
    $region36: #{tpu_custom_call.1} parent=1 // pred_region
      %s89 = ssub.s32 1024, 1024
      %90 = vsyncadd [#allocation12], %s89
      %s91 = sshll.u32 [#allocation11], 4
      %s92 = int_to_ptr.vmem [resolvable:$true] %s91
      %97 = dma.hbm_to_vmem [thread:$0]  %s8, 1024, %s92, [#allocation12], 64, 64, 4
    $region37: #{tpu_custom_call.1} parent=1 // pred_fallthru
      _
    // Predicated region
    $region38: #{tpu_custom_call.1} parent=1 // pred_check
      _
    $region39: #{tpu_custom_call.1} parent=1 // pred_check_branch
      %99 = sbr.rel (0) target = $region41
    $region40: #{tpu_custom_call.1} parent=1 // pred_region
      _
    $region41: #{tpu_custom_call.1} parent=1 // pred_fallthru
      _
    // Predicated region
    $region42: #{tpu_custom_call.1} parent=1 // pred_check
      _
    $region43: #{tpu_custom_call.1} parent=1 // pred_check_branch
      %101 = sbr.rel (0) target = $region45
    $region44: #{tpu_custom_call.1} parent=1 // pred_region
      %102 = dma.done [#allocation3], 9216
    $region45: #{tpu_custom_call.1} parent=1 // pred_fallthru
      _
    // Predicated region
    $region46: #{tpu_custom_call.1} parent=1 // pred_check
      _
    $region47: #{tpu_custom_call.1} parent=1 // pred_check_branch
      %104 = sbr.rel (0) target = $region49
    $region48: #{tpu_custom_call.1} parent=1 // pred_region
      %105 = dma.done [#allocation6], 3072
    $region49: #{tpu_custom_call.1} parent=1 // pred_fallthru
      _
    // Predicated region
    $region50: #{tpu_custom_call.1} parent=1 // pred_check
      _
    $region51: #{tpu_custom_call.1} parent=1 // pred_check_branch
      %107 = sbr.rel (0) target = $region53
    $region52: #{tpu_custom_call.1} parent=1 // pred_region
      %108 = dma.done [#allocation6], 1024
    $region53: #{tpu_custom_call.1} parent=1 // pred_fallthru
      _
    // Predicated region
    $region54: #{tpu_custom_call.1} parent=1 // pred_check
      _
    $region55: #{tpu_custom_call.1} parent=1 // pred_check_branch
      %110 = sbr.rel (0) target = $region57
    $region56: #{tpu_custom_call.1} parent=1 // pred_region
      %111 = dma.done [#allocation9], 1024
    $region57: #{tpu_custom_call.1} parent=1 // pred_fallthru
      _
    // Predicated region
    $region58: #{tpu_custom_call.1} parent=1 // pred_check
      _
    $region59: #{tpu_custom_call.1} parent=1 // pred_check_branch
      %113 = sbr.rel (0) target = $region61
    $region60: #{tpu_custom_call.1} parent=1 // pred_region
      %114 = dma.done [#allocation9], 1024
    $region61: #{tpu_custom_call.1} parent=1 // pred_fallthru
      _
    // Predicated region
    $region62: #{tpu_custom_call.1} parent=1 // pred_check
      _
    $region63: #{tpu_custom_call.1} parent=1 // pred_check_branch
      %116 = sbr.rel (0) target = $region65
    $region64: #{tpu_custom_call.1} parent=1 // pred_region
      %117 = dma.done [#allocation12], 1024
    $region65: #{tpu_custom_call.1} parent=1 // pred_fallthru
      _
    %v119 = vld [vmem:[#allocation5] sm:$0xf]
    %v120 = vld [vmem:[#allocation5 + $0x4] sm:$0xf]
    %v121 = vld [vmem:[#allocation5 + $0x8] sm:$0xf]
    %v122 = vld [vmem:[#allocation5 + $0xc] sm:$0xf]
    %v123 = vld [vmem:[#allocation5 + $0x10] sm:$0xf]
    %v124 = vld [vmem:[#allocation5 + $0x14] sm:$0xf]
    %v125 = vld [vmem:[#allocation5 + $0x18] sm:$0xf]
    %v126 = vld [vmem:[#allocation5 + $0x1c] sm:$0xf]
    %v127 = vld [vmem:[#allocation5 + $0x20] sm:$0xf]
    %v128 = vld [vmem:[#allocation5 + $0x24] sm:$0xf]
    %v129 = vld [vmem:[#allocation5 + $0x28] sm:$0xf]
    %v130 = vld [vmem:[#allocation5 + $0x2c] sm:$0xf]
    %v131 = vld [vmem:[#allocation5 + $0x30] sm:$0xf]
    %v132 = vld [vmem:[#allocation5 + $0x34] sm:$0xf]
    %v133 = vld [vmem:[#allocation5 + $0x38] sm:$0xf]
    %v134 = vld [vmem:[#allocation5 + $0x3c] sm:$0xf]
    %v135 = vld [vmem:[#allocation5 + $0x40] sm:$0xf]
    %v136 = vld [vmem:[#allocation5 + $0x44] sm:$0xf]
    %v137 = vld [vmem:[#allocation5 + $0x48] sm:$0xf]
    %v138 = vld [vmem:[#allocation5 + $0x4c] sm:$0xf]
    %v139 = vld [vmem:[#allocation5 + $0x50] sm:$0xf]
    %v140 = vld [vmem:[#allocation5 + $0x54] sm:$0xf]
    %v141 = vld [vmem:[#allocation5 + $0x58] sm:$0xf]
    %v142 = vld [vmem:[#allocation5 + $0x5c] sm:$0xf]
    %v143 = vld [vmem:[#allocation5 + $0x60] sm:$0xf]
    %v144 = vld [vmem:[#allocation5 + $0x64] sm:$0xf]
    %v145 = vld [vmem:[#allocation5 + $0x68] sm:$0xf]
    %v146 = vld [vmem:[#allocation5 + $0x6c] sm:$0xf]
    %v147 = vld [vmem:[#allocation5 + $0x70] sm:$0xf]
    %v148 = vld [vmem:[#allocation5 + $0x74] sm:$0xf]
    %v149 = vld [vmem:[#allocation5 + $0x78] sm:$0xf]
    %v150 = vld [vmem:[#allocation5 + $0x7c] sm:$0xf]
    %v151 = vld [vmem:[#allocation5 + $0x80] sm:$0xf]
    %v152 = vld [vmem:[#allocation5 + $0x84] sm:$0xf]
    %v153 = vld [vmem:[#allocation5 + $0x88] sm:$0xf]
    %v154 = vld [vmem:[#allocation5 + $0x8c] sm:$0xf]
    %v155 = vld [vmem:[#allocation5 + $0x90] sm:$0xf]
    %v156 = vld [vmem:[#allocation5 + $0x94] sm:$0xf]
    %v157 = vld [vmem:[#allocation5 + $0x98] sm:$0xf]
    %v158 = vld [vmem:[#allocation5 + $0x9c] sm:$0xf]
    %v159 = vld [vmem:[#allocation5 + $0xa0] sm:$0xf]
    %v160 = vld [vmem:[#allocation5 + $0xa4] sm:$0xf]
    %v161 = vld [vmem:[#allocation5 + $0xa8] sm:$0xf]
    %v162 = vld [vmem:[#allocation5 + $0xac] sm:$0xf]
    %v163 = vld [vmem:[#allocation5 + $0xb0] sm:$0xf]
    %v164 = vld [vmem:[#allocation5 + $0xb4] sm:$0xf]
    %v165 = vld [vmem:[#allocation5 + $0xb8] sm:$0xf]
    %v166 = vld [vmem:[#allocation5 + $0xbc] sm:$0xf]
    %v167 = vld [vmem:[#allocation7] sm:$0xf]
    %v168 = vld [vmem:[#allocation7 + $0x4] sm:$0xf]
    %v169 = vld [vmem:[#allocation7 + $0x8] sm:$0xf]
    %v170 = vld [vmem:[#allocation7 + $0xc] sm:$0xf]
    %v171 = vld [vmem:[#allocation7 + $0x10] sm:$0xf]
    %v172 = vld [vmem:[#allocation7 + $0x14] sm:$0xf]
    %v173 = vld [vmem:[#allocation7 + $0x18] sm:$0xf]
    %v174 = vld [vmem:[#allocation7 + $0x1c] sm:$0xf]
    %v175 = vld [vmem:[#allocation7 + $0x20] sm:$0xf]
    %v176 = vld [vmem:[#allocation7 + $0x24] sm:$0xf]
    %v177 = vld [vmem:[#allocation7 + $0x28] sm:$0xf]
    %v178 = vld [vmem:[#allocation7 + $0x2c] sm:$0xf]
    %v179 = vld [vmem:[#allocation7 + $0x30] sm:$0xf]
    %v180 = vld [vmem:[#allocation7 + $0x34] sm:$0xf]
    %v181 = vld [vmem:[#allocation7 + $0x38] sm:$0xf]
    %v182 = vld [vmem:[#allocation7 + $0x3c] sm:$0xf]
    %v231 = vunpack.c.l.b16 %v119
    %v232 = vunpack.c.l.b16 %v120
    %v233 = vunpack.c.l.b16 %v121
    %v234 = vunpack.c.l.b16 %v122
    %v235 = vunpack.c.l.b16 %v123
    %v236 = vunpack.c.l.b16 %v124
    %v237 = vunpack.c.l.b16 %v125
    %v238 = vunpack.c.l.b16 %v126
    %v239 = vunpack.c.l.b16 %v127
    %v240 = vunpack.c.l.b16 %v128
    %v241 = vunpack.c.l.b16 %v129
    %v242 = vunpack.c.l.b16 %v130
    %v243 = vunpack.c.l.b16 %v131
    %v244 = vunpack.c.l.b16 %v132
    %v245 = vunpack.c.l.b16 %v133
    %v246 = vunpack.c.l.b16 %v134
    %v247 = vunpack.c.l.b16 %v135
    %v248 = vunpack.c.l.b16 %v136
    %v249 = vunpack.c.l.b16 %v137
    %v250 = vunpack.c.l.b16 %v138
    %v251 = vunpack.c.l.b16 %v139
    %v252 = vunpack.c.l.b16 %v140
    %v253 = vunpack.c.l.b16 %v141
    %v254 = vunpack.c.l.b16 %v142
    %v255 = vunpack.c.l.b16 %v143
    %v256 = vunpack.c.l.b16 %v144
    %v257 = vunpack.c.l.b16 %v145
    %v258 = vunpack.c.l.b16 %v146
    %v259 = vunpack.c.l.b16 %v147
    %v260 = vunpack.c.l.b16 %v148
    %v261 = vunpack.c.l.b16 %v149
    %v262 = vunpack.c.l.b16 %v150
    %v263 = vunpack.c.l.b16 %v151
    %v264 = vunpack.c.l.b16 %v152
    %v265 = vunpack.c.l.b16 %v153
    %v266 = vunpack.c.l.b16 %v154
    %v267 = vunpack.c.l.b16 %v155
    %v268 = vunpack.c.l.b16 %v156
    %v269 = vunpack.c.l.b16 %v157
    %v270 = vunpack.c.l.b16 %v158
    %v271 = vunpack.c.l.b16 %v159
    %v272 = vunpack.c.l.b16 %v160
    %v273 = vunpack.c.l.b16 %v161
    %v274 = vunpack.c.l.b16 %v162
    %v275 = vunpack.c.l.b16 %v163
    %v276 = vunpack.c.l.b16 %v164
    %v277 = vunpack.c.l.b16 %v165
    %v278 = vunpack.c.l.b16 %v166
    %v279 = vpack.c.b16 %v232, %v231
    %v280 = vpack.c.b16 %v234, %v233
    %v281 = vpack.c.b16 %v236, %v235
    %v282 = vpack.c.b16 %v238, %v237
    %v283 = vpack.c.b16 %v240, %v239
    %v284 = vpack.c.b16 %v242, %v241
    %v285 = vpack.c.b16 %v244, %v243
    %v286 = vpack.c.b16 %v246, %v245
    %v287 = vpack.c.b16 %v248, %v247
    %v288 = vpack.c.b16 %v250, %v249
    %v289 = vpack.c.b16 %v252, %v251
    %v290 = vpack.c.b16 %v254, %v253
    %v291 = vpack.c.b16 %v256, %v255
    %v292 = vpack.c.b16 %v258, %v257
    %v293 = vpack.c.b16 %v260, %v259
    %v294 = vpack.c.b16 %v262, %v261
    %v295 = vpack.c.b16 %v264, %v263
    %v296 = vpack.c.b16 %v266, %v265
    %v297 = vpack.c.b16 %v268, %v267
    %v298 = vpack.c.b16 %v270, %v269
    %v299 = vpack.c.b16 %v272, %v271
    %v300 = vpack.c.b16 %v274, %v273
    %v301 = vpack.c.b16 %v276, %v275
    %v302 = vpack.c.b16 %v278, %v277
    %v343 = vunpack.c.l.b16 %v167
    %v344 = vunpack.c.l.b16 %v168
    %v345 = vunpack.c.l.b16 %v169
    %v346 = vunpack.c.l.b16 %v170
    %v347 = vunpack.c.l.b16 %v171
    %v348 = vunpack.c.l.b16 %v172
    %v349 = vunpack.c.l.b16 %v173
    %v350 = vunpack.c.l.b16 %v174
    %v351 = vunpack.c.l.b16 %v175
    %v352 = vunpack.c.l.b16 %v176
    %v353 = vunpack.c.l.b16 %v177
    %v354 = vunpack.c.l.b16 %v178
    %v355 = vunpack.c.l.b16 %v179
    %v356 = vunpack.c.l.b16 %v180
    %v357 = vunpack.c.l.b16 %v181
    %v358 = vunpack.c.l.b16 %v182
    %v359 = vpack.c.b16 %v344, %v343
    %v360 = vpack.c.b16 %v346, %v345
    %v361 = vpack.c.b16 %v348, %v347
    %v362 = vpack.c.b16 %v350, %v349
    %v363 = vpack.c.b16 %v352, %v351
    %v364 = vpack.c.b16 %v354, %v353
    %v365 = vpack.c.b16 %v356, %v355
    %v366 = vpack.c.b16 %v358, %v357
    %375 = vmatprep.subr.bf16.mxu0 0
    %376 = vmatpush1.bf16.msra.mxu0 %v366
    %377 = vmatprep.subr.bf16.mxu0 0
    %378 = vmatpush1.bf16.msra.mxu0 %v365
    %379 = vmatprep.subr.bf16.mxu0 0
    %380 = vmatpush1.bf16.msra.mxu0 %v364
    %381 = vmatprep.subr.bf16.mxu0 0
    %382 = vmatpush1.bf16.msra.mxu0 %v363
    %383 = vmatprep.subr.bf16.mxu0 0
    %384 = vmatpush1.bf16.msra.mxu0 %v362
    %385 = vmatprep.subr.bf16.mxu0 0
    %386 = vmatpush1.bf16.msra.mxu0 %v361
    %387 = vmatprep.subr.bf16.mxu0 0
    %388 = vmatpush1.bf16.msra.mxu0 %v360
    %389 = vmatprep.subr.bf16.mxu0 0
    %390 = vmatpush1.bf16.msra.mxu0 %v359
    %391 = vmatprep.subr.bf16.mxu0 0
    %392 = vmatpush2.bf16.msra.mxu0 0
    %393 = vmatprep.subr.bf16.mxu0 0
    %394 = vmatpush2.bf16.msra.mxu0 0
    %395 = vmatprep.subr.bf16.mxu0 0
    %396 = vmatpush2.bf16.msra.mxu0 0
    %397 = vmatprep.subr.bf16.mxu0 0
    %398 = vmatpush2.bf16.msra.mxu0 0
    %399 = vmatprep.subr.bf16.mxu0 0
    %400 = vmatpush2.bf16.msra.mxu0 0
    %401 = vmatprep.subr.bf16.mxu0 0
    %402 = vmatpush2.bf16.msra.mxu0 0
    %403 = vmatprep.subr.bf16.mxu0 0
    %404 = vmatpush2.bf16.msra.mxu0 0
    %405 = vmatprep.subr.bf16.mxu0 0
    %406 = vmatpush2.bf16.msra.mxu0 0
    %407 = vmatprep.mubr.bf16.mxu0 0
    %408 = vmatmul.mubr.bf16.gmra.mxu0 %v279
    %v409 = vpop.f32.mrf.mxu0
    %v410 = vadd.f32 0.0, %v409
    %v411 = vpop.f32.mrf.mxu0
    %v412 = vpop.f32.mrf.mxu0
    %v413 = vadd.f32 0.0, %v412
    %v414 = vpop.f32.mrf.mxu0
    %415 = vmatprep.mubr.bf16.mxu0 0
    %416 = vmatmul.mubr.bf16.gmra.mxu0 %v280
    %v417 = vpop.f32.mrf.mxu0
    %v418 = vadd.f32 0.0, %v417
    %v419 = vpop.f32.mrf.mxu0
    %v420 = vpop.f32.mrf.mxu0
    %v421 = vadd.f32 0.0, %v420
    %v422 = vpop.f32.mrf.mxu0
    %423 = vmatprep.mubr.bf16.mxu0 0
    %424 = vmatmul.mubr.bf16.gmra.mxu0 %v281
    %v425 = vpop.f32.mrf.mxu0
    %v426 = vadd.f32 0.0, %v425
    %v427 = vpop.f32.mrf.mxu0
    %v428 = vpop.f32.mrf.mxu0
    %v429 = vadd.f32 0.0, %v428
    %v430 = vpop.f32.mrf.mxu0
    %431 = vmatprep.mubr.bf16.mxu0 0
    %432 = vmatmul.mubr.bf16.gmra.mxu0 %v282
    %v433 = vpop.f32.mrf.mxu0
    %v434 = vadd.f32 0.0, %v433
    %v435 = vpop.f32.mrf.mxu0
    %v436 = vpop.f32.mrf.mxu0
    %v437 = vadd.f32 0.0, %v436
    %v438 = vpop.f32.mrf.mxu0
    %439 = vmatprep.mubr.bf16.mxu0 0
    %440 = vmatmul.mubr.bf16.gmra.mxu0 %v283
    %v441 = vpop.f32.mrf.mxu0
    %v442 = vadd.f32 0.0, %v441
    %v443 = vpop.f32.mrf.mxu0
    %v444 = vpop.f32.mrf.mxu0
    %v445 = vadd.f32 0.0, %v444
    %v446 = vpop.f32.mrf.mxu0
    %447 = vmatprep.mubr.bf16.mxu0 0
    %448 = vmatmul.mubr.bf16.gmra.mxu0 %v284
    %v449 = vpop.f32.mrf.mxu0
    %v450 = vadd.f32 0.0, %v449
    %v451 = vpop.f32.mrf.mxu0
    %v452 = vpop.f32.mrf.mxu0
    %v453 = vadd.f32 0.0, %v452
    %v454 = vpop.f32.mrf.mxu0
    %455 = vmatprep.mubr.bf16.mxu0 0
    %456 = vmatmul.mubr.bf16.gmra.mxu0 %v285
    %v457 = vpop.f32.mrf.mxu0
    %v458 = vadd.f32 0.0, %v457
    %v459 = vpop.f32.mrf.mxu0
    %v460 = vpop.f32.mrf.mxu0
    %v461 = vadd.f32 0.0, %v460
    %v462 = vpop.f32.mrf.mxu0
    %463 = vmatprep.mubr.bf16.mxu0 0
    %464 = vmatmul.mubr.bf16.gmra.mxu0 %v286
    %v465 = vpop.f32.mrf.mxu0
    %v466 = vadd.f32 0.0, %v465
    %v467 = vpop.f32.mrf.mxu0
    %v468 = vpop.f32.mrf.mxu0
    %v469 = vadd.f32 0.0, %v468
    %v470 = vpop.f32.mrf.mxu0
    %471 = vmatprep.mubr.bf16.mxu0 0
    %472 = vmatmul.mubr.bf16.gmra.mxu0 %v287
    %v473 = vpop.f32.mrf.mxu0
    %v474 = vadd.f32 0.0, %v473
    %v475 = vpop.f32.mrf.mxu0
    %v476 = vpop.f32.mrf.mxu0
    %v477 = vadd.f32 0.0, %v476
    %v478 = vpop.f32.mrf.mxu0
    %479 = vmatprep.mubr.bf16.mxu0 0
    %480 = vmatmul.mubr.bf16.gmra.mxu0 %v288
    %v481 = vpop.f32.mrf.mxu0
    %v482 = vadd.f32 0.0, %v481
    %v483 = vpop.f32.mrf.mxu0
    %v484 = vpop.f32.mrf.mxu0
    %v485 = vadd.f32 0.0, %v484
    %v486 = vpop.f32.mrf.mxu0
    %487 = vmatprep.mubr.bf16.mxu0 0
    %488 = vmatmul.mubr.bf16.gmra.mxu0 %v289
    %v489 = vpop.f32.mrf.mxu0
    %v490 = vadd.f32 0.0, %v489
    %v491 = vpop.f32.mrf.mxu0
    %v492 = vpop.f32.mrf.mxu0
    %v493 = vadd.f32 0.0, %v492
    %v494 = vpop.f32.mrf.mxu0
    %495 = vmatprep.mubr.bf16.mxu0 0
    %496 = vmatmul.mubr.bf16.gmra.mxu0 %v290
    %v497 = vpop.f32.mrf.mxu0
    %v498 = vadd.f32 0.0, %v497
    %v499 = vpop.f32.mrf.mxu0
    %v500 = vpop.f32.mrf.mxu0
    %v501 = vadd.f32 0.0, %v500
    %v502 = vpop.f32.mrf.mxu0
    %503 = vmatprep.mubr.bf16.mxu0 0
    %504 = vmatmul.mubr.bf16.gmra.mxu0 %v291
    %v505 = vpop.f32.mrf.mxu0
    %v506 = vadd.f32 0.0, %v505
    %v507 = vpop.f32.mrf.mxu0
    %v508 = vpop.f32.mrf.mxu0
    %v509 = vadd.f32 0.0, %v508
    %v510 = vpop.f32.mrf.mxu0
    %511 = vmatprep.mubr.bf16.mxu0 0
    %512 = vmatmul.mubr.bf16.gmra.mxu0 %v292
    %v513 = vpop.f32.mrf.mxu0
    %v514 = vadd.f32 0.0, %v513
    %v515 = vpop.f32.mrf.mxu0
    %v516 = vpop.f32.mrf.mxu0
    %v517 = vadd.f32 0.0, %v516
    %v518 = vpop.f32.mrf.mxu0
    %519 = vmatprep.mubr.bf16.mxu0 0
    %520 = vmatmul.mubr.bf16.gmra.mxu0 %v293
    %v521 = vpop.f32.mrf.mxu0
    %v522 = vadd.f32 0.0, %v521
    %v523 = vpop.f32.mrf.mxu0
    %v524 = vpop.f32.mrf.mxu0
    %v525 = vadd.f32 0.0, %v524
    %v526 = vpop.f32.mrf.mxu0
    %527 = vmatprep.mubr.bf16.mxu0 0
    %528 = vmatmul.mubr.bf16.gmra.mxu0 %v294
    %v529 = vpop.f32.mrf.mxu0
    %v530 = vadd.f32 0.0, %v529
    %v531 = vpop.f32.mrf.mxu0
    %v532 = vpop.f32.mrf.mxu0
    %v533 = vadd.f32 0.0, %v532
    %v534 = vpop.f32.mrf.mxu0
    %535 = vmatprep.mubr.bf16.mxu0 0
    %536 = vmatmul.mubr.bf16.gmra.mxu0 %v295
    %v537 = vpop.f32.mrf.mxu0
    %v538 = vadd.f32 0.0, %v537
    %v539 = vpop.f32.mrf.mxu0
    %v540 = vpop.f32.mrf.mxu0
    %v541 = vadd.f32 0.0, %v540
    %v542 = vpop.f32.mrf.mxu0
    %543 = vmatprep.mubr.bf16.mxu0 0
    %544 = vmatmul.mubr.bf16.gmra.mxu0 %v296
    %v545 = vpop.f32.mrf.mxu0
    %v546 = vadd.f32 0.0, %v545
    %v547 = vpop.f32.mrf.mxu0
    %v548 = vpop.f32.mrf.mxu0
    %v549 = vadd.f32 0.0, %v548
    %v550 = vpop.f32.mrf.mxu0
    %551 = vmatprep.mubr.bf16.mxu0 0
    %552 = vmatmul.mubr.bf16.gmra.mxu0 %v297
    %v553 = vpop.f32.mrf.mxu0
    %v554 = vadd.f32 0.0, %v553
    %v555 = vpop.f32.mrf.mxu0
    %v556 = vpop.f32.mrf.mxu0
    %v557 = vadd.f32 0.0, %v556
    %v558 = vpop.f32.mrf.mxu0
    %559 = vmatprep.mubr.bf16.mxu0 0
    %560 = vmatmul.mubr.bf16.gmra.mxu0 %v298
    %v561 = vpop.f32.mrf.mxu0
    %v562 = vadd.f32 0.0, %v561
    %v563 = vpop.f32.mrf.mxu0
    %v564 = vpop.f32.mrf.mxu0
    %v565 = vadd.f32 0.0, %v564
    %v566 = vpop.f32.mrf.mxu0
    %567 = vmatprep.mubr.bf16.mxu0 0
    %568 = vmatmul.mubr.bf16.gmra.mxu0 %v299
    %v569 = vpop.f32.mrf.mxu0
    %v570 = vadd.f32 0.0, %v569
    %v571 = vpop.f32.mrf.mxu0
    %v572 = vpop.f32.mrf.mxu0
    %v573 = vadd.f32 0.0, %v572
    %v574 = vpop.f32.mrf.mxu0
    %575 = vmatprep.mubr.bf16.mxu0 0
    %576 = vmatmul.mubr.bf16.gmra.mxu0 %v300
    %v577 = vpop.f32.mrf.mxu0
    %v578 = vadd.f32 0.0, %v577
    %v579 = vpop.f32.mrf.mxu0
    %v580 = vpop.f32.mrf.mxu0
    %v581 = vadd.f32 0.0, %v580
    %v582 = vpop.f32.mrf.mxu0
    %583 = vmatprep.mubr.bf16.mxu0 0
    %584 = vmatmul.mubr.bf16.gmra.mxu0 %v301
    %v585 = vpop.f32.mrf.mxu0
    %v586 = vadd.f32 0.0, %v585
    %v587 = vpop.f32.mrf.mxu0
    %v588 = vpop.f32.mrf.mxu0
    %v589 = vadd.f32 0.0, %v588
    %v590 = vpop.f32.mrf.mxu0
    %591 = vmatprep.mubr.bf16.mxu0 0
    %592 = vmatmul.mubr.bf16.gmra.mxu0 %v302
    %v593 = vpop.f32.mrf.mxu0
    %v594 = vadd.f32 0.0, %v593
    %v595 = vpop.f32.mrf.mxu0
    %v596 = vpop.f32.mrf.mxu0
    %v597 = vadd.f32 0.0, %v596
    %v598 = vpop.f32.mrf.mxu0
    %599 = vdwg.mxu0
    %v600 = vpack.c.bf16 %v413, %v410
    %v601 = vpack.c.bf16 %v421, %v418
    %v602 = vpack.c.bf16 %v429, %v426
    %v603 = vpack.c.bf16 %v437, %v434
    %v604 = vpack.c.bf16 %v445, %v442
    %v605 = vpack.c.bf16 %v453, %v450
    %v606 = vpack.c.bf16 %v461, %v458
    %v607 = vpack.c.bf16 %v469, %v466
    %v608 = vpack.c.bf16 %v477, %v474
    %v609 = vpack.c.bf16 %v485, %v482
    %v610 = vpack.c.bf16 %v493, %v490
    %v611 = vpack.c.bf16 %v501, %v498
    %v612 = vpack.c.bf16 %v509, %v506
    %v613 = vpack.c.bf16 %v517, %v514
    %v614 = vpack.c.bf16 %v525, %v522
    %v615 = vpack.c.bf16 %v533, %v530
    %v616 = vpack.c.bf16 %v541, %v538
    %v617 = vpack.c.bf16 %v549, %v546
    %v618 = vpack.c.bf16 %v557, %v554
    %v619 = vpack.c.bf16 %v565, %v562
    %v620 = vpack.c.bf16 %v573, %v570
    %v621 = vpack.c.bf16 %v581, %v578
    %v622 = vpack.c.bf16 %v589, %v586
    %v623 = vpack.c.bf16 %v597, %v594
    %v624 = vld [vmem:[#allocation2] sm:$0xff]
    %v625 = vld [vmem:[#allocation2 + $0x8] sm:$0xf]
    %v626 = vld [vmem:[#allocation2 + $0xc] sm:$0xff]
    %v627 = vld [vmem:[#allocation2 + $0x14] sm:$0xf]
    %v628 = vld [vmem:[#allocation2 + $0x18] sm:$0xff]
    %v629 = vld [vmem:[#allocation2 + $0x20] sm:$0xf]
    %v630 = vld [vmem:[#allocation2 + $0x24] sm:$0xff]
    %v631 = vld [vmem:[#allocation2 + $0x2c] sm:$0xf]
    %v632 = vld [vmem:[#allocation2 + $0x30] sm:$0xff]
    %v633 = vld [vmem:[#allocation2 + $0x38] sm:$0xf]
    %v634 = vld [vmem:[#allocation2 + $0x3c] sm:$0xff]
    %v635 = vld [vmem:[#allocation2 + $0x44] sm:$0xf]
    %v636 = vld [vmem:[#allocation2 + $0x48] sm:$0xff]
    %v637 = vld [vmem:[#allocation2 + $0x50] sm:$0xf]
    %v638 = vld [vmem:[#allocation2 + $0x54] sm:$0xff]
    %v639 = vld [vmem:[#allocation2 + $0x5c] sm:$0xf]
    %v640 = vld [vmem:[#allocation2 + $0x60] sm:$0xff]
    %v641 = vld [vmem:[#allocation2 + $0x68] sm:$0xf]
    %v642 = vld [vmem:[#allocation2 + $0x6c] sm:$0xff]
    %v643 = vld [vmem:[#allocation2 + $0x74] sm:$0xf]
    %v644 = vld [vmem:[#allocation2 + $0x78] sm:$0xff]
    %v645 = vld [vmem:[#allocation2 + $0x80] sm:$0xf]
    %v646 = vld [vmem:[#allocation2 + $0x84] sm:$0xff]
    %v647 = vld [vmem:[#allocation2 + $0x8c] sm:$0xf]
    %v648 = vld [vmem:[#allocation2 + $0x90] sm:$0xff]
    %v649 = vld [vmem:[#allocation2 + $0x98] sm:$0xf]
    %v650 = vld [vmem:[#allocation2 + $0x9c] sm:$0xff]
    %v651 = vld [vmem:[#allocation2 + $0xa4] sm:$0xf]
    %v652 = vld [vmem:[#allocation2 + $0xa8] sm:$0xff]
    %v653 = vld [vmem:[#allocation2 + $0xb0] sm:$0xf]
    %v654 = vld [vmem:[#allocation2 + $0xb4] sm:$0xff]
    %v655 = vld [vmem:[#allocation2 + $0xbc] sm:$0xf]
    %v656 = vld [vmem:[#allocation2 + $0xc0] sm:$0xff]
    %v657 = vld [vmem:[#allocation2 + $0xc8] sm:$0xf]
    %v658 = vld [vmem:[#allocation2 + $0xcc] sm:$0xff]
    %v659 = vld [vmem:[#allocation2 + $0xd4] sm:$0xf]
    %v660 = vld [vmem:[#allocation2 + $0xd8] sm:$0xff]
    %v661 = vld [vmem:[#allocation2 + $0xe0] sm:$0xf]
    %v662 = vld [vmem:[#allocation2 + $0xe4] sm:$0xff]
    %v663 = vld [vmem:[#allocation2 + $0xec] sm:$0xf]
    %v664 = vld [vmem:[#allocation2 + $0xf0] sm:$0xff]
    %v665 = vld [vmem:[#allocation2 + $0xf8] sm:$0xf]
    %v666 = vld [vmem:[#allocation2 + $0xfc] sm:$0xff]
    %v667 = vld [vmem:[#allocation2 + $0x104] sm:$0xf]
    %v668 = vld [vmem:[#allocation2 + $0x108] sm:$0xff]
    %v669 = vld [vmem:[#allocation2 + $0x110] sm:$0xf]
    %v670 = vld [vmem:[#allocation2 + $0x114] sm:$0xff]
    %v671 = vld [vmem:[#allocation2 + $0x11c] sm:$0xf]
    %v672 = vld [vmem:[#allocation2 + $0x120] sm:$0xff]
    %v673 = vld [vmem:[#allocation2 + $0x128] sm:$0xf]
    %v674 = vld [vmem:[#allocation2 + $0x12c] sm:$0xff]
    %v675 = vld [vmem:[#allocation2 + $0x134] sm:$0xf]
    %v676 = vld [vmem:[#allocation2 + $0x138] sm:$0xff]
    %v677 = vld [vmem:[#allocation2 + $0x140] sm:$0xf]
    %v678 = vld [vmem:[#allocation2 + $0x144] sm:$0xff]
    %v679 = vld [vmem:[#allocation2 + $0x14c] sm:$0xf]
    %v680 = vld [vmem:[#allocation2 + $0x150] sm:$0xff]
    %v681 = vld [vmem:[#allocation2 + $0x158] sm:$0xf]
    %v682 = vld [vmem:[#allocation2 + $0x15c] sm:$0xff]
    %v683 = vld [vmem:[#allocation2 + $0x164] sm:$0xf]
    %v684 = vld [vmem:[#allocation2 + $0x168] sm:$0xff]
    %v685 = vld [vmem:[#allocation2 + $0x170] sm:$0xf]
    %v686 = vld [vmem:[#allocation2 + $0x174] sm:$0xff]
    %v687 = vld [vmem:[#allocation2 + $0x17c] sm:$0xf]
    %v688 = vld [vmem:[#allocation2 + $0x180] sm:$0xff]
    %v689 = vld [vmem:[#allocation2 + $0x188] sm:$0xf]
    %v690 = vld [vmem:[#allocation2 + $0x18c] sm:$0xff]
    %v691 = vld [vmem:[#allocation2 + $0x194] sm:$0xf]
    %v692 = vld [vmem:[#allocation2 + $0x198] sm:$0xff]
    %v693 = vld [vmem:[#allocation2 + $0x1a0] sm:$0xf]
    %v694 = vld [vmem:[#allocation2 + $0x1a4] sm:$0xff]
    %v695 = vld [vmem:[#allocation2 + $0x1ac] sm:$0xf]
    %v696 = vld [vmem:[#allocation2 + $0x1b0] sm:$0xff]
    %v697 = vld [vmem:[#allocation2 + $0x1b8] sm:$0xf]
    %v698 = vld [vmem:[#allocation2 + $0x1bc] sm:$0xff]
    %v699 = vld [vmem:[#allocation2 + $0x1c4] sm:$0xf]
    %v700 = vld [vmem:[#allocation2 + $0x1c8] sm:$0xff]
    %v701 = vld [vmem:[#allocation2 + $0x1d0] sm:$0xf]
    %v702 = vld [vmem:[#allocation2 + $0x1d4] sm:$0xff]
    %v703 = vld [vmem:[#allocation2 + $0x1dc] sm:$0xf]
    %v704 = vld [vmem:[#allocation2 + $0x1e0] sm:$0xff]
    %v705 = vld [vmem:[#allocation2 + $0x1e8] sm:$0xf]
    %v706 = vld [vmem:[#allocation2 + $0x1ec] sm:$0xff]
    %v707 = vld [vmem:[#allocation2 + $0x1f4] sm:$0xf]
    %v708 = vld [vmem:[#allocation2 + $0x1f8] sm:$0xff]
    %v709 = vld [vmem:[#allocation2 + $0x200] sm:$0xf]
    %v710 = vld [vmem:[#allocation2 + $0x204] sm:$0xff]
    %v711 = vld [vmem:[#allocation2 + $0x20c] sm:$0xf]
    %v712 = vld [vmem:[#allocation2 + $0x210] sm:$0xff]
    %v713 = vld [vmem:[#allocation2 + $0x218] sm:$0xf]
    %v714 = vld [vmem:[#allocation2 + $0x21c] sm:$0xff]
    %v715 = vld [vmem:[#allocation2 + $0x224] sm:$0xf]
    %v716 = vld [vmem:[#allocation2 + $0x228] sm:$0xff]
    %v717 = vld [vmem:[#allocation2 + $0x230] sm:$0xf]
    %v718 = vld [vmem:[#allocation2 + $0x234] sm:$0xff]
    %v719 = vld [vmem:[#allocation2 + $0x23c] sm:$0xf]
    %v720 = vld [vmem:[%s3] sm:$0x1]
    %v722 = vlaneseq
    %v723 = vshrl.u32 %v722, 7
    %v724 = vsub.s32 0, %v723
    %v725 = vrot.slane %v720, %v724
    %v823 = vunpack.c.l.b16 %v624
    %v824 = vunpack.c.h.b16 %v624
    %v825 = vunpack.c.l.b16 %v625
    %v826 = vunpack.c.l.b16 %v626
    %v827 = vunpack.c.h.b16 %v626
    %v828 = vunpack.c.l.b16 %v627
    %v829 = vunpack.c.l.b16 %v628
    %v830 = vunpack.c.h.b16 %v628
    %v831 = vunpack.c.l.b16 %v629
    %v832 = vunpack.c.l.b16 %v630
    %v833 = vunpack.c.h.b16 %v630
    %v834 = vunpack.c.l.b16 %v631
    %v835 = vunpack.c.l.b16 %v632
    %v836 = vunpack.c.h.b16 %v632
    %v837 = vunpack.c.l.b16 %v633
    %v838 = vunpack.c.l.b16 %v634
    %v839 = vunpack.c.h.b16 %v634
    %v840 = vunpack.c.l.b16 %v635
    %v841 = vunpack.c.l.b16 %v636
    %v842 = vunpack.c.h.b16 %v636
    %v843 = vunpack.c.l.b16 %v637
    %v844 = vunpack.c.l.b16 %v638
    %v845 = vunpack.c.h.b16 %v638
    %v846 = vunpack.c.l.b16 %v639
    %v847 = vunpack.c.l.b16 %v640
    %v848 = vunpack.c.h.b16 %v640
    %v849 = vunpack.c.l.b16 %v641
    %v850 = vunpack.c.l.b16 %v642
    %v851 = vunpack.c.h.b16 %v642
    %v852 = vunpack.c.l.b16 %v643
    %v853 = vunpack.c.l.b16 %v644
    %v854 = vunpack.c.h.b16 %v644
    %v855 = vunpack.c.l.b16 %v645
    %v856 = vunpack.c.l.b16 %v646
    %v857 = vunpack.c.h.b16 %v646
    %v858 = vunpack.c.l.b16 %v647
    %v859 = vunpack.c.l.b16 %v648
    %v860 = vunpack.c.h.b16 %v648
    %v861 = vunpack.c.l.b16 %v649
    %v862 = vunpack.c.l.b16 %v650
    %v863 = vunpack.c.h.b16 %v650
    %v864 = vunpack.c.l.b16 %v651
    %v865 = vunpack.c.l.b16 %v652
    %v866 = vunpack.c.h.b16 %v652
    %v867 = vunpack.c.l.b16 %v653
    %v868 = vunpack.c.l.b16 %v654
    %v869 = vunpack.c.h.b16 %v654
    %v870 = vunpack.c.l.b16 %v655
    %v871 = vunpack.c.l.b16 %v656
    %v872 = vunpack.c.h.b16 %v656
    %v873 = vunpack.c.l.b16 %v657
    %v874 = vunpack.c.l.b16 %v658
    %v875 = vunpack.c.h.b16 %v658
    %v876 = vunpack.c.l.b16 %v659
    %v877 = vunpack.c.l.b16 %v660
    %v878 = vunpack.c.h.b16 %v660
    %v879 = vunpack.c.l.b16 %v661
    %v880 = vunpack.c.l.b16 %v662
    %v881 = vunpack.c.h.b16 %v662
    %v882 = vunpack.c.l.b16 %v663
    %v883 = vunpack.c.l.b16 %v664
    %v884 = vunpack.c.h.b16 %v664
    %v885 = vunpack.c.l.b16 %v665
    %v886 = vunpack.c.l.b16 %v666
    %v887 = vunpack.c.h.b16 %v666
    %v888 = vunpack.c.l.b16 %v667
    %v889 = vunpack.c.l.b16 %v668
    %v890 = vunpack.c.h.b16 %v668
    %v891 = vunpack.c.l.b16 %v669
    %v892 = vunpack.c.l.b16 %v670
    %v893 = vunpack.c.h.b16 %v670
    %v894 = vunpack.c.l.b16 %v671
    %v895 = vunpack.c.l.b16 %v672
    %v896 = vunpack.c.h.b16 %v672
    %v897 = vunpack.c.l.b16 %v673
    %v898 = vunpack.c.l.b16 %v674
    %v899 = vunpack.c.h.b16 %v674
    %v900 = vunpack.c.l.b16 %v675
    %v901 = vunpack.c.l.b16 %v676
    %v902 = vunpack.c.h.b16 %v676
    %v903 = vunpack.c.l.b16 %v677
    %v904 = vunpack.c.l.b16 %v678
    %v905 = vunpack.c.h.b16 %v678
    %v906 = vunpack.c.l.b16 %v679
    %v907 = vunpack.c.l.b16 %v680
    %v908 = vunpack.c.h.b16 %v680
    %v909 = vunpack.c.l.b16 %v681
    %v910 = vunpack.c.l.b16 %v682
    %v911 = vunpack.c.h.b16 %v682
    %v912 = vunpack.c.l.b16 %v683
    %v913 = vunpack.c.l.b16 %v684
    %v914 = vunpack.c.h.b16 %v684
    %v915 = vunpack.c.l.b16 %v685
    %v916 = vunpack.c.l.b16 %v686
    %v917 = vunpack.c.h.b16 %v686
    %v918 = vunpack.c.l.b16 %v687
    %v919 = vunpack.c.l.b16 %v688
    %v920 = vunpack.c.h.b16 %v688
    %v921 = vunpack.c.l.b16 %v689
    %v922 = vunpack.c.l.b16 %v690
    %v923 = vunpack.c.h.b16 %v690
    %v924 = vunpack.c.l.b16 %v691
    %v925 = vunpack.c.l.b16 %v692
    %v926 = vunpack.c.h.b16 %v692
    %v927 = vunpack.c.l.b16 %v693
    %v928 = vunpack.c.l.b16 %v694
    %v929 = vunpack.c.h.b16 %v694
    %v930 = vunpack.c.l.b16 %v695
    %v931 = vunpack.c.l.b16 %v696
    %v932 = vunpack.c.h.b16 %v696
    %v933 = vunpack.c.l.b16 %v697
    %v934 = vunpack.c.l.b16 %v698
    %v935 = vunpack.c.h.b16 %v698
    %v936 = vunpack.c.l.b16 %v699
    %v937 = vunpack.c.l.b16 %v700
    %v938 = vunpack.c.h.b16 %v700
    %v939 = vunpack.c.l.b16 %v701
    %v940 = vunpack.c.l.b16 %v702
    %v941 = vunpack.c.h.b16 %v702
    %v942 = vunpack.c.l.b16 %v703
    %v943 = vunpack.c.l.b16 %v704
    %v944 = vunpack.c.h.b16 %v704
    %v945 = vunpack.c.l.b16 %v705
    %v946 = vunpack.c.l.b16 %v706
    %v947 = vunpack.c.h.b16 %v706
    %v948 = vunpack.c.l.b16 %v707
    %v949 = vunpack.c.l.b16 %v708
    %v950 = vunpack.c.h.b16 %v708
    %v951 = vunpack.c.l.b16 %v709
    %v952 = vunpack.c.l.b16 %v710
    %v953 = vunpack.c.h.b16 %v710
    %v954 = vunpack.c.l.b16 %v711
    %v955 = vunpack.c.l.b16 %v712
    %v956 = vunpack.c.h.b16 %v712
    %v957 = vunpack.c.l.b16 %v713
    %v958 = vunpack.c.l.b16 %v714
    %v959 = vunpack.c.h.b16 %v714
    %v960 = vunpack.c.l.b16 %v715
    %v961 = vunpack.c.l.b16 %v716
    %v962 = vunpack.c.h.b16 %v716
    %v963 = vunpack.c.l.b16 %v717
    %v964 = vunpack.c.l.b16 %v718
    %v965 = vunpack.c.h.b16 %v718
    %v966 = vunpack.c.l.b16 %v719
    %v967 = vpack.c.b16 %v826, %v823
    %v968 = vpack.c.b16 %v827, %v824
    %v969 = vpack.c.b16 %v828, %v825
    %v970 = vpack.c.b16 %v832, %v829
    %v971 = vpack.c.b16 %v833, %v830
    %v972 = vpack.c.b16 %v834, %v831
    %v973 = vpack.c.b16 %v838, %v835
    %v974 = vpack.c.b16 %v839, %v836
    %v975 = vpack.c.b16 %v840, %v837
    %v976 = vpack.c.b16 %v844, %v841
    %v977 = vpack.c.b16 %v845, %v842
    %v978 = vpack.c.b16 %v846, %v843
    %v979 = vpack.c.b16 %v850, %v847
    %v980 = vpack.c.b16 %v851, %v848
    %v981 = vpack.c.b16 %v852, %v849
    %v982 = vpack.c.b16 %v856, %v853
    %v983 = vpack.c.b16 %v857, %v854
    %v984 = vpack.c.b16 %v858, %v855
    %v985 = vpack.c.b16 %v862, %v859
    %v986 = vpack.c.b16 %v863, %v860
    %v987 = vpack.c.b16 %v864, %v861
    %v988 = vpack.c.b16 %v868, %v865
    %v989 = vpack.c.b16 %v869, %v866
    %v990 = vpack.c.b16 %v870, %v867
    %v991 = vpack.c.b16 %v874, %v871
    %v992 = vpack.c.b16 %v875, %v872
    %v993 = vpack.c.b16 %v876, %v873
    %v994 = vpack.c.b16 %v880, %v877
    %v995 = vpack.c.b16 %v881, %v878
    %v996 = vpack.c.b16 %v882, %v879
    %v997 = vpack.c.b16 %v886, %v883
    %v998 = vpack.c.b16 %v887, %v884
    %v999 = vpack.c.b16 %v888, %v885
    %v1000 = vpack.c.b16 %v892, %v889
    %v1001 = vpack.c.b16 %v893, %v890
    %v1002 = vpack.c.b16 %v894, %v891
    %v1003 = vpack.c.b16 %v898, %v895
    %v1004 = vpack.c.b16 %v899, %v896
    %v1005 = vpack.c.b16 %v900, %v897
    %v1006 = vpack.c.b16 %v904, %v901
    %v1007 = vpack.c.b16 %v905, %v902
    %v1008 = vpack.c.b16 %v906, %v903
    %v1009 = vpack.c.b16 %v910, %v907
    %v1010 = vpack.c.b16 %v911, %v908
    %v1011 = vpack.c.b16 %v912, %v909
    %v1012 = vpack.c.b16 %v916, %v913
    %v1013 = vpack.c.b16 %v917, %v914
    %v1014 = vpack.c.b16 %v918, %v915
    %v1015 = vpack.c.b16 %v922, %v919
    %v1016 = vpack.c.b16 %v923, %v920
    %v1017 = vpack.c.b16 %v924, %v921
    %v1018 = vpack.c.b16 %v928, %v925
    %v1019 = vpack.c.b16 %v929, %v926
    %v1020 = vpack.c.b16 %v930, %v927
    %v1021 = vpack.c.b16 %v934, %v931
    %v1022 = vpack.c.b16 %v935, %v932
    %v1023 = vpack.c.b16 %v936, %v933
    %v1024 = vpack.c.b16 %v940, %v937
    %v1025 = vpack.c.b16 %v941, %v938
    %v1026 = vpack.c.b16 %v942, %v939
    %v1027 = vpack.c.b16 %v946, %v943
    %v1028 = vpack.c.b16 %v947, %v944
    %v1029 = vpack.c.b16 %v948, %v945
    %v1030 = vpack.c.b16 %v952, %v949
    %v1031 = vpack.c.b16 %v953, %v950
    %v1032 = vpack.c.b16 %v954, %v951
    %v1033 = vpack.c.b16 %v958, %v955
    %v1034 = vpack.c.b16 %v959, %v956
    %v1035 = vpack.c.b16 %v960, %v957
    %v1036 = vpack.c.b16 %v964, %v961
    %v1037 = vpack.c.b16 %v965, %v962
    %v1038 = vpack.c.b16 %v966, %v963
    %1111 = vmatprep.subr.bf16.mxu0 0
    %1112 = vmatpush1.bf16.msra.mxu0 %v607
    %1113 = vmatprep.subr.bf16.mxu0 0
    %1114 = vmatpush1.bf16.msra.mxu0 %v606
    %1115 = vmatprep.subr.bf16.mxu0 0
    %1116 = vmatpush1.bf16.msra.mxu0 %v605
    %1117 = vmatprep.subr.bf16.mxu0 0
    %1118 = vmatpush1.bf16.msra.mxu0 %v604
    %1119 = vmatprep.subr.bf16.mxu0 0
    %1120 = vmatpush1.bf16.msra.mxu0 %v603
    %1121 = vmatprep.subr.bf16.mxu0 0
    %1122 = vmatpush1.bf16.msra.mxu0 %v602
    %1123 = vmatprep.subr.bf16.mxu0 0
    %1124 = vmatpush1.bf16.msra.mxu0 %v601
    %1125 = vmatprep.subr.bf16.mxu0 0
    %1126 = vmatpush1.bf16.msra.mxu0 %v600
    %1127 = vmatprep.subr.bf16.mxu0 0
    %1128 = vmatpush2.bf16.msra.mxu0 %v615
    %1129 = vmatprep.subr.bf16.mxu0 0
    %1130 = vmatpush2.bf16.msra.mxu0 %v614
    %1131 = vmatprep.subr.bf16.mxu0 0
    %1132 = vmatpush2.bf16.msra.mxu0 %v613
    %1133 = vmatprep.subr.bf16.mxu0 0
    %1134 = vmatpush2.bf16.msra.mxu0 %v612
    %1135 = vmatprep.subr.bf16.mxu0 0
    %1136 = vmatpush2.bf16.msra.mxu0 %v611
    %1137 = vmatprep.subr.bf16.mxu0 0
    %1138 = vmatpush2.bf16.msra.mxu0 %v610
    %1139 = vmatprep.subr.bf16.mxu0 0
    %1140 = vmatpush2.bf16.msra.mxu0 %v609
    %1141 = vmatprep.subr.bf16.mxu0 0
    %1142 = vmatpush2.bf16.msra.mxu0 %v608
    %1143 = vmatprep.mubr.bf16.mxu0 %v968
    %1144 = vmatmul.mubr.bf16.gmra.mxu0 %v967
    %v1145 = vpop.f32.mrf.mxu0
    %v1146 = vadd.f32 %v725, %v1145
    %v1147 = vpop.f32.mrf.mxu0
    %v1148 = vpop.f32.mrf.mxu0
    %v1149 = vadd.f32 %v725, %v1148
    %v1150 = vpop.f32.mrf.mxu0
    %1151 = vmatprep.mubr.bf16.mxu0 %v971
    %1152 = vmatmul.mubr.bf16.gmra.mxu0 %v970
    %v1153 = vpop.f32.mrf.mxu0
    %v1154 = vadd.f32 %v725, %v1153
    %v1155 = vpop.f32.mrf.mxu0
    %v1156 = vpop.f32.mrf.mxu0
    %v1157 = vadd.f32 %v725, %v1156
    %v1158 = vpop.f32.mrf.mxu0
    %1159 = vmatprep.mubr.bf16.mxu0 %v974
    %1160 = vmatmul.mubr.bf16.gmra.mxu0 %v973
    %v1161 = vpop.f32.mrf.mxu0
    %v1162 = vadd.f32 %v725, %v1161
    %v1163 = vpop.f32.mrf.mxu0
    %v1164 = vpop.f32.mrf.mxu0
    %v1165 = vadd.f32 %v725, %v1164
    %v1166 = vpop.f32.mrf.mxu0
    %1167 = vmatprep.mubr.bf16.mxu0 %v977
    %1168 = vmatmul.mubr.bf16.gmra.mxu0 %v976
    %v1169 = vpop.f32.mrf.mxu0
    %v1170 = vadd.f32 %v725, %v1169
    %v1171 = vpop.f32.mrf.mxu0
    %v1172 = vpop.f32.mrf.mxu0
    %v1173 = vadd.f32 %v725, %v1172
    %v1174 = vpop.f32.mrf.mxu0
    %1175 = vmatprep.mubr.bf16.mxu0 %v980
    %1176 = vmatmul.mubr.bf16.gmra.mxu0 %v979
    %v1177 = vpop.f32.mrf.mxu0
    %v1178 = vadd.f32 %v725, %v1177
    %v1179 = vpop.f32.mrf.mxu0
    %v1180 = vpop.f32.mrf.mxu0
    %v1181 = vadd.f32 %v725, %v1180
    %v1182 = vpop.f32.mrf.mxu0
    %1183 = vmatprep.mubr.bf16.mxu0 %v983
    %1184 = vmatmul.mubr.bf16.gmra.mxu0 %v982
    %v1185 = vpop.f32.mrf.mxu0
    %v1186 = vadd.f32 %v725, %v1185
    %v1187 = vpop.f32.mrf.mxu0
    %v1188 = vpop.f32.mrf.mxu0
    %v1189 = vadd.f32 %v725, %v1188
    %v1190 = vpop.f32.mrf.mxu0
    %1191 = vmatprep.mubr.bf16.mxu0 %v986
    %1192 = vmatmul.mubr.bf16.gmra.mxu0 %v985
    %v1193 = vpop.f32.mrf.mxu0
    %v1194 = vadd.f32 %v725, %v1193
    %v1195 = vpop.f32.mrf.mxu0
    %v1196 = vpop.f32.mrf.mxu0
    %v1197 = vadd.f32 %v725, %v1196
    %v1198 = vpop.f32.mrf.mxu0
    %1199 = vmatprep.mubr.bf16.mxu0 %v989
    %1200 = vmatmul.mubr.bf16.gmra.mxu0 %v988
    %v1201 = vpop.f32.mrf.mxu0
    %v1202 = vadd.f32 %v725, %v1201
    %v1203 = vpop.f32.mrf.mxu0
    %v1204 = vpop.f32.mrf.mxu0
    %v1205 = vadd.f32 %v725, %v1204
    %v1206 = vpop.f32.mrf.mxu0
    %1207 = vmatprep.mubr.bf16.mxu0 %v992
    %1208 = vmatmul.mubr.bf16.gmra.mxu0 %v991
    %v1209 = vpop.f32.mrf.mxu0
    %v1210 = vadd.f32 %v725, %v1209
    %v1211 = vpop.f32.mrf.mxu0
    %v1212 = vpop.f32.mrf.mxu0
    %v1213 = vadd.f32 %v725, %v1212
    %v1214 = vpop.f32.mrf.mxu0
    %1215 = vmatprep.mubr.bf16.mxu0 %v995
    %1216 = vmatmul.mubr.bf16.gmra.mxu0 %v994
    %v1217 = vpop.f32.mrf.mxu0
    %v1218 = vadd.f32 %v725, %v1217
    %v1219 = vpop.f32.mrf.mxu0
    %v1220 = vpop.f32.mrf.mxu0
    %v1221 = vadd.f32 %v725, %v1220
    %v1222 = vpop.f32.mrf.mxu0
    %1223 = vmatprep.mubr.bf16.mxu0 %v998
    %1224 = vmatmul.mubr.bf16.gmra.mxu0 %v997
    %v1225 = vpop.f32.mrf.mxu0
    %v1226 = vadd.f32 %v725, %v1225
    %v1227 = vpop.f32.mrf.mxu0
    %v1228 = vpop.f32.mrf.mxu0
    %v1229 = vadd.f32 %v725, %v1228
    %v1230 = vpop.f32.mrf.mxu0
    %1231 = vmatprep.mubr.bf16.mxu0 %v1001
    %1232 = vmatmul.mubr.bf16.gmra.mxu0 %v1000
    %v1233 = vpop.f32.mrf.mxu0
    %v1234 = vadd.f32 %v725, %v1233
    %v1235 = vpop.f32.mrf.mxu0
    %v1236 = vpop.f32.mrf.mxu0
    %v1237 = vadd.f32 %v725, %v1236
    %v1238 = vpop.f32.mrf.mxu0
    %1239 = vmatprep.mubr.bf16.mxu0 %v1004
    %1240 = vmatmul.mubr.bf16.gmra.mxu0 %v1003
    %v1241 = vpop.f32.mrf.mxu0
    %v1242 = vadd.f32 %v725, %v1241
    %v1243 = vpop.f32.mrf.mxu0
    %v1244 = vpop.f32.mrf.mxu0
    %v1245 = vadd.f32 %v725, %v1244
    %v1246 = vpop.f32.mrf.mxu0
    %1247 = vmatprep.mubr.bf16.mxu0 %v1007
    %1248 = vmatmul.mubr.bf16.gmra.mxu0 %v1006
    %v1249 = vpop.f32.mrf.mxu0
    %v1250 = vadd.f32 %v725, %v1249
    %v1251 = vpop.f32.mrf.mxu0
    %v1252 = vpop.f32.mrf.mxu0
    %v1253 = vadd.f32 %v725, %v1252
    %v1254 = vpop.f32.mrf.mxu0
    %1255 = vmatprep.mubr.bf16.mxu0 %v1010
    %1256 = vmatmul.mubr.bf16.gmra.mxu0 %v1009
    %v1257 = vpop.f32.mrf.mxu0
    %v1258 = vadd.f32 %v725, %v1257
    %v1259 = vpop.f32.mrf.mxu0
    %v1260 = vpop.f32.mrf.mxu0
    %v1261 = vadd.f32 %v725, %v1260
    %v1262 = vpop.f32.mrf.mxu0
    %1263 = vmatprep.mubr.bf16.mxu0 %v1013
    %1264 = vmatmul.mubr.bf16.gmra.mxu0 %v1012
    %v1265 = vpop.f32.mrf.mxu0
    %v1266 = vadd.f32 %v725, %v1265
    %v1267 = vpop.f32.mrf.mxu0
    %v1268 = vpop.f32.mrf.mxu0
    %v1269 = vadd.f32 %v725, %v1268
    %v1270 = vpop.f32.mrf.mxu0
    %1271 = vmatprep.mubr.bf16.mxu0 %v1016
    %1272 = vmatmul.mubr.bf16.gmra.mxu0 %v1015
    %v1273 = vpop.f32.mrf.mxu0
    %v1274 = vadd.f32 %v725, %v1273
    %v1275 = vpop.f32.mrf.mxu0
    %v1276 = vpop.f32.mrf.mxu0
    %v1277 = vadd.f32 %v725, %v1276
    %v1278 = vpop.f32.mrf.mxu0
    %1279 = vmatprep.mubr.bf16.mxu0 %v1019
    %1280 = vmatmul.mubr.bf16.gmra.mxu0 %v1018
    %v1281 = vpop.f32.mrf.mxu0
    %v1282 = vadd.f32 %v725, %v1281
    %v1283 = vpop.f32.mrf.mxu0
    %v1284 = vpop.f32.mrf.mxu0
    %v1285 = vadd.f32 %v725, %v1284
    %v1286 = vpop.f32.mrf.mxu0
    %1287 = vmatprep.mubr.bf16.mxu0 %v1022
    %1288 = vmatmul.mubr.bf16.gmra.mxu0 %v1021
    %v1289 = vpop.f32.mrf.mxu0
    %v1290 = vadd.f32 %v725, %v1289
    %v1291 = vpop.f32.mrf.mxu0
    %v1292 = vpop.f32.mrf.mxu0
    %v1293 = vadd.f32 %v725, %v1292
    %v1294 = vpop.f32.mrf.mxu0
    %1295 = vmatprep.mubr.bf16.mxu0 %v1025
    %1296 = vmatmul.mubr.bf16.gmra.mxu0 %v1024
    %v1297 = vpop.f32.mrf.mxu0
    %v1298 = vadd.f32 %v725, %v1297
    %v1299 = vpop.f32.mrf.mxu0
    %v1300 = vpop.f32.mrf.mxu0
    %v1301 = vadd.f32 %v725, %v1300
    %v1302 = vpop.f32.mrf.mxu0
    %1303 = vmatprep.mubr.bf16.mxu0 %v1028
    %1304 = vmatmul.mubr.bf16.gmra.mxu0 %v1027
    %v1305 = vpop.f32.mrf.mxu0
    %v1306 = vadd.f32 %v725, %v1305
    %v1307 = vpop.f32.mrf.mxu0
    %v1308 = vpop.f32.mrf.mxu0
    %v1309 = vadd.f32 %v725, %v1308
    %v1310 = vpop.f32.mrf.mxu0
    %1311 = vmatprep.mubr.bf16.mxu0 %v1031
    %1312 = vmatmul.mubr.bf16.gmra.mxu0 %v1030
    %v1313 = vpop.f32.mrf.mxu0
    %v1314 = vadd.f32 %v725, %v1313
    %v1315 = vpop.f32.mrf.mxu0
    %v1316 = vpop.f32.mrf.mxu0
    %v1317 = vadd.f32 %v725, %v1316
    %v1318 = vpop.f32.mrf.mxu0
    %1319 = vmatprep.mubr.bf16.mxu0 %v1034
    %1320 = vmatmul.mubr.bf16.gmra.mxu0 %v1033
    %v1321 = vpop.f32.mrf.mxu0
    %v1322 = vadd.f32 %v725, %v1321
    %v1323 = vpop.f32.mrf.mxu0
    %v1324 = vpop.f32.mrf.mxu0
    %v1325 = vadd.f32 %v725, %v1324
    %v1326 = vpop.f32.mrf.mxu0
    %1327 = vmatprep.mubr.bf16.mxu0 %v1037
    %1328 = vmatmul.mubr.bf16.gmra.mxu0 %v1036
    %v1329 = vpop.f32.mrf.mxu0
    %v1330 = vadd.f32 %v725, %v1329
    %v1331 = vpop.f32.mrf.mxu0
    %v1332 = vpop.f32.mrf.mxu0
    %v1333 = vadd.f32 %v725, %v1332
    %v1334 = vpop.f32.mrf.mxu0
    %1335 = vdwg.mxu0
    %1336 = vmatprep.subr.bf16.mxu0 0
    %1337 = vmatpush1.bf16.msra.mxu0 %v623
    %1338 = vmatprep.subr.bf16.mxu0 0
    %1339 = vmatpush1.bf16.msra.mxu0 %v622
    %1340 = vmatprep.subr.bf16.mxu0 0
    %1341 = vmatpush1.bf16.msra.mxu0 %v621
    %1342 = vmatprep.subr.bf16.mxu0 0
    %1343 = vmatpush1.bf16.msra.mxu0 %v620
    %1344 = vmatprep.subr.bf16.mxu0 0
    %1345 = vmatpush1.bf16.msra.mxu0 %v619
    %1346 = vmatprep.subr.bf16.mxu0 0
    %1347 = vmatpush1.bf16.msra.mxu0 %v618
    %1348 = vmatprep.subr.bf16.mxu0 0
    %1349 = vmatpush1.bf16.msra.mxu0 %v617
    %1350 = vmatprep.subr.bf16.mxu0 0
    %1351 = vmatpush1.bf16.msra.mxu0 %v616
    %1352 = vmatprep.subr.bf16.mxu0 0
    %1353 = vmatpush2.bf16.msra.mxu0 0
    %1354 = vmatprep.subr.bf16.mxu0 0
    %1355 = vmatpush2.bf16.msra.mxu0 0
    %1356 = vmatprep.subr.bf16.mxu0 0
    %1357 = vmatpush2.bf16.msra.mxu0 0
    %1358 = vmatprep.subr.bf16.mxu0 0
    %1359 = vmatpush2.bf16.msra.mxu0 0
    %1360 = vmatprep.subr.bf16.mxu0 0
    %1361 = vmatpush2.bf16.msra.mxu0 0
    %1362 = vmatprep.subr.bf16.mxu0 0
    %1363 = vmatpush2.bf16.msra.mxu0 0
    %1364 = vmatprep.subr.bf16.mxu0 0
    %1365 = vmatpush2.bf16.msra.mxu0 0
    %1366 = vmatprep.subr.bf16.mxu0 0
    %1367 = vmatpush2.bf16.msra.mxu0 0
    %1368 = vmatprep.mubr.bf16.mxu0 0
    %1369 = vmatmul.mubr.bf16.gmra.mxu0 %v969
    %v1370 = vpop.f32.mrf.mxu0
    %v1371 = vadd.f32 %v1146, %v1370
    %v1372 = vpop.f32.mrf.mxu0
    %v1373 = vpop.f32.mrf.mxu0
    %v1374 = vadd.f32 %v1149, %v1373
    %v1375 = vpop.f32.mrf.mxu0
    %1376 = vmatprep.mubr.bf16.mxu0 0
    %1377 = vmatmul.mubr.bf16.gmra.mxu0 %v972
    %v1378 = vpop.f32.mrf.mxu0
    %v1379 = vadd.f32 %v1154, %v1378
    %v1380 = vpop.f32.mrf.mxu0
    %v1381 = vpop.f32.mrf.mxu0
    %v1382 = vadd.f32 %v1157, %v1381
    %v1383 = vpop.f32.mrf.mxu0
    %1384 = vmatprep.mubr.bf16.mxu0 0
    %1385 = vmatmul.mubr.bf16.gmra.mxu0 %v975
    %v1386 = vpop.f32.mrf.mxu0
    %v1387 = vadd.f32 %v1162, %v1386
    %v1388 = vpop.f32.mrf.mxu0
    %v1389 = vpop.f32.mrf.mxu0
    %v1390 = vadd.f32 %v1165, %v1389
    %v1391 = vpop.f32.mrf.mxu0
    %1392 = vmatprep.mubr.bf16.mxu0 0
    %1393 = vmatmul.mubr.bf16.gmra.mxu0 %v978
    %v1394 = vpop.f32.mrf.mxu0
    %v1395 = vadd.f32 %v1170, %v1394
    %v1396 = vpop.f32.mrf.mxu0
    %v1397 = vpop.f32.mrf.mxu0
    %v1398 = vadd.f32 %v1173, %v1397
    %v1399 = vpop.f32.mrf.mxu0
    %1400 = vmatprep.mubr.bf16.mxu0 0
    %1401 = vmatmul.mubr.bf16.gmra.mxu0 %v981
    %v1402 = vpop.f32.mrf.mxu0
    %v1403 = vadd.f32 %v1178, %v1402
    %v1404 = vpop.f32.mrf.mxu0
    %v1405 = vpop.f32.mrf.mxu0
    %v1406 = vadd.f32 %v1181, %v1405
    %v1407 = vpop.f32.mrf.mxu0
    %1408 = vmatprep.mubr.bf16.mxu0 0
    %1409 = vmatmul.mubr.bf16.gmra.mxu0 %v984
    %v1410 = vpop.f32.mrf.mxu0
    %v1411 = vadd.f32 %v1186, %v1410
    %v1412 = vpop.f32.mrf.mxu0
    %v1413 = vpop.f32.mrf.mxu0
    %v1414 = vadd.f32 %v1189, %v1413
    %v1415 = vpop.f32.mrf.mxu0
    %1416 = vmatprep.mubr.bf16.mxu0 0
    %1417 = vmatmul.mubr.bf16.gmra.mxu0 %v987
    %v1418 = vpop.f32.mrf.mxu0
    %v1419 = vadd.f32 %v1194, %v1418
    %v1420 = vpop.f32.mrf.mxu0
    %v1421 = vpop.f32.mrf.mxu0
    %v1422 = vadd.f32 %v1197, %v1421
    %v1423 = vpop.f32.mrf.mxu0
    %1424 = vmatprep.mubr.bf16.mxu0 0
    %1425 = vmatmul.mubr.bf16.gmra.mxu0 %v990
    %v1426 = vpop.f32.mrf.mxu0
    %v1427 = vadd.f32 %v1202, %v1426
    %v1428 = vpop.f32.mrf.mxu0
    %v1429 = vpop.f32.mrf.mxu0
    %v1430 = vadd.f32 %v1205, %v1429
    %v1431 = vpop.f32.mrf.mxu0
    %1432 = vmatprep.mubr.bf16.mxu0 0
    %1433 = vmatmul.mubr.bf16.gmra.mxu0 %v993
    %v1434 = vpop.f32.mrf.mxu0
    %v1435 = vadd.f32 %v1210, %v1434
    %v1436 = vpop.f32.mrf.mxu0
    %v1437 = vpop.f32.mrf.mxu0
    %v1438 = vadd.f32 %v1213, %v1437
    %v1439 = vpop.f32.mrf.mxu0
    %1440 = vmatprep.mubr.bf16.mxu0 0
    %1441 = vmatmul.mubr.bf16.gmra.mxu0 %v996
    %v1442 = vpop.f32.mrf.mxu0
    %v1443 = vadd.f32 %v1218, %v1442
    %v1444 = vpop.f32.mrf.mxu0
    %v1445 = vpop.f32.mrf.mxu0
    %v1446 = vadd.f32 %v1221, %v1445
    %v1447 = vpop.f32.mrf.mxu0
    %1448 = vmatprep.mubr.bf16.mxu0 0
    %1449 = vmatmul.mubr.bf16.gmra.mxu0 %v999
    %v1450 = vpop.f32.mrf.mxu0
    %v1451 = vadd.f32 %v1226, %v1450
    %v1452 = vpop.f32.mrf.mxu0
    %v1453 = vpop.f32.mrf.mxu0
    %v1454 = vadd.f32 %v1229, %v1453
    %v1455 = vpop.f32.mrf.mxu0
    %1456 = vmatprep.mubr.bf16.mxu0 0
    %1457 = vmatmul.mubr.bf16.gmra.mxu0 %v1002
    %v1458 = vpop.f32.mrf.mxu0
    %v1459 = vadd.f32 %v1234, %v1458
    %v1460 = vpop.f32.mrf.mxu0
    %v1461 = vpop.f32.mrf.mxu0
    %v1462 = vadd.f32 %v1237, %v1461
    %v1463 = vpop.f32.mrf.mxu0
    %1464 = vmatprep.mubr.bf16.mxu0 0
    %1465 = vmatmul.mubr.bf16.gmra.mxu0 %v1005
    %v1466 = vpop.f32.mrf.mxu0
    %v1467 = vadd.f32 %v1242, %v1466
    %v1468 = vpop.f32.mrf.mxu0
    %v1469 = vpop.f32.mrf.mxu0
    %v1470 = vadd.f32 %v1245, %v1469
    %v1471 = vpop.f32.mrf.mxu0
    %1472 = vmatprep.mubr.bf16.mxu0 0
    %1473 = vmatmul.mubr.bf16.gmra.mxu0 %v1008
    %v1474 = vpop.f32.mrf.mxu0
    %v1475 = vadd.f32 %v1250, %v1474
    %v1476 = vpop.f32.mrf.mxu0
    %v1477 = vpop.f32.mrf.mxu0
    %v1478 = vadd.f32 %v1253, %v1477
    %v1479 = vpop.f32.mrf.mxu0
    %1480 = vmatprep.mubr.bf16.mxu0 0
    %1481 = vmatmul.mubr.bf16.gmra.mxu0 %v1011
    %v1482 = vpop.f32.mrf.mxu0
    %v1483 = vadd.f32 %v1258, %v1482
    %v1484 = vpop.f32.mrf.mxu0
    %v1485 = vpop.f32.mrf.mxu0
    %v1486 = vadd.f32 %v1261, %v1485
    %v1487 = vpop.f32.mrf.mxu0
    %1488 = vmatprep.mubr.bf16.mxu0 0
    %1489 = vmatmul.mubr.bf16.gmra.mxu0 %v1014
    %v1490 = vpop.f32.mrf.mxu0
    %v1491 = vadd.f32 %v1266, %v1490
    %v1492 = vpop.f32.mrf.mxu0
    %v1493 = vpop.f32.mrf.mxu0
    %v1494 = vadd.f32 %v1269, %v1493
    %v1495 = vpop.f32.mrf.mxu0
    %1496 = vmatprep.mubr.bf16.mxu0 0
    %1497 = vmatmul.mubr.bf16.gmra.mxu0 %v1017
    %v1498 = vpop.f32.mrf.mxu0
    %v1499 = vadd.f32 %v1274, %v1498
    %v1500 = vpop.f32.mrf.mxu0
    %v1501 = vpop.f32.mrf.mxu0
    %v1502 = vadd.f32 %v1277, %v1501
    %v1503 = vpop.f32.mrf.mxu0
    %1504 = vmatprep.mubr.bf16.mxu0 0
    %1505 = vmatmul.mubr.bf16.gmra.mxu0 %v1020
    %v1506 = vpop.f32.mrf.mxu0
    %v1507 = vadd.f32 %v1282, %v1506
    %v1508 = vpop.f32.mrf.mxu0
    %v1509 = vpop.f32.mrf.mxu0
    %v1510 = vadd.f32 %v1285, %v1509
    %v1511 = vpop.f32.mrf.mxu0
    %1512 = vmatprep.mubr.bf16.mxu0 0
    %1513 = vmatmul.mubr.bf16.gmra.mxu0 %v1023
    %v1514 = vpop.f32.mrf.mxu0
    %v1515 = vadd.f32 %v1290, %v1514
    %v1516 = vpop.f32.mrf.mxu0
    %v1517 = vpop.f32.mrf.mxu0
    %v1518 = vadd.f32 %v1293, %v1517
    %v1519 = vpop.f32.mrf.mxu0
    %1520 = vmatprep.mubr.bf16.mxu0 0
    %1521 = vmatmul.mubr.bf16.gmra.mxu0 %v1026
    %v1522 = vpop.f32.mrf.mxu0
    %v1523 = vadd.f32 %v1298, %v1522
    %v1524 = vpop.f32.mrf.mxu0
    %v1525 = vpop.f32.mrf.mxu0
    %v1526 = vadd.f32 %v1301, %v1525
    %v1527 = vpop.f32.mrf.mxu0
    %1528 = vmatprep.mubr.bf16.mxu0 0
    %1529 = vmatmul.mubr.bf16.gmra.mxu0 %v1029
    %v1530 = vpop.f32.mrf.mxu0
    %v1531 = vadd.f32 %v1306, %v1530
    %v1532 = vpop.f32.mrf.mxu0
    %v1533 = vpop.f32.mrf.mxu0
    %v1534 = vadd.f32 %v1309, %v1533
    %v1535 = vpop.f32.mrf.mxu0
    %1536 = vmatprep.mubr.bf16.mxu0 0
    %1537 = vmatmul.mubr.bf16.gmra.mxu0 %v1032
    %v1538 = vpop.f32.mrf.mxu0
    %v1539 = vadd.f32 %v1314, %v1538
    %v1540 = vpop.f32.mrf.mxu0
    %v1541 = vpop.f32.mrf.mxu0
    %v1542 = vadd.f32 %v1317, %v1541
    %v1543 = vpop.f32.mrf.mxu0
    %1544 = vmatprep.mubr.bf16.mxu0 0
    %1545 = vmatmul.mubr.bf16.gmra.mxu0 %v1035
    %v1546 = vpop.f32.mrf.mxu0
    %v1547 = vadd.f32 %v1322, %v1546
    %v1548 = vpop.f32.mrf.mxu0
    %v1549 = vpop.f32.mrf.mxu0
    %v1550 = vadd.f32 %v1325, %v1549
    %v1551 = vpop.f32.mrf.mxu0
    %1552 = vmatprep.mubr.bf16.mxu0 0
    %1553 = vmatmul.mubr.bf16.gmra.mxu0 %v1038
    %v1554 = vpop.f32.mrf.mxu0
    %v1555 = vadd.f32 %v1330, %v1554
    %v1556 = vpop.f32.mrf.mxu0
    %v1557 = vpop.f32.mrf.mxu0
    %v1558 = vadd.f32 %v1333, %v1557
    %v1559 = vpop.f32.mrf.mxu0
    %1560 = vdwg.mxu0
    %v1561 = vmax.f32 %v1371, 0.0
    %v1562 = vmax.f32 %v1374, 0.0
    %v1563 = vmax.f32 %v1379, 0.0
    %v1564 = vmax.f32 %v1382, 0.0
    %v1565 = vmax.f32 %v1387, 0.0
    %v1566 = vmax.f32 %v1390, 0.0
    %v1567 = vmax.f32 %v1395, 0.0
    %v1568 = vmax.f32 %v1398, 0.0
    %v1569 = vmax.f32 %v1403, 0.0
    %v1570 = vmax.f32 %v1406, 0.0
    %v1571 = vmax.f32 %v1411, 0.0
    %v1572 = vmax.f32 %v1414, 0.0
    %v1573 = vmax.f32 %v1419, 0.0
    %v1574 = vmax.f32 %v1422, 0.0
    %v1575 = vmax.f32 %v1427, 0.0
    %v1576 = vmax.f32 %v1430, 0.0
    %v1577 = vmax.f32 %v1435, 0.0
    %v1578 = vmax.f32 %v1438, 0.0
    %v1579 = vmax.f32 %v1443, 0.0
    %v1580 = vmax.f32 %v1446, 0.0
    %v1581 = vmax.f32 %v1451, 0.0
    %v1582 = vmax.f32 %v1454, 0.0
    %v1583 = vmax.f32 %v1459, 0.0
    %v1584 = vmax.f32 %v1462, 0.0
    %v1585 = vmax.f32 %v1467, 0.0
    %v1586 = vmax.f32 %v1470, 0.0
    %v1587 = vmax.f32 %v1475, 0.0
    %v1588 = vmax.f32 %v1478, 0.0
    %v1589 = vmax.f32 %v1483, 0.0
    %v1590 = vmax.f32 %v1486, 0.0
    %v1591 = vmax.f32 %v1491, 0.0
    %v1592 = vmax.f32 %v1494, 0.0
    %v1593 = vmax.f32 %v1499, 0.0
    %v1594 = vmax.f32 %v1502, 0.0
    %v1595 = vmax.f32 %v1507, 0.0
    %v1596 = vmax.f32 %v1510, 0.0
    %v1597 = vmax.f32 %v1515, 0.0
    %v1598 = vmax.f32 %v1518, 0.0
    %v1599 = vmax.f32 %v1523, 0.0
    %v1600 = vmax.f32 %v1526, 0.0
    %v1601 = vmax.f32 %v1531, 0.0
    %v1602 = vmax.f32 %v1534, 0.0
    %v1603 = vmax.f32 %v1539, 0.0
    %v1604 = vmax.f32 %v1542, 0.0
    %v1605 = vmax.f32 %v1547, 0.0
    %v1606 = vmax.f32 %v1550, 0.0
    %v1607 = vmax.f32 %v1555, 0.0
    %v1608 = vmax.f32 %v1558, 0.0
    %v1609 = vpack.c.bf16 %v1562, %v1561
    %v1610 = vpack.c.bf16 %v1564, %v1563
    %v1611 = vpack.c.bf16 %v1566, %v1565
    %v1612 = vpack.c.bf16 %v1568, %v1567
    %v1613 = vpack.c.bf16 %v1570, %v1569
    %v1614 = vpack.c.bf16 %v1572, %v1571
    %v1615 = vpack.c.bf16 %v1574, %v1573
    %v1616 = vpack.c.bf16 %v1576, %v1575
    %v1617 = vpack.c.bf16 %v1578, %v1577
    %v1618 = vpack.c.bf16 %v1580, %v1579
    %v1619 = vpack.c.bf16 %v1582, %v1581
    %v1620 = vpack.c.bf16 %v1584, %v1583
    %v1621 = vpack.c.bf16 %v1586, %v1585
    %v1622 = vpack.c.bf16 %v1588, %v1587
    %v1623 = vpack.c.bf16 %v1590, %v1589
    %v1624 = vpack.c.bf16 %v1592, %v1591
    %v1625 = vpack.c.bf16 %v1594, %v1593
    %v1626 = vpack.c.bf16 %v1596, %v1595
    %v1627 = vpack.c.bf16 %v1598, %v1597
    %v1628 = vpack.c.bf16 %v1600, %v1599
    %v1629 = vpack.c.bf16 %v1602, %v1601
    %v1630 = vpack.c.bf16 %v1604, %v1603
    %v1631 = vpack.c.bf16 %v1606, %v1605
    %v1632 = vpack.c.bf16 %v1608, %v1607
    %v1633 = vld [vmem:[#allocation8] sm:$0xf]
    %v1634 = vld [vmem:[#allocation8 + $0x4] sm:$0xf]
    %v1635 = vld [vmem:[#allocation8 + $0x8] sm:$0xf]
    %v1636 = vld [vmem:[#allocation8 + $0xc] sm:$0xf]
    %v1637 = vld [vmem:[#allocation8 + $0x10] sm:$0xf]
    %v1638 = vld [vmem:[#allocation8 + $0x14] sm:$0xf]
    %v1639 = vld [vmem:[#allocation8 + $0x18] sm:$0xf]
    %v1640 = vld [vmem:[#allocation8 + $0x1c] sm:$0xf]
    %v1641 = vld [vmem:[#allocation8 + $0x20] sm:$0xf]
    %v1642 = vld [vmem:[#allocation8 + $0x24] sm:$0xf]
    %v1643 = vld [vmem:[#allocation8 + $0x28] sm:$0xf]
    %v1644 = vld [vmem:[#allocation8 + $0x2c] sm:$0xf]
    %v1645 = vld [vmem:[#allocation8 + $0x30] sm:$0xf]
    %v1646 = vld [vmem:[#allocation8 + $0x34] sm:$0xf]
    %v1647 = vld [vmem:[#allocation8 + $0x38] sm:$0xf]
    %v1648 = vld [vmem:[#allocation8 + $0x3c] sm:$0xf]
    %v1665 = vunpack.c.l.b16 %v1633
    %v1666 = vunpack.c.l.b16 %v1634
    %v1667 = vunpack.c.l.b16 %v1635
    %v1668 = vunpack.c.l.b16 %v1636
    %v1669 = vunpack.c.l.b16 %v1637
    %v1670 = vunpack.c.l.b16 %v1638
    %v1671 = vunpack.c.l.b16 %v1639
    %v1672 = vunpack.c.l.b16 %v1640
    %v1673 = vunpack.c.l.b16 %v1641
    %v1674 = vunpack.c.l.b16 %v1642
    %v1675 = vunpack.c.l.b16 %v1643
    %v1676 = vunpack.c.l.b16 %v1644
    %v1677 = vunpack.c.l.b16 %v1645
    %v1678 = vunpack.c.l.b16 %v1646
    %v1679 = vunpack.c.l.b16 %v1647
    %v1680 = vunpack.c.l.b16 %v1648
    %v1681 = vpack.c.b16 %v1666, %v1665
    %v1682 = vpack.c.b16 %v1668, %v1667
    %v1683 = vpack.c.b16 %v1670, %v1669
    %v1684 = vpack.c.b16 %v1672, %v1671
    %v1685 = vpack.c.b16 %v1674, %v1673
    %v1686 = vpack.c.b16 %v1676, %v1675
    %v1687 = vpack.c.b16 %v1678, %v1677
    %v1688 = vpack.c.b16 %v1680, %v1679
    %1697 = vmatprep.subr.bf16.mxu0 0
    %1698 = vmatpush1.bf16.msra.mxu0 %v1688
    %1699 = vmatprep.subr.bf16.mxu0 0
    %1700 = vmatpush1.bf16.msra.mxu0 %v1687
    %1701 = vmatprep.subr.bf16.mxu0 0
    %1702 = vmatpush1.bf16.msra.mxu0 %v1686
    %1703 = vmatprep.subr.bf16.mxu0 0
    %1704 = vmatpush1.bf16.msra.mxu0 %v1685
    %1705 = vmatprep.subr.bf16.mxu0 0
    %1706 = vmatpush1.bf16.msra.mxu0 %v1684
    %1707 = vmatprep.subr.bf16.mxu0 0
    %1708 = vmatpush1.bf16.msra.mxu0 %v1683
    %1709 = vmatprep.subr.bf16.mxu0 0
    %1710 = vmatpush1.bf16.msra.mxu0 %v1682
    %1711 = vmatprep.subr.bf16.mxu0 0
    %1712 = vmatpush1.bf16.msra.mxu0 %v1681
    %1713 = vmatprep.subr.bf16.mxu0 0
    %1714 = vmatpush2.bf16.msra.mxu0 0
    %1715 = vmatprep.subr.bf16.mxu0 0
    %1716 = vmatpush2.bf16.msra.mxu0 0
    %1717 = vmatprep.subr.bf16.mxu0 0
    %1718 = vmatpush2.bf16.msra.mxu0 0
    %1719 = vmatprep.subr.bf16.mxu0 0
    %1720 = vmatpush2.bf16.msra.mxu0 0
    %1721 = vmatprep.subr.bf16.mxu0 0
    %1722 = vmatpush2.bf16.msra.mxu0 0
    %1723 = vmatprep.subr.bf16.mxu0 0
    %1724 = vmatpush2.bf16.msra.mxu0 0
    %1725 = vmatprep.subr.bf16.mxu0 0
    %1726 = vmatpush2.bf16.msra.mxu0 0
    %1727 = vmatprep.subr.bf16.mxu0 0
    %1728 = vmatpush2.bf16.msra.mxu0 0
    %1729 = vmatprep.mubr.bf16.mxu0 0
    %1730 = vmatmul.mubr.bf16.gmra.mxu0 %v1609
    %v1731 = vpop.f32.mrf.mxu0
    %v1732 = vadd.f32 0.0, %v1731
    %v1733 = vpop.f32.mrf.mxu0
    %v1734 = vpop.f32.mrf.mxu0
    %v1735 = vadd.f32 0.0, %v1734
    %v1736 = vpop.f32.mrf.mxu0
    %1737 = vmatprep.mubr.bf16.mxu0 0
    %1738 = vmatmul.mubr.bf16.gmra.mxu0 %v1610
    %v1739 = vpop.f32.mrf.mxu0
    %v1740 = vadd.f32 0.0, %v1739
    %v1741 = vpop.f32.mrf.mxu0
    %v1742 = vpop.f32.mrf.mxu0
    %v1743 = vadd.f32 0.0, %v1742
    %v1744 = vpop.f32.mrf.mxu0
    %1745 = vmatprep.mubr.bf16.mxu0 0
    %1746 = vmatmul.mubr.bf16.gmra.mxu0 %v1611
    %v1747 = vpop.f32.mrf.mxu0
    %v1748 = vadd.f32 0.0, %v1747
    %v1749 = vpop.f32.mrf.mxu0
    %v1750 = vpop.f32.mrf.mxu0
    %v1751 = vadd.f32 0.0, %v1750
    %v1752 = vpop.f32.mrf.mxu0
    %1753 = vmatprep.mubr.bf16.mxu0 0
    %1754 = vmatmul.mubr.bf16.gmra.mxu0 %v1612
    %v1755 = vpop.f32.mrf.mxu0
    %v1756 = vadd.f32 0.0, %v1755
    %v1757 = vpop.f32.mrf.mxu0
    %v1758 = vpop.f32.mrf.mxu0
    %v1759 = vadd.f32 0.0, %v1758
    %v1760 = vpop.f32.mrf.mxu0
    %1761 = vmatprep.mubr.bf16.mxu0 0
    %1762 = vmatmul.mubr.bf16.gmra.mxu0 %v1613
    %v1763 = vpop.f32.mrf.mxu0
    %v1764 = vadd.f32 0.0, %v1763
    %v1765 = vpop.f32.mrf.mxu0
    %v1766 = vpop.f32.mrf.mxu0
    %v1767 = vadd.f32 0.0, %v1766
    %v1768 = vpop.f32.mrf.mxu0
    %1769 = vmatprep.mubr.bf16.mxu0 0
    %1770 = vmatmul.mubr.bf16.gmra.mxu0 %v1614
    %v1771 = vpop.f32.mrf.mxu0
    %v1772 = vadd.f32 0.0, %v1771
    %v1773 = vpop.f32.mrf.mxu0
    %v1774 = vpop.f32.mrf.mxu0
    %v1775 = vadd.f32 0.0, %v1774
    %v1776 = vpop.f32.mrf.mxu0
    %1777 = vmatprep.mubr.bf16.mxu0 0
    %1778 = vmatmul.mubr.bf16.gmra.mxu0 %v1615
    %v1779 = vpop.f32.mrf.mxu0
    %v1780 = vadd.f32 0.0, %v1779
    %v1781 = vpop.f32.mrf.mxu0
    %v1782 = vpop.f32.mrf.mxu0
    %v1783 = vadd.f32 0.0, %v1782
    %v1784 = vpop.f32.mrf.mxu0
    %1785 = vmatprep.mubr.bf16.mxu0 0
    %1786 = vmatmul.mubr.bf16.gmra.mxu0 %v1616
    %v1787 = vpop.f32.mrf.mxu0
    %v1788 = vadd.f32 0.0, %v1787
    %v1789 = vpop.f32.mrf.mxu0
    %v1790 = vpop.f32.mrf.mxu0
    %v1791 = vadd.f32 0.0, %v1790
    %v1792 = vpop.f32.mrf.mxu0
    %1793 = vmatprep.mubr.bf16.mxu0 0
    %1794 = vmatmul.mubr.bf16.gmra.mxu0 %v1617
    %v1795 = vpop.f32.mrf.mxu0
    %v1796 = vadd.f32 0.0, %v1795
    %v1797 = vpop.f32.mrf.mxu0
    %v1798 = vpop.f32.mrf.mxu0
    %v1799 = vadd.f32 0.0, %v1798
    %v1800 = vpop.f32.mrf.mxu0
    %1801 = vmatprep.mubr.bf16.mxu0 0
    %1802 = vmatmul.mubr.bf16.gmra.mxu0 %v1618
    %v1803 = vpop.f32.mrf.mxu0
    %v1804 = vadd.f32 0.0, %v1803
    %v1805 = vpop.f32.mrf.mxu0
    %v1806 = vpop.f32.mrf.mxu0
    %v1807 = vadd.f32 0.0, %v1806
    %v1808 = vpop.f32.mrf.mxu0
    %1809 = vmatprep.mubr.bf16.mxu0 0
    %1810 = vmatmul.mubr.bf16.gmra.mxu0 %v1619
    %v1811 = vpop.f32.mrf.mxu0
    %v1812 = vadd.f32 0.0, %v1811
    %v1813 = vpop.f32.mrf.mxu0
    %v1814 = vpop.f32.mrf.mxu0
    %v1815 = vadd.f32 0.0, %v1814
    %v1816 = vpop.f32.mrf.mxu0
    %1817 = vmatprep.mubr.bf16.mxu0 0
    %1818 = vmatmul.mubr.bf16.gmra.mxu0 %v1620
    %v1819 = vpop.f32.mrf.mxu0
    %v1820 = vadd.f32 0.0, %v1819
    %v1821 = vpop.f32.mrf.mxu0
    %v1822 = vpop.f32.mrf.mxu0
    %v1823 = vadd.f32 0.0, %v1822
    %v1824 = vpop.f32.mrf.mxu0
    %1825 = vmatprep.mubr.bf16.mxu0 0
    %1826 = vmatmul.mubr.bf16.gmra.mxu0 %v1621
    %v1827 = vpop.f32.mrf.mxu0
    %v1828 = vadd.f32 0.0, %v1827
    %v1829 = vpop.f32.mrf.mxu0
    %v1830 = vpop.f32.mrf.mxu0
    %v1831 = vadd.f32 0.0, %v1830
    %v1832 = vpop.f32.mrf.mxu0
    %1833 = vmatprep.mubr.bf16.mxu0 0
    %1834 = vmatmul.mubr.bf16.gmra.mxu0 %v1622
    %v1835 = vpop.f32.mrf.mxu0
    %v1836 = vadd.f32 0.0, %v1835
    %v1837 = vpop.f32.mrf.mxu0
    %v1838 = vpop.f32.mrf.mxu0
    %v1839 = vadd.f32 0.0, %v1838
    %v1840 = vpop.f32.mrf.mxu0
    %1841 = vmatprep.mubr.bf16.mxu0 0
    %1842 = vmatmul.mubr.bf16.gmra.mxu0 %v1623
    %v1843 = vpop.f32.mrf.mxu0
    %v1844 = vadd.f32 0.0, %v1843
    %v1845 = vpop.f32.mrf.mxu0
    %v1846 = vpop.f32.mrf.mxu0
    %v1847 = vadd.f32 0.0, %v1846
    %v1848 = vpop.f32.mrf.mxu0
    %1849 = vmatprep.mubr.bf16.mxu0 0
    %1850 = vmatmul.mubr.bf16.gmra.mxu0 %v1624
    %v1851 = vpop.f32.mrf.mxu0
    %v1852 = vadd.f32 0.0, %v1851
    %v1853 = vpop.f32.mrf.mxu0
    %v1854 = vpop.f32.mrf.mxu0
    %v1855 = vadd.f32 0.0, %v1854
    %v1856 = vpop.f32.mrf.mxu0
    %1857 = vmatprep.mubr.bf16.mxu0 0
    %1858 = vmatmul.mubr.bf16.gmra.mxu0 %v1625
    %v1859 = vpop.f32.mrf.mxu0
    %v1860 = vadd.f32 0.0, %v1859
    %v1861 = vpop.f32.mrf.mxu0
    %v1862 = vpop.f32.mrf.mxu0
    %v1863 = vadd.f32 0.0, %v1862
    %v1864 = vpop.f32.mrf.mxu0
    %1865 = vmatprep.mubr.bf16.mxu0 0
    %1866 = vmatmul.mubr.bf16.gmra.mxu0 %v1626
    %v1867 = vpop.f32.mrf.mxu0
    %v1868 = vadd.f32 0.0, %v1867
    %v1869 = vpop.f32.mrf.mxu0
    %v1870 = vpop.f32.mrf.mxu0
    %v1871 = vadd.f32 0.0, %v1870
    %v1872 = vpop.f32.mrf.mxu0
    %1873 = vmatprep.mubr.bf16.mxu0 0
    %1874 = vmatmul.mubr.bf16.gmra.mxu0 %v1627
    %v1875 = vpop.f32.mrf.mxu0
    %v1876 = vadd.f32 0.0, %v1875
    %v1877 = vpop.f32.mrf.mxu0
    %v1878 = vpop.f32.mrf.mxu0
    %v1879 = vadd.f32 0.0, %v1878
    %v1880 = vpop.f32.mrf.mxu0
    %1881 = vmatprep.mubr.bf16.mxu0 0
    %1882 = vmatmul.mubr.bf16.gmra.mxu0 %v1628
    %v1883 = vpop.f32.mrf.mxu0
    %v1884 = vadd.f32 0.0, %v1883
    %v1885 = vpop.f32.mrf.mxu0
    %v1886 = vpop.f32.mrf.mxu0
    %v1887 = vadd.f32 0.0, %v1886
    %v1888 = vpop.f32.mrf.mxu0
    %1889 = vmatprep.mubr.bf16.mxu0 0
    %1890 = vmatmul.mubr.bf16.gmra.mxu0 %v1629
    %v1891 = vpop.f32.mrf.mxu0
    %v1892 = vadd.f32 0.0, %v1891
    %v1893 = vpop.f32.mrf.mxu0
    %v1894 = vpop.f32.mrf.mxu0
    %v1895 = vadd.f32 0.0, %v1894
    %v1896 = vpop.f32.mrf.mxu0
    %1897 = vmatprep.mubr.bf16.mxu0 0
    %1898 = vmatmul.mubr.bf16.gmra.mxu0 %v1630
    %v1899 = vpop.f32.mrf.mxu0
    %v1900 = vadd.f32 0.0, %v1899
    %v1901 = vpop.f32.mrf.mxu0
    %v1902 = vpop.f32.mrf.mxu0
    %v1903 = vadd.f32 0.0, %v1902
    %v1904 = vpop.f32.mrf.mxu0
    %1905 = vmatprep.mubr.bf16.mxu0 0
    %1906 = vmatmul.mubr.bf16.gmra.mxu0 %v1631
    %v1907 = vpop.f32.mrf.mxu0
    %v1908 = vadd.f32 0.0, %v1907
    %v1909 = vpop.f32.mrf.mxu0
    %v1910 = vpop.f32.mrf.mxu0
    %v1911 = vadd.f32 0.0, %v1910
    %v1912 = vpop.f32.mrf.mxu0
    %1913 = vmatprep.mubr.bf16.mxu0 0
    %1914 = vmatmul.mubr.bf16.gmra.mxu0 %v1632
    %v1915 = vpop.f32.mrf.mxu0
    %v1916 = vadd.f32 0.0, %v1915
    %v1917 = vpop.f32.mrf.mxu0
    %v1918 = vpop.f32.mrf.mxu0
    %v1919 = vadd.f32 0.0, %v1918
    %v1920 = vpop.f32.mrf.mxu0
    %1921 = vdwg.mxu0
    %v1922 = vpack.c.bf16 %v1735, %v1732
    %v1923 = vpack.c.bf16 %v1743, %v1740
    %v1924 = vpack.c.bf16 %v1751, %v1748
    %v1925 = vpack.c.bf16 %v1759, %v1756
    %v1926 = vpack.c.bf16 %v1767, %v1764
    %v1927 = vpack.c.bf16 %v1775, %v1772
    %v1928 = vpack.c.bf16 %v1783, %v1780
    %v1929 = vpack.c.bf16 %v1791, %v1788
    %v1930 = vpack.c.bf16 %v1799, %v1796
    %v1931 = vpack.c.bf16 %v1807, %v1804
    %v1932 = vpack.c.bf16 %v1815, %v1812
    %v1933 = vpack.c.bf16 %v1823, %v1820
    %v1934 = vpack.c.bf16 %v1831, %v1828
    %v1935 = vpack.c.bf16 %v1839, %v1836
    %v1936 = vpack.c.bf16 %v1847, %v1844
    %v1937 = vpack.c.bf16 %v1855, %v1852
    %v1938 = vpack.c.bf16 %v1863, %v1860
    %v1939 = vpack.c.bf16 %v1871, %v1868
    %v1940 = vpack.c.bf16 %v1879, %v1876
    %v1941 = vpack.c.bf16 %v1887, %v1884
    %v1942 = vpack.c.bf16 %v1895, %v1892
    %v1943 = vpack.c.bf16 %v1903, %v1900
    %v1944 = vpack.c.bf16 %v1911, %v1908
    %v1945 = vpack.c.bf16 %v1919, %v1916
    %v1946 = vld [vmem:[%s5] sm:$0x1]
    %v1948 = vlaneseq
    %v1949 = vshrl.u32 %v1948, 7
    %v1950 = vsub.s32 0, %v1949
    %v1951 = vrot.slane %v1946, %v1950
    %1953 = vmatprep.subr.bf16.mxu0 0
    %1954 = vmatpush1.bf16.msra.mxu0 %v1929
    %1955 = vmatprep.subr.bf16.mxu0 0
    %1956 = vmatpush1.bf16.msra.mxu0 %v1928
    %1957 = vmatprep.subr.bf16.mxu0 0
    %1958 = vmatpush1.bf16.msra.mxu0 %v1927
    %1959 = vmatprep.subr.bf16.mxu0 0
    %1960 = vmatpush1.bf16.msra.mxu0 %v1926
    %1961 = vmatprep.subr.bf16.mxu0 0
    %1962 = vmatpush1.bf16.msra.mxu0 %v1925
    %1963 = vmatprep.subr.bf16.mxu0 0
    %1964 = vmatpush1.bf16.msra.mxu0 %v1924
    %1965 = vmatprep.subr.bf16.mxu0 0
    %1966 = vmatpush1.bf16.msra.mxu0 %v1923
    %1967 = vmatprep.subr.bf16.mxu0 0
    %1968 = vmatpush1.bf16.msra.mxu0 %v1922
    %1969 = vmatprep.subr.bf16.mxu0 0
    %1970 = vmatpush2.bf16.msra.mxu0 %v1937
    %1971 = vmatprep.subr.bf16.mxu0 0
    %1972 = vmatpush2.bf16.msra.mxu0 %v1936
    %1973 = vmatprep.subr.bf16.mxu0 0
    %1974 = vmatpush2.bf16.msra.mxu0 %v1935
    %1975 = vmatprep.subr.bf16.mxu0 0
    %1976 = vmatpush2.bf16.msra.mxu0 %v1934
    %1977 = vmatprep.subr.bf16.mxu0 0
    %1978 = vmatpush2.bf16.msra.mxu0 %v1933
    %1979 = vmatprep.subr.bf16.mxu0 0
    %1980 = vmatpush2.bf16.msra.mxu0 %v1932
    %1981 = vmatprep.subr.bf16.mxu0 0
    %1982 = vmatpush2.bf16.msra.mxu0 %v1931
    %1983 = vmatprep.subr.bf16.mxu0 0
    %1984 = vmatpush2.bf16.msra.mxu0 %v1930
    %1985 = vmatprep.mubr.bf16.mxu0 %v968
    %1986 = vmatmul.mubr.bf16.gmra.mxu0 %v967
    %v1987 = vpop.f32.mrf.mxu0
    %v1988 = vadd.f32 %v1951, %v1987
    %v1989 = vpop.f32.mrf.mxu0
    %v1990 = vpop.f32.mrf.mxu0
    %v1991 = vadd.f32 %v1951, %v1990
    %v1992 = vpop.f32.mrf.mxu0
    %1993 = vmatprep.mubr.bf16.mxu0 %v971
    %1994 = vmatmul.mubr.bf16.gmra.mxu0 %v970
    %v1995 = vpop.f32.mrf.mxu0
    %v1996 = vadd.f32 %v1951, %v1995
    %v1997 = vpop.f32.mrf.mxu0
    %v1998 = vpop.f32.mrf.mxu0
    %v1999 = vadd.f32 %v1951, %v1998
    %v2000 = vpop.f32.mrf.mxu0
    %2001 = vmatprep.mubr.bf16.mxu0 %v974
    %2002 = vmatmul.mubr.bf16.gmra.mxu0 %v973
    %v2003 = vpop.f32.mrf.mxu0
    %v2004 = vadd.f32 %v1951, %v2003
    %v2005 = vpop.f32.mrf.mxu0
    %v2006 = vpop.f32.mrf.mxu0
    %v2007 = vadd.f32 %v1951, %v2006
    %v2008 = vpop.f32.mrf.mxu0
    %2009 = vmatprep.mubr.bf16.mxu0 %v977
    %2010 = vmatmul.mubr.bf16.gmra.mxu0 %v976
    %v2011 = vpop.f32.mrf.mxu0
    %v2012 = vadd.f32 %v1951, %v2011
    %v2013 = vpop.f32.mrf.mxu0
    %v2014 = vpop.f32.mrf.mxu0
    %v2015 = vadd.f32 %v1951, %v2014
    %v2016 = vpop.f32.mrf.mxu0
    %2017 = vmatprep.mubr.bf16.mxu0 %v980
    %2018 = vmatmul.mubr.bf16.gmra.mxu0 %v979
    %v2019 = vpop.f32.mrf.mxu0
    %v2020 = vadd.f32 %v1951, %v2019
    %v2021 = vpop.f32.mrf.mxu0
    %v2022 = vpop.f32.mrf.mxu0
    %v2023 = vadd.f32 %v1951, %v2022
    %v2024 = vpop.f32.mrf.mxu0
    %2025 = vmatprep.mubr.bf16.mxu0 %v983
    %2026 = vmatmul.mubr.bf16.gmra.mxu0 %v982
    %v2027 = vpop.f32.mrf.mxu0
    %v2028 = vadd.f32 %v1951, %v2027
    %v2029 = vpop.f32.mrf.mxu0
    %v2030 = vpop.f32.mrf.mxu0
    %v2031 = vadd.f32 %v1951, %v2030
    %v2032 = vpop.f32.mrf.mxu0
    %2033 = vmatprep.mubr.bf16.mxu0 %v986
    %2034 = vmatmul.mubr.bf16.gmra.mxu0 %v985
    %v2035 = vpop.f32.mrf.mxu0
    %v2036 = vadd.f32 %v1951, %v2035
    %v2037 = vpop.f32.mrf.mxu0
    %v2038 = vpop.f32.mrf.mxu0
    %v2039 = vadd.f32 %v1951, %v2038
    %v2040 = vpop.f32.mrf.mxu0
    %2041 = vmatprep.mubr.bf16.mxu0 %v989
    %2042 = vmatmul.mubr.bf16.gmra.mxu0 %v988
    %v2043 = vpop.f32.mrf.mxu0
    %v2044 = vadd.f32 %v1951, %v2043
    %v2045 = vpop.f32.mrf.mxu0
    %v2046 = vpop.f32.mrf.mxu0
    %v2047 = vadd.f32 %v1951, %v2046
    %v2048 = vpop.f32.mrf.mxu0
    %2049 = vmatprep.mubr.bf16.mxu0 %v992
    %2050 = vmatmul.mubr.bf16.gmra.mxu0 %v991
    %v2051 = vpop.f32.mrf.mxu0
    %v2052 = vadd.f32 %v1951, %v2051
    %v2053 = vpop.f32.mrf.mxu0
    %v2054 = vpop.f32.mrf.mxu0
    %v2055 = vadd.f32 %v1951, %v2054
    %v2056 = vpop.f32.mrf.mxu0
    %2057 = vmatprep.mubr.bf16.mxu0 %v995
    %2058 = vmatmul.mubr.bf16.gmra.mxu0 %v994
    %v2059 = vpop.f32.mrf.mxu0
    %v2060 = vadd.f32 %v1951, %v2059
    %v2061 = vpop.f32.mrf.mxu0
    %v2062 = vpop.f32.mrf.mxu0
    %v2063 = vadd.f32 %v1951, %v2062
    %v2064 = vpop.f32.mrf.mxu0
    %2065 = vmatprep.mubr.bf16.mxu0 %v998
    %2066 = vmatmul.mubr.bf16.gmra.mxu0 %v997
    %v2067 = vpop.f32.mrf.mxu0
    %v2068 = vadd.f32 %v1951, %v2067
    %v2069 = vpop.f32.mrf.mxu0
    %v2070 = vpop.f32.mrf.mxu0
    %v2071 = vadd.f32 %v1951, %v2070
    %v2072 = vpop.f32.mrf.mxu0
    %2073 = vmatprep.mubr.bf16.mxu0 %v1001
    %2074 = vmatmul.mubr.bf16.gmra.mxu0 %v1000
    %v2075 = vpop.f32.mrf.mxu0
    %v2076 = vadd.f32 %v1951, %v2075
    %v2077 = vpop.f32.mrf.mxu0
    %v2078 = vpop.f32.mrf.mxu0
    %v2079 = vadd.f32 %v1951, %v2078
    %v2080 = vpop.f32.mrf.mxu0
    %2081 = vmatprep.mubr.bf16.mxu0 %v1004
    %2082 = vmatmul.mubr.bf16.gmra.mxu0 %v1003
    %v2083 = vpop.f32.mrf.mxu0
    %v2084 = vadd.f32 %v1951, %v2083
    %v2085 = vpop.f32.mrf.mxu0
    %v2086 = vpop.f32.mrf.mxu0
    %v2087 = vadd.f32 %v1951, %v2086
    %v2088 = vpop.f32.mrf.mxu0
    %2089 = vmatprep.mubr.bf16.mxu0 %v1007
    %2090 = vmatmul.mubr.bf16.gmra.mxu0 %v1006
    %v2091 = vpop.f32.mrf.mxu0
    %v2092 = vadd.f32 %v1951, %v2091
    %v2093 = vpop.f32.mrf.mxu0
    %v2094 = vpop.f32.mrf.mxu0
    %v2095 = vadd.f32 %v1951, %v2094
    %v2096 = vpop.f32.mrf.mxu0
    %2097 = vmatprep.mubr.bf16.mxu0 %v1010
    %2098 = vmatmul.mubr.bf16.gmra.mxu0 %v1009
    %v2099 = vpop.f32.mrf.mxu0
    %v2100 = vadd.f32 %v1951, %v2099
    %v2101 = vpop.f32.mrf.mxu0
    %v2102 = vpop.f32.mrf.mxu0
    %v2103 = vadd.f32 %v1951, %v2102
    %v2104 = vpop.f32.mrf.mxu0
    %2105 = vmatprep.mubr.bf16.mxu0 %v1013
    %2106 = vmatmul.mubr.bf16.gmra.mxu0 %v1012
    %v2107 = vpop.f32.mrf.mxu0
    %v2108 = vadd.f32 %v1951, %v2107
    %v2109 = vpop.f32.mrf.mxu0
    %v2110 = vpop.f32.mrf.mxu0
    %v2111 = vadd.f32 %v1951, %v2110
    %v2112 = vpop.f32.mrf.mxu0
    %2113 = vmatprep.mubr.bf16.mxu0 %v1016
    %2114 = vmatmul.mubr.bf16.gmra.mxu0 %v1015
    %v2115 = vpop.f32.mrf.mxu0
    %v2116 = vadd.f32 %v1951, %v2115
    %v2117 = vpop.f32.mrf.mxu0
    %v2118 = vpop.f32.mrf.mxu0
    %v2119 = vadd.f32 %v1951, %v2118
    %v2120 = vpop.f32.mrf.mxu0
    %2121 = vmatprep.mubr.bf16.mxu0 %v1019
    %2122 = vmatmul.mubr.bf16.gmra.mxu0 %v1018
    %v2123 = vpop.f32.mrf.mxu0
    %v2124 = vadd.f32 %v1951, %v2123
    %v2125 = vpop.f32.mrf.mxu0
    %v2126 = vpop.f32.mrf.mxu0
    %v2127 = vadd.f32 %v1951, %v2126
    %v2128 = vpop.f32.mrf.mxu0
    %2129 = vmatprep.mubr.bf16.mxu0 %v1022
    %2130 = vmatmul.mubr.bf16.gmra.mxu0 %v1021
    %v2131 = vpop.f32.mrf.mxu0
    %v2132 = vadd.f32 %v1951, %v2131
    %v2133 = vpop.f32.mrf.mxu0
    %v2134 = vpop.f32.mrf.mxu0
    %v2135 = vadd.f32 %v1951, %v2134
    %v2136 = vpop.f32.mrf.mxu0
    %2137 = vmatprep.mubr.bf16.mxu0 %v1025
    %2138 = vmatmul.mubr.bf16.gmra.mxu0 %v1024
    %v2139 = vpop.f32.mrf.mxu0
    %v2140 = vadd.f32 %v1951, %v2139
    %v2141 = vpop.f32.mrf.mxu0
    %v2142 = vpop.f32.mrf.mxu0
    %v2143 = vadd.f32 %v1951, %v2142
    %v2144 = vpop.f32.mrf.mxu0
    %2145 = vmatprep.mubr.bf16.mxu0 %v1028
    %2146 = vmatmul.mubr.bf16.gmra.mxu0 %v1027
    %v2147 = vpop.f32.mrf.mxu0
    %v2148 = vadd.f32 %v1951, %v2147
    %v2149 = vpop.f32.mrf.mxu0
    %v2150 = vpop.f32.mrf.mxu0
    %v2151 = vadd.f32 %v1951, %v2150
    %v2152 = vpop.f32.mrf.mxu0
    %2153 = vmatprep.mubr.bf16.mxu0 %v1031
    %2154 = vmatmul.mubr.bf16.gmra.mxu0 %v1030
    %v2155 = vpop.f32.mrf.mxu0
    %v2156 = vadd.f32 %v1951, %v2155
    %v2157 = vpop.f32.mrf.mxu0
    %v2158 = vpop.f32.mrf.mxu0
    %v2159 = vadd.f32 %v1951, %v2158
    %v2160 = vpop.f32.mrf.mxu0
    %2161 = vmatprep.mubr.bf16.mxu0 %v1034
    %2162 = vmatmul.mubr.bf16.gmra.mxu0 %v1033
    %v2163 = vpop.f32.mrf.mxu0
    %v2164 = vadd.f32 %v1951, %v2163
    %v2165 = vpop.f32.mrf.mxu0
    %v2166 = vpop.f32.mrf.mxu0
    %v2167 = vadd.f32 %v1951, %v2166
    %v2168 = vpop.f32.mrf.mxu0
    %2169 = vmatprep.mubr.bf16.mxu0 %v1037
    %2170 = vmatmul.mubr.bf16.gmra.mxu0 %v1036
    %v2171 = vpop.f32.mrf.mxu0
    %v2172 = vadd.f32 %v1951, %v2171
    %v2173 = vpop.f32.mrf.mxu0
    %v2174 = vpop.f32.mrf.mxu0
    %v2175 = vadd.f32 %v1951, %v2174
    %v2176 = vpop.f32.mrf.mxu0
    %2177 = vdwg.mxu0
    %2178 = vmatprep.subr.bf16.mxu0 0
    %2179 = vmatpush1.bf16.msra.mxu0 %v1945
    %2180 = vmatprep.subr.bf16.mxu0 0
    %2181 = vmatpush1.bf16.msra.mxu0 %v1944
    %2182 = vmatprep.subr.bf16.mxu0 0
    %2183 = vmatpush1.bf16.msra.mxu0 %v1943
    %2184 = vmatprep.subr.bf16.mxu0 0
    %2185 = vmatpush1.bf16.msra.mxu0 %v1942
    %2186 = vmatprep.subr.bf16.mxu0 0
    %2187 = vmatpush1.bf16.msra.mxu0 %v1941
    %2188 = vmatprep.subr.bf16.mxu0 0
    %2189 = vmatpush1.bf16.msra.mxu0 %v1940
    %2190 = vmatprep.subr.bf16.mxu0 0
    %2191 = vmatpush1.bf16.msra.mxu0 %v1939
    %2192 = vmatprep.subr.bf16.mxu0 0
    %2193 = vmatpush1.bf16.msra.mxu0 %v1938
    %2194 = vmatprep.subr.bf16.mxu0 0
    %2195 = vmatpush2.bf16.msra.mxu0 0
    %2196 = vmatprep.subr.bf16.mxu0 0
    %2197 = vmatpush2.bf16.msra.mxu0 0
    %2198 = vmatprep.subr.bf16.mxu0 0
    %2199 = vmatpush2.bf16.msra.mxu0 0
    %2200 = vmatprep.subr.bf16.mxu0 0
    %2201 = vmatpush2.bf16.msra.mxu0 0
    %2202 = vmatprep.subr.bf16.mxu0 0
    %2203 = vmatpush2.bf16.msra.mxu0 0
    %2204 = vmatprep.subr.bf16.mxu0 0
    %2205 = vmatpush2.bf16.msra.mxu0 0
    %2206 = vmatprep.subr.bf16.mxu0 0
    %2207 = vmatpush2.bf16.msra.mxu0 0
    %2208 = vmatprep.subr.bf16.mxu0 0
    %2209 = vmatpush2.bf16.msra.mxu0 0
    %2210 = vmatprep.mubr.bf16.mxu0 0
    %2211 = vmatmul.mubr.bf16.gmra.mxu0 %v969
    %v2212 = vpop.f32.mrf.mxu0
    %v2213 = vadd.f32 %v1988, %v2212
    %v2214 = vpop.f32.mrf.mxu0
    %v2215 = vpop.f32.mrf.mxu0
    %v2216 = vadd.f32 %v1991, %v2215
    %v2217 = vpop.f32.mrf.mxu0
    %2218 = vmatprep.mubr.bf16.mxu0 0
    %2219 = vmatmul.mubr.bf16.gmra.mxu0 %v972
    %v2220 = vpop.f32.mrf.mxu0
    %v2221 = vadd.f32 %v1996, %v2220
    %v2222 = vpop.f32.mrf.mxu0
    %v2223 = vpop.f32.mrf.mxu0
    %v2224 = vadd.f32 %v1999, %v2223
    %v2225 = vpop.f32.mrf.mxu0
    %2226 = vmatprep.mubr.bf16.mxu0 0
    %2227 = vmatmul.mubr.bf16.gmra.mxu0 %v975
    %v2228 = vpop.f32.mrf.mxu0
    %v2229 = vadd.f32 %v2004, %v2228
    %v2230 = vpop.f32.mrf.mxu0
    %v2231 = vpop.f32.mrf.mxu0
    %v2232 = vadd.f32 %v2007, %v2231
    %v2233 = vpop.f32.mrf.mxu0
    %2234 = vmatprep.mubr.bf16.mxu0 0
    %2235 = vmatmul.mubr.bf16.gmra.mxu0 %v978
    %v2236 = vpop.f32.mrf.mxu0
    %v2237 = vadd.f32 %v2012, %v2236
    %v2238 = vpop.f32.mrf.mxu0
    %v2239 = vpop.f32.mrf.mxu0
    %v2240 = vadd.f32 %v2015, %v2239
    %v2241 = vpop.f32.mrf.mxu0
    %2242 = vmatprep.mubr.bf16.mxu0 0
    %2243 = vmatmul.mubr.bf16.gmra.mxu0 %v981
    %v2244 = vpop.f32.mrf.mxu0
    %v2245 = vadd.f32 %v2020, %v2244
    %v2246 = vpop.f32.mrf.mxu0
    %v2247 = vpop.f32.mrf.mxu0
    %v2248 = vadd.f32 %v2023, %v2247
    %v2249 = vpop.f32.mrf.mxu0
    %2250 = vmatprep.mubr.bf16.mxu0 0
    %2251 = vmatmul.mubr.bf16.gmra.mxu0 %v984
    %v2252 = vpop.f32.mrf.mxu0
    %v2253 = vadd.f32 %v2028, %v2252
    %v2254 = vpop.f32.mrf.mxu0
    %v2255 = vpop.f32.mrf.mxu0
    %v2256 = vadd.f32 %v2031, %v2255
    %v2257 = vpop.f32.mrf.mxu0
    %2258 = vmatprep.mubr.bf16.mxu0 0
    %2259 = vmatmul.mubr.bf16.gmra.mxu0 %v987
    %v2260 = vpop.f32.mrf.mxu0
    %v2261 = vadd.f32 %v2036, %v2260
    %v2262 = vpop.f32.mrf.mxu0
    %v2263 = vpop.f32.mrf.mxu0
    %v2264 = vadd.f32 %v2039, %v2263
    %v2265 = vpop.f32.mrf.mxu0
    %2266 = vmatprep.mubr.bf16.mxu0 0
    %2267 = vmatmul.mubr.bf16.gmra.mxu0 %v990
    %v2268 = vpop.f32.mrf.mxu0
    %v2269 = vadd.f32 %v2044, %v2268
    %v2270 = vpop.f32.mrf.mxu0
    %v2271 = vpop.f32.mrf.mxu0
    %v2272 = vadd.f32 %v2047, %v2271
    %v2273 = vpop.f32.mrf.mxu0
    %2274 = vmatprep.mubr.bf16.mxu0 0
    %2275 = vmatmul.mubr.bf16.gmra.mxu0 %v993
    %v2276 = vpop.f32.mrf.mxu0
    %v2277 = vadd.f32 %v2052, %v2276
    %v2278 = vpop.f32.mrf.mxu0
    %v2279 = vpop.f32.mrf.mxu0
    %v2280 = vadd.f32 %v2055, %v2279
    %v2281 = vpop.f32.mrf.mxu0
    %2282 = vmatprep.mubr.bf16.mxu0 0
    %2283 = vmatmul.mubr.bf16.gmra.mxu0 %v996
    %v2284 = vpop.f32.mrf.mxu0
    %v2285 = vadd.f32 %v2060, %v2284
    %v2286 = vpop.f32.mrf.mxu0
    %v2287 = vpop.f32.mrf.mxu0
    %v2288 = vadd.f32 %v2063, %v2287
    %v2289 = vpop.f32.mrf.mxu0
    %2290 = vmatprep.mubr.bf16.mxu0 0
    %2291 = vmatmul.mubr.bf16.gmra.mxu0 %v999
    %v2292 = vpop.f32.mrf.mxu0
    %v2293 = vadd.f32 %v2068, %v2292
    %v2294 = vpop.f32.mrf.mxu0
    %v2295 = vpop.f32.mrf.mxu0
    %v2296 = vadd.f32 %v2071, %v2295
    %v2297 = vpop.f32.mrf.mxu0
    %2298 = vmatprep.mubr.bf16.mxu0 0
    %2299 = vmatmul.mubr.bf16.gmra.mxu0 %v1002
    %v2300 = vpop.f32.mrf.mxu0
    %v2301 = vadd.f32 %v2076, %v2300
    %v2302 = vpop.f32.mrf.mxu0
    %v2303 = vpop.f32.mrf.mxu0
    %v2304 = vadd.f32 %v2079, %v2303
    %v2305 = vpop.f32.mrf.mxu0
    %2306 = vmatprep.mubr.bf16.mxu0 0
    %2307 = vmatmul.mubr.bf16.gmra.mxu0 %v1005
    %v2308 = vpop.f32.mrf.mxu0
    %v2309 = vadd.f32 %v2084, %v2308
    %v2310 = vpop.f32.mrf.mxu0
    %v2311 = vpop.f32.mrf.mxu0
    %v2312 = vadd.f32 %v2087, %v2311
    %v2313 = vpop.f32.mrf.mxu0
    %2314 = vmatprep.mubr.bf16.mxu0 0
    %2315 = vmatmul.mubr.bf16.gmra.mxu0 %v1008
    %v2316 = vpop.f32.mrf.mxu0
    %v2317 = vadd.f32 %v2092, %v2316
    %v2318 = vpop.f32.mrf.mxu0
    %v2319 = vpop.f32.mrf.mxu0
    %v2320 = vadd.f32 %v2095, %v2319
    %v2321 = vpop.f32.mrf.mxu0
    %2322 = vmatprep.mubr.bf16.mxu0 0
    %2323 = vmatmul.mubr.bf16.gmra.mxu0 %v1011
    %v2324 = vpop.f32.mrf.mxu0
    %v2325 = vadd.f32 %v2100, %v2324
    %v2326 = vpop.f32.mrf.mxu0
    %v2327 = vpop.f32.mrf.mxu0
    %v2328 = vadd.f32 %v2103, %v2327
    %v2329 = vpop.f32.mrf.mxu0
    %2330 = vmatprep.mubr.bf16.mxu0 0
    %2331 = vmatmul.mubr.bf16.gmra.mxu0 %v1014
    %v2332 = vpop.f32.mrf.mxu0
    %v2333 = vadd.f32 %v2108, %v2332
    %v2334 = vpop.f32.mrf.mxu0
    %v2335 = vpop.f32.mrf.mxu0
    %v2336 = vadd.f32 %v2111, %v2335
    %v2337 = vpop.f32.mrf.mxu0
    %2338 = vmatprep.mubr.bf16.mxu0 0
    %2339 = vmatmul.mubr.bf16.gmra.mxu0 %v1017
    %v2340 = vpop.f32.mrf.mxu0
    %v2341 = vadd.f32 %v2116, %v2340
    %v2342 = vpop.f32.mrf.mxu0
    %v2343 = vpop.f32.mrf.mxu0
    %v2344 = vadd.f32 %v2119, %v2343
    %v2345 = vpop.f32.mrf.mxu0
    %2346 = vmatprep.mubr.bf16.mxu0 0
    %2347 = vmatmul.mubr.bf16.gmra.mxu0 %v1020
    %v2348 = vpop.f32.mrf.mxu0
    %v2349 = vadd.f32 %v2124, %v2348
    %v2350 = vpop.f32.mrf.mxu0
    %v2351 = vpop.f32.mrf.mxu0
    %v2352 = vadd.f32 %v2127, %v2351
    %v2353 = vpop.f32.mrf.mxu0
    %2354 = vmatprep.mubr.bf16.mxu0 0
    %2355 = vmatmul.mubr.bf16.gmra.mxu0 %v1023
    %v2356 = vpop.f32.mrf.mxu0
    %v2357 = vadd.f32 %v2132, %v2356
    %v2358 = vpop.f32.mrf.mxu0
    %v2359 = vpop.f32.mrf.mxu0
    %v2360 = vadd.f32 %v2135, %v2359
    %v2361 = vpop.f32.mrf.mxu0
    %2362 = vmatprep.mubr.bf16.mxu0 0
    %2363 = vmatmul.mubr.bf16.gmra.mxu0 %v1026
    %v2364 = vpop.f32.mrf.mxu0
    %v2365 = vadd.f32 %v2140, %v2364
    %v2366 = vpop.f32.mrf.mxu0
    %v2367 = vpop.f32.mrf.mxu0
    %v2368 = vadd.f32 %v2143, %v2367
    %v2369 = vpop.f32.mrf.mxu0
    %2370 = vmatprep.mubr.bf16.mxu0 0
    %2371 = vmatmul.mubr.bf16.gmra.mxu0 %v1029
    %v2372 = vpop.f32.mrf.mxu0
    %v2373 = vadd.f32 %v2148, %v2372
    %v2374 = vpop.f32.mrf.mxu0
    %v2375 = vpop.f32.mrf.mxu0
    %v2376 = vadd.f32 %v2151, %v2375
    %v2377 = vpop.f32.mrf.mxu0
    %2378 = vmatprep.mubr.bf16.mxu0 0
    %2379 = vmatmul.mubr.bf16.gmra.mxu0 %v1032
    %v2380 = vpop.f32.mrf.mxu0
    %v2381 = vadd.f32 %v2156, %v2380
    %v2382 = vpop.f32.mrf.mxu0
    %v2383 = vpop.f32.mrf.mxu0
    %v2384 = vadd.f32 %v2159, %v2383
    %v2385 = vpop.f32.mrf.mxu0
    %2386 = vmatprep.mubr.bf16.mxu0 0
    %2387 = vmatmul.mubr.bf16.gmra.mxu0 %v1035
    %v2388 = vpop.f32.mrf.mxu0
    %v2389 = vadd.f32 %v2164, %v2388
    %v2390 = vpop.f32.mrf.mxu0
    %v2391 = vpop.f32.mrf.mxu0
    %v2392 = vadd.f32 %v2167, %v2391
    %v2393 = vpop.f32.mrf.mxu0
    %2394 = vmatprep.mubr.bf16.mxu0 0
    %2395 = vmatmul.mubr.bf16.gmra.mxu0 %v1038
    %v2396 = vpop.f32.mrf.mxu0
    %v2397 = vadd.f32 %v2172, %v2396
    %v2398 = vpop.f32.mrf.mxu0
    %v2399 = vpop.f32.mrf.mxu0
    %v2400 = vadd.f32 %v2175, %v2399
    %v2401 = vpop.f32.mrf.mxu0
    %2402 = vdwg.mxu0
    %v2403 = vmax.f32 %v2213, 0.0
    %v2404 = vmax.f32 %v2216, 0.0
    %v2405 = vmax.f32 %v2221, 0.0
    %v2406 = vmax.f32 %v2224, 0.0
    %v2407 = vmax.f32 %v2229, 0.0
    %v2408 = vmax.f32 %v2232, 0.0
    %v2409 = vmax.f32 %v2237, 0.0
    %v2410 = vmax.f32 %v2240, 0.0
    %v2411 = vmax.f32 %v2245, 0.0
    %v2412 = vmax.f32 %v2248, 0.0
    %v2413 = vmax.f32 %v2253, 0.0
    %v2414 = vmax.f32 %v2256, 0.0
    %v2415 = vmax.f32 %v2261, 0.0
    %v2416 = vmax.f32 %v2264, 0.0
    %v2417 = vmax.f32 %v2269, 0.0
    %v2418 = vmax.f32 %v2272, 0.0
    %v2419 = vmax.f32 %v2277, 0.0
    %v2420 = vmax.f32 %v2280, 0.0
    %v2421 = vmax.f32 %v2285, 0.0
    %v2422 = vmax.f32 %v2288, 0.0
    %v2423 = vmax.f32 %v2293, 0.0
    %v2424 = vmax.f32 %v2296, 0.0
    %v2425 = vmax.f32 %v2301, 0.0
    %v2426 = vmax.f32 %v2304, 0.0
    %v2427 = vmax.f32 %v2309, 0.0
    %v2428 = vmax.f32 %v2312, 0.0
    %v2429 = vmax.f32 %v2317, 0.0
    %v2430 = vmax.f32 %v2320, 0.0
    %v2431 = vmax.f32 %v2325, 0.0
    %v2432 = vmax.f32 %v2328, 0.0
    %v2433 = vmax.f32 %v2333, 0.0
    %v2434 = vmax.f32 %v2336, 0.0
    %v2435 = vmax.f32 %v2341, 0.0
    %v2436 = vmax.f32 %v2344, 0.0
    %v2437 = vmax.f32 %v2349, 0.0
    %v2438 = vmax.f32 %v2352, 0.0
    %v2439 = vmax.f32 %v2357, 0.0
    %v2440 = vmax.f32 %v2360, 0.0
    %v2441 = vmax.f32 %v2365, 0.0
    %v2442 = vmax.f32 %v2368, 0.0
    %v2443 = vmax.f32 %v2373, 0.0
    %v2444 = vmax.f32 %v2376, 0.0
    %v2445 = vmax.f32 %v2381, 0.0
    %v2446 = vmax.f32 %v2384, 0.0
    %v2447 = vmax.f32 %v2389, 0.0
    %v2448 = vmax.f32 %v2392, 0.0
    %v2449 = vmax.f32 %v2397, 0.0
    %v2450 = vmax.f32 %v2400, 0.0
    %v2451 = vpack.c.bf16 %v2404, %v2403
    %v2452 = vpack.c.bf16 %v2406, %v2405
    %v2453 = vpack.c.bf16 %v2408, %v2407
    %v2454 = vpack.c.bf16 %v2410, %v2409
    %v2455 = vpack.c.bf16 %v2412, %v2411
    %v2456 = vpack.c.bf16 %v2414, %v2413
    %v2457 = vpack.c.bf16 %v2416, %v2415
    %v2458 = vpack.c.bf16 %v2418, %v2417
    %v2459 = vpack.c.bf16 %v2420, %v2419
    %v2460 = vpack.c.bf16 %v2422, %v2421
    %v2461 = vpack.c.bf16 %v2424, %v2423
    %v2462 = vpack.c.bf16 %v2426, %v2425
    %v2463 = vpack.c.bf16 %v2428, %v2427
    %v2464 = vpack.c.bf16 %v2430, %v2429
    %v2465 = vpack.c.bf16 %v2432, %v2431
    %v2466 = vpack.c.bf16 %v2434, %v2433
    %v2467 = vpack.c.bf16 %v2436, %v2435
    %v2468 = vpack.c.bf16 %v2438, %v2437
    %v2469 = vpack.c.bf16 %v2440, %v2439
    %v2470 = vpack.c.bf16 %v2442, %v2441
    %v2471 = vpack.c.bf16 %v2444, %v2443
    %v2472 = vpack.c.bf16 %v2446, %v2445
    %v2473 = vpack.c.bf16 %v2448, %v2447
    %v2474 = vpack.c.bf16 %v2450, %v2449
    %v2475 = vld [vmem:[#allocation10] sm:$0xf]
    %v2476 = vld [vmem:[#allocation10 + $0x4] sm:$0xf]
    %v2477 = vld [vmem:[#allocation10 + $0x8] sm:$0xf]
    %v2478 = vld [vmem:[#allocation10 + $0xc] sm:$0xf]
    %v2479 = vld [vmem:[#allocation10 + $0x10] sm:$0xf]
    %v2480 = vld [vmem:[#allocation10 + $0x14] sm:$0xf]
    %v2481 = vld [vmem:[#allocation10 + $0x18] sm:$0xf]
    %v2482 = vld [vmem:[#allocation10 + $0x1c] sm:$0xf]
    %v2483 = vld [vmem:[#allocation10 + $0x20] sm:$0xf]
    %v2484 = vld [vmem:[#allocation10 + $0x24] sm:$0xf]
    %v2485 = vld [vmem:[#allocation10 + $0x28] sm:$0xf]
    %v2486 = vld [vmem:[#allocation10 + $0x2c] sm:$0xf]
    %v2487 = vld [vmem:[#allocation10 + $0x30] sm:$0xf]
    %v2488 = vld [vmem:[#allocation10 + $0x34] sm:$0xf]
    %v2489 = vld [vmem:[#allocation10 + $0x38] sm:$0xf]
    %v2490 = vld [vmem:[#allocation10 + $0x3c] sm:$0xf]
    %v2491 = vld [vmem:[%s7] sm:$0x1]
    %v2493 = vlaneseq
    %v2494 = vshrl.u32 %v2493, 7
    %v2495 = vsub.s32 0, %v2494
    %v2496 = vrot.slane %v2491, %v2495
    %v2514 = vunpack.c.l.b16 %v2475
    %v2515 = vunpack.c.l.b16 %v2476
    %v2516 = vunpack.c.l.b16 %v2477
    %v2517 = vunpack.c.l.b16 %v2478
    %v2518 = vunpack.c.l.b16 %v2479
    %v2519 = vunpack.c.l.b16 %v2480
    %v2520 = vunpack.c.l.b16 %v2481
    %v2521 = vunpack.c.l.b16 %v2482
    %v2522 = vunpack.c.l.b16 %v2483
    %v2523 = vunpack.c.l.b16 %v2484
    %v2524 = vunpack.c.l.b16 %v2485
    %v2525 = vunpack.c.l.b16 %v2486
    %v2526 = vunpack.c.l.b16 %v2487
    %v2527 = vunpack.c.l.b16 %v2488
    %v2528 = vunpack.c.l.b16 %v2489
    %v2529 = vunpack.c.l.b16 %v2490
    %v2530 = vpack.c.b16 %v2515, %v2514
    %v2531 = vpack.c.b16 %v2517, %v2516
    %v2532 = vpack.c.b16 %v2519, %v2518
    %v2533 = vpack.c.b16 %v2521, %v2520
    %v2534 = vpack.c.b16 %v2523, %v2522
    %v2535 = vpack.c.b16 %v2525, %v2524
    %v2536 = vpack.c.b16 %v2527, %v2526
    %v2537 = vpack.c.b16 %v2529, %v2528
    %2546 = vmatprep.subr.bf16.mxu0 0
    %2547 = vmatpush1.bf16.msra.mxu0 %v2537
    %2548 = vmatprep.subr.bf16.mxu0 0
    %2549 = vmatpush1.bf16.msra.mxu0 %v2536
    %2550 = vmatprep.subr.bf16.mxu0 0
    %2551 = vmatpush1.bf16.msra.mxu0 %v2535
    %2552 = vmatprep.subr.bf16.mxu0 0
    %2553 = vmatpush1.bf16.msra.mxu0 %v2534
    %2554 = vmatprep.subr.bf16.mxu0 0
    %2555 = vmatpush1.bf16.msra.mxu0 %v2533
    %2556 = vmatprep.subr.bf16.mxu0 0
    %2557 = vmatpush1.bf16.msra.mxu0 %v2532
    %2558 = vmatprep.subr.bf16.mxu0 0
    %2559 = vmatpush1.bf16.msra.mxu0 %v2531
    %2560 = vmatprep.subr.bf16.mxu0 0
    %2561 = vmatpush1.bf16.msra.mxu0 %v2530
    %2562 = vmatprep.subr.bf16.mxu0 0
    %2563 = vmatpush2.bf16.msra.mxu0 0
    %2564 = vmatprep.subr.bf16.mxu0 0
    %2565 = vmatpush2.bf16.msra.mxu0 0
    %2566 = vmatprep.subr.bf16.mxu0 0
    %2567 = vmatpush2.bf16.msra.mxu0 0
    %2568 = vmatprep.subr.bf16.mxu0 0
    %2569 = vmatpush2.bf16.msra.mxu0 0
    %2570 = vmatprep.subr.bf16.mxu0 0
    %2571 = vmatpush2.bf16.msra.mxu0 0
    %2572 = vmatprep.subr.bf16.mxu0 0
    %2573 = vmatpush2.bf16.msra.mxu0 0
    %2574 = vmatprep.subr.bf16.mxu0 0
    %2575 = vmatpush2.bf16.msra.mxu0 0
    %2576 = vmatprep.subr.bf16.mxu0 0
    %2577 = vmatpush2.bf16.msra.mxu0 0
    %2578 = vmatprep.mubr.bf16.mxu0 0
    %2579 = vmatmul.mubr.bf16.gmra.mxu0 %v2451
    %v2580 = vpop.f32.mrf.mxu0
    %v2581 = vadd.f32 %v2496, %v2580
    %v2582 = vpop.f32.mrf.mxu0
    %v2583 = vpop.f32.mrf.mxu0
    %v2584 = vadd.f32 %v2496, %v2583
    %v2585 = vpop.f32.mrf.mxu0
    %2586 = vmatprep.mubr.bf16.mxu0 0
    %2587 = vmatmul.mubr.bf16.gmra.mxu0 %v2452
    %v2588 = vpop.f32.mrf.mxu0
    %v2589 = vadd.f32 %v2496, %v2588
    %v2590 = vpop.f32.mrf.mxu0
    %v2591 = vpop.f32.mrf.mxu0
    %v2592 = vadd.f32 %v2496, %v2591
    %v2593 = vpop.f32.mrf.mxu0
    %2594 = vmatprep.mubr.bf16.mxu0 0
    %2595 = vmatmul.mubr.bf16.gmra.mxu0 %v2453
    %v2596 = vpop.f32.mrf.mxu0
    %v2597 = vadd.f32 %v2496, %v2596
    %v2598 = vpop.f32.mrf.mxu0
    %v2599 = vpop.f32.mrf.mxu0
    %v2600 = vadd.f32 %v2496, %v2599
    %v2601 = vpop.f32.mrf.mxu0
    %2602 = vmatprep.mubr.bf16.mxu0 0
    %2603 = vmatmul.mubr.bf16.gmra.mxu0 %v2454
    %v2604 = vpop.f32.mrf.mxu0
    %v2605 = vadd.f32 %v2496, %v2604
    %v2606 = vpop.f32.mrf.mxu0
    %v2607 = vpop.f32.mrf.mxu0
    %v2608 = vadd.f32 %v2496, %v2607
    %v2609 = vpop.f32.mrf.mxu0
    %2610 = vmatprep.mubr.bf16.mxu0 0
    %2611 = vmatmul.mubr.bf16.gmra.mxu0 %v2455
    %v2612 = vpop.f32.mrf.mxu0
    %v2613 = vadd.f32 %v2496, %v2612
    %v2614 = vpop.f32.mrf.mxu0
    %v2615 = vpop.f32.mrf.mxu0
    %v2616 = vadd.f32 %v2496, %v2615
    %v2617 = vpop.f32.mrf.mxu0
    %2618 = vmatprep.mubr.bf16.mxu0 0
    %2619 = vmatmul.mubr.bf16.gmra.mxu0 %v2456
    %v2620 = vpop.f32.mrf.mxu0
    %v2621 = vadd.f32 %v2496, %v2620
    %v2622 = vpop.f32.mrf.mxu0
    %v2623 = vpop.f32.mrf.mxu0
    %v2624 = vadd.f32 %v2496, %v2623
    %v2625 = vpop.f32.mrf.mxu0
    %2626 = vmatprep.mubr.bf16.mxu0 0
    %2627 = vmatmul.mubr.bf16.gmra.mxu0 %v2457
    %v2628 = vpop.f32.mrf.mxu0
    %v2629 = vadd.f32 %v2496, %v2628
    %v2630 = vpop.f32.mrf.mxu0
    %v2631 = vpop.f32.mrf.mxu0
    %v2632 = vadd.f32 %v2496, %v2631
    %v2633 = vpop.f32.mrf.mxu0
    %2634 = vmatprep.mubr.bf16.mxu0 0
    %2635 = vmatmul.mubr.bf16.gmra.mxu0 %v2458
    %v2636 = vpop.f32.mrf.mxu0
    %v2637 = vadd.f32 %v2496, %v2636
    %v2638 = vpop.f32.mrf.mxu0
    %v2639 = vpop.f32.mrf.mxu0
    %v2640 = vadd.f32 %v2496, %v2639
    %v2641 = vpop.f32.mrf.mxu0
    %2642 = vmatprep.mubr.bf16.mxu0 0
    %2643 = vmatmul.mubr.bf16.gmra.mxu0 %v2459
    %v2644 = vpop.f32.mrf.mxu0
    %v2645 = vadd.f32 %v2496, %v2644
    %v2646 = vpop.f32.mrf.mxu0
    %v2647 = vpop.f32.mrf.mxu0
    %v2648 = vadd.f32 %v2496, %v2647
    %v2649 = vpop.f32.mrf.mxu0
    %2650 = vmatprep.mubr.bf16.mxu0 0
    %2651 = vmatmul.mubr.bf16.gmra.mxu0 %v2460
    %v2652 = vpop.f32.mrf.mxu0
    %v2653 = vadd.f32 %v2496, %v2652
    %v2654 = vpop.f32.mrf.mxu0
    %v2655 = vpop.f32.mrf.mxu0
    %v2656 = vadd.f32 %v2496, %v2655
    %v2657 = vpop.f32.mrf.mxu0
    %2658 = vmatprep.mubr.bf16.mxu0 0
    %2659 = vmatmul.mubr.bf16.gmra.mxu0 %v2461
    %v2660 = vpop.f32.mrf.mxu0
    %v2661 = vadd.f32 %v2496, %v2660
    %v2662 = vpop.f32.mrf.mxu0
    %v2663 = vpop.f32.mrf.mxu0
    %v2664 = vadd.f32 %v2496, %v2663
    %v2665 = vpop.f32.mrf.mxu0
    %2666 = vmatprep.mubr.bf16.mxu0 0
    %2667 = vmatmul.mubr.bf16.gmra.mxu0 %v2462
    %v2668 = vpop.f32.mrf.mxu0
    %v2669 = vadd.f32 %v2496, %v2668
    %v2670 = vpop.f32.mrf.mxu0
    %v2671 = vpop.f32.mrf.mxu0
    %v2672 = vadd.f32 %v2496, %v2671
    %v2673 = vpop.f32.mrf.mxu0
    %2674 = vmatprep.mubr.bf16.mxu0 0
    %2675 = vmatmul.mubr.bf16.gmra.mxu0 %v2463
    %v2676 = vpop.f32.mrf.mxu0
    %v2677 = vadd.f32 %v2496, %v2676
    %v2678 = vpop.f32.mrf.mxu0
    %v2679 = vpop.f32.mrf.mxu0
    %v2680 = vadd.f32 %v2496, %v2679
    %v2681 = vpop.f32.mrf.mxu0
    %2682 = vmatprep.mubr.bf16.mxu0 0
    %2683 = vmatmul.mubr.bf16.gmra.mxu0 %v2464
    %v2684 = vpop.f32.mrf.mxu0
    %v2685 = vadd.f32 %v2496, %v2684
    %v2686 = vpop.f32.mrf.mxu0
    %v2687 = vpop.f32.mrf.mxu0
    %v2688 = vadd.f32 %v2496, %v2687
    %v2689 = vpop.f32.mrf.mxu0
    %2690 = vmatprep.mubr.bf16.mxu0 0
    %2691 = vmatmul.mubr.bf16.gmra.mxu0 %v2465
    %v2692 = vpop.f32.mrf.mxu0
    %v2693 = vadd.f32 %v2496, %v2692
    %v2694 = vpop.f32.mrf.mxu0
    %v2695 = vpop.f32.mrf.mxu0
    %v2696 = vadd.f32 %v2496, %v2695
    %v2697 = vpop.f32.mrf.mxu0
    %2698 = vmatprep.mubr.bf16.mxu0 0
    %2699 = vmatmul.mubr.bf16.gmra.mxu0 %v2466
    %v2700 = vpop.f32.mrf.mxu0
    %v2701 = vadd.f32 %v2496, %v2700
    %v2702 = vpop.f32.mrf.mxu0
    %v2703 = vpop.f32.mrf.mxu0
    %v2704 = vadd.f32 %v2496, %v2703
    %v2705 = vpop.f32.mrf.mxu0
    %2706 = vmatprep.mubr.bf16.mxu0 0
    %2707 = vmatmul.mubr.bf16.gmra.mxu0 %v2467
    %v2708 = vpop.f32.mrf.mxu0
    %v2709 = vadd.f32 %v2496, %v2708
    %v2710 = vpop.f32.mrf.mxu0
    %v2711 = vpop.f32.mrf.mxu0
    %v2712 = vadd.f32 %v2496, %v2711
    %v2713 = vpop.f32.mrf.mxu0
    %2714 = vmatprep.mubr.bf16.mxu0 0
    %2715 = vmatmul.mubr.bf16.gmra.mxu0 %v2468
    %v2716 = vpop.f32.mrf.mxu0
    %v2717 = vadd.f32 %v2496, %v2716
    %v2718 = vpop.f32.mrf.mxu0
    %v2719 = vpop.f32.mrf.mxu0
    %v2720 = vadd.f32 %v2496, %v2719
    %v2721 = vpop.f32.mrf.mxu0
    %2722 = vmatprep.mubr.bf16.mxu0 0
    %2723 = vmatmul.mubr.bf16.gmra.mxu0 %v2469
    %v2724 = vpop.f32.mrf.mxu0
    %v2725 = vadd.f32 %v2496, %v2724
    %v2726 = vpop.f32.mrf.mxu0
    %v2727 = vpop.f32.mrf.mxu0
    %v2728 = vadd.f32 %v2496, %v2727
    %v2729 = vpop.f32.mrf.mxu0
    %2730 = vmatprep.mubr.bf16.mxu0 0
    %2731 = vmatmul.mubr.bf16.gmra.mxu0 %v2470
    %v2732 = vpop.f32.mrf.mxu0
    %v2733 = vadd.f32 %v2496, %v2732
    %v2734 = vpop.f32.mrf.mxu0
    %v2735 = vpop.f32.mrf.mxu0
    %v2736 = vadd.f32 %v2496, %v2735
    %v2737 = vpop.f32.mrf.mxu0
    %2738 = vmatprep.mubr.bf16.mxu0 0
    %2739 = vmatmul.mubr.bf16.gmra.mxu0 %v2471
    %v2740 = vpop.f32.mrf.mxu0
    %v2741 = vadd.f32 %v2496, %v2740
    %v2742 = vpop.f32.mrf.mxu0
    %v2743 = vpop.f32.mrf.mxu0
    %v2744 = vadd.f32 %v2496, %v2743
    %v2745 = vpop.f32.mrf.mxu0
    %2746 = vmatprep.mubr.bf16.mxu0 0
    %2747 = vmatmul.mubr.bf16.gmra.mxu0 %v2472
    %v2748 = vpop.f32.mrf.mxu0
    %v2749 = vadd.f32 %v2496, %v2748
    %v2750 = vpop.f32.mrf.mxu0
    %v2751 = vpop.f32.mrf.mxu0
    %v2752 = vadd.f32 %v2496, %v2751
    %v2753 = vpop.f32.mrf.mxu0
    %2754 = vmatprep.mubr.bf16.mxu0 0
    %2755 = vmatmul.mubr.bf16.gmra.mxu0 %v2473
    %v2756 = vpop.f32.mrf.mxu0
    %v2757 = vadd.f32 %v2496, %v2756
    %v2758 = vpop.f32.mrf.mxu0
    %v2759 = vpop.f32.mrf.mxu0
    %v2760 = vadd.f32 %v2496, %v2759
    %v2761 = vpop.f32.mrf.mxu0
    %2762 = vmatprep.mubr.bf16.mxu0 0
    %2763 = vmatmul.mubr.bf16.gmra.mxu0 %v2474
    %v2764 = vpop.f32.mrf.mxu0
    %v2765 = vadd.f32 %v2496, %v2764
    %v2766 = vpop.f32.mrf.mxu0
    %v2767 = vpop.f32.mrf.mxu0
    %v2768 = vadd.f32 %v2496, %v2767
    %v2769 = vpop.f32.mrf.mxu0
    %2770 = vdwg.mxu0
    %v2771 = vmax.f32 %v2581, 0.0
    %v2772 = vmax.f32 %v2584, 0.0
    %v2773 = vmax.f32 %v2589, 0.0
    %v2774 = vmax.f32 %v2592, 0.0
    %v2775 = vmax.f32 %v2597, 0.0
    %v2776 = vmax.f32 %v2600, 0.0
    %v2777 = vmax.f32 %v2605, 0.0
    %v2778 = vmax.f32 %v2608, 0.0
    %v2779 = vmax.f32 %v2613, 0.0
    %v2780 = vmax.f32 %v2616, 0.0
    %v2781 = vmax.f32 %v2621, 0.0
    %v2782 = vmax.f32 %v2624, 0.0
    %v2783 = vmax.f32 %v2629, 0.0
    %v2784 = vmax.f32 %v2632, 0.0
    %v2785 = vmax.f32 %v2637, 0.0
    %v2786 = vmax.f32 %v2640, 0.0
    %v2787 = vmax.f32 %v2645, 0.0
    %v2788 = vmax.f32 %v2648, 0.0
    %v2789 = vmax.f32 %v2653, 0.0
    %v2790 = vmax.f32 %v2656, 0.0
    %v2791 = vmax.f32 %v2661, 0.0
    %v2792 = vmax.f32 %v2664, 0.0
    %v2793 = vmax.f32 %v2669, 0.0
    %v2794 = vmax.f32 %v2672, 0.0
    %v2795 = vmax.f32 %v2677, 0.0
    %v2796 = vmax.f32 %v2680, 0.0
    %v2797 = vmax.f32 %v2685, 0.0
    %v2798 = vmax.f32 %v2688, 0.0
    %v2799 = vmax.f32 %v2693, 0.0
    %v2800 = vmax.f32 %v2696, 0.0
    %v2801 = vmax.f32 %v2701, 0.0
    %v2802 = vmax.f32 %v2704, 0.0
    %v2803 = vmax.f32 %v2709, 0.0
    %v2804 = vmax.f32 %v2712, 0.0
    %v2805 = vmax.f32 %v2717, 0.0
    %v2806 = vmax.f32 %v2720, 0.0
    %v2807 = vmax.f32 %v2725, 0.0
    %v2808 = vmax.f32 %v2728, 0.0
    %v2809 = vmax.f32 %v2733, 0.0
    %v2810 = vmax.f32 %v2736, 0.0
    %v2811 = vmax.f32 %v2741, 0.0
    %v2812 = vmax.f32 %v2744, 0.0
    %v2813 = vmax.f32 %v2749, 0.0
    %v2814 = vmax.f32 %v2752, 0.0
    %v2815 = vmax.f32 %v2757, 0.0
    %v2816 = vmax.f32 %v2760, 0.0
    %v2817 = vmax.f32 %v2765, 0.0
    %v2818 = vmax.f32 %v2768, 0.0
    %v2819 = vpack.c.bf16 %v2772, %v2771
    %v2820 = vpack.c.bf16 %v2774, %v2773
    %v2821 = vpack.c.bf16 %v2776, %v2775
    %v2822 = vpack.c.bf16 %v2778, %v2777
    %v2823 = vpack.c.bf16 %v2780, %v2779
    %v2824 = vpack.c.bf16 %v2782, %v2781
    %v2825 = vpack.c.bf16 %v2784, %v2783
    %v2826 = vpack.c.bf16 %v2786, %v2785
    %v2827 = vpack.c.bf16 %v2788, %v2787
    %v2828 = vpack.c.bf16 %v2790, %v2789
    %v2829 = vpack.c.bf16 %v2792, %v2791
    %v2830 = vpack.c.bf16 %v2794, %v2793
    %v2831 = vpack.c.bf16 %v2796, %v2795
    %v2832 = vpack.c.bf16 %v2798, %v2797
    %v2833 = vpack.c.bf16 %v2800, %v2799
    %v2834 = vpack.c.bf16 %v2802, %v2801
    %v2835 = vpack.c.bf16 %v2804, %v2803
    %v2836 = vpack.c.bf16 %v2806, %v2805
    %v2837 = vpack.c.bf16 %v2808, %v2807
    %v2838 = vpack.c.bf16 %v2810, %v2809
    %v2839 = vpack.c.bf16 %v2812, %v2811
    %v2840 = vpack.c.bf16 %v2814, %v2813
    %v2841 = vpack.c.bf16 %v2816, %v2815
    %v2842 = vpack.c.bf16 %v2818, %v2817
    %v2843 = vld [vmem:[#allocation11] sm:$0xf]
    %v2844 = vld [vmem:[#allocation11 + $0x4] sm:$0xf]
    %v2845 = vld [vmem:[#allocation11 + $0x8] sm:$0xf]
    %v2846 = vld [vmem:[#allocation11 + $0xc] sm:$0xf]
    %v2847 = vld [vmem:[#allocation11 + $0x10] sm:$0xf]
    %v2848 = vld [vmem:[#allocation11 + $0x14] sm:$0xf]
    %v2849 = vld [vmem:[#allocation11 + $0x18] sm:$0xf]
    %v2850 = vld [vmem:[#allocation11 + $0x1c] sm:$0xf]
    %v2851 = vld [vmem:[#allocation11 + $0x20] sm:$0xf]
    %v2852 = vld [vmem:[#allocation11 + $0x24] sm:$0xf]
    %v2853 = vld [vmem:[#allocation11 + $0x28] sm:$0xf]
    %v2854 = vld [vmem:[#allocation11 + $0x2c] sm:$0xf]
    %v2855 = vld [vmem:[#allocation11 + $0x30] sm:$0xf]
    %v2856 = vld [vmem:[#allocation11 + $0x34] sm:$0xf]
    %v2857 = vld [vmem:[#allocation11 + $0x38] sm:$0xf]
    %v2858 = vld [vmem:[#allocation11 + $0x3c] sm:$0xf]
    %v2859 = vld [vmem:[%s9] sm:$0x1]
    %v2861 = vlaneseq
    %v2862 = vshrl.u32 %v2861, 7
    %v2863 = vsub.s32 0, %v2862
    %v2864 = vrot.slane %v2859, %v2863
    %v2882 = vunpack.c.l.b16 %v2843
    %v2883 = vunpack.c.l.b16 %v2844
    %v2884 = vunpack.c.l.b16 %v2845
    %v2885 = vunpack.c.l.b16 %v2846
    %v2886 = vunpack.c.l.b16 %v2847
    %v2887 = vunpack.c.l.b16 %v2848
    %v2888 = vunpack.c.l.b16 %v2849
    %v2889 = vunpack.c.l.b16 %v2850
    %v2890 = vunpack.c.l.b16 %v2851
    %v2891 = vunpack.c.l.b16 %v2852
    %v2892 = vunpack.c.l.b16 %v2853
    %v2893 = vunpack.c.l.b16 %v2854
    %v2894 = vunpack.c.l.b16 %v2855
    %v2895 = vunpack.c.l.b16 %v2856
    %v2896 = vunpack.c.l.b16 %v2857
    %v2897 = vunpack.c.l.b16 %v2858
    %v2898 = vpack.c.b16 %v2883, %v2882
    %v2899 = vpack.c.b16 %v2885, %v2884
    %v2900 = vpack.c.b16 %v2887, %v2886
    %v2901 = vpack.c.b16 %v2889, %v2888
    %v2902 = vpack.c.b16 %v2891, %v2890
    %v2903 = vpack.c.b16 %v2893, %v2892
    %v2904 = vpack.c.b16 %v2895, %v2894
    %v2905 = vpack.c.b16 %v2897, %v2896
    %2914 = vmatprep.subr.bf16.mxu0 0
    %2915 = vmatpush1.bf16.msra.mxu0 %v2905
    %2916 = vmatprep.subr.bf16.mxu0 0
    %2917 = vmatpush1.bf16.msra.mxu0 %v2904
    %2918 = vmatprep.subr.bf16.mxu0 0
    %2919 = vmatpush1.bf16.msra.mxu0 %v2903
    %2920 = vmatprep.subr.bf16.mxu0 0
    %2921 = vmatpush1.bf16.msra.mxu0 %v2902
    %2922 = vmatprep.subr.bf16.mxu0 0
    %2923 = vmatpush1.bf16.msra.mxu0 %v2901
    %2924 = vmatprep.subr.bf16.mxu0 0
    %2925 = vmatpush1.bf16.msra.mxu0 %v2900
    %2926 = vmatprep.subr.bf16.mxu0 0
    %2927 = vmatpush1.bf16.msra.mxu0 %v2899
    %2928 = vmatprep.subr.bf16.mxu0 0
    %2929 = vmatpush1.bf16.msra.mxu0 %v2898
    %2930 = vmatprep.subr.bf16.mxu0 0
    %2931 = vmatpush2.bf16.msra.mxu0 0
    %2932 = vmatprep.subr.bf16.mxu0 0
    %2933 = vmatpush2.bf16.msra.mxu0 0
    %2934 = vmatprep.subr.bf16.mxu0 0
    %2935 = vmatpush2.bf16.msra.mxu0 0
    %2936 = vmatprep.subr.bf16.mxu0 0
    %2937 = vmatpush2.bf16.msra.mxu0 0
    %2938 = vmatprep.subr.bf16.mxu0 0
    %2939 = vmatpush2.bf16.msra.mxu0 0
    %2940 = vmatprep.subr.bf16.mxu0 0
    %2941 = vmatpush2.bf16.msra.mxu0 0
    %2942 = vmatprep.subr.bf16.mxu0 0
    %2943 = vmatpush2.bf16.msra.mxu0 0
    %2944 = vmatprep.subr.bf16.mxu0 0
    %2945 = vmatpush2.bf16.msra.mxu0 0
    %2946 = vmatprep.mubr.bf16.mxu0 0
    %2947 = vmatmul.mubr.bf16.gmra.mxu0 %v2819
    %v2948 = vpop.f32.mrf.mxu0
    %v2949 = vadd.f32 %v2864, %v2948
    %v2950 = vpop.f32.mrf.mxu0
    %v2951 = vpop.f32.mrf.mxu0
    %v2952 = vadd.f32 %v2864, %v2951
    %v2953 = vpop.f32.mrf.mxu0
    %2954 = vmatprep.mubr.bf16.mxu0 0
    %2955 = vmatmul.mubr.bf16.gmra.mxu0 %v2820
    %v2956 = vpop.f32.mrf.mxu0
    %v2957 = vadd.f32 %v2864, %v2956
    %v2958 = vpop.f32.mrf.mxu0
    %v2959 = vpop.f32.mrf.mxu0
    %v2960 = vadd.f32 %v2864, %v2959
    %v2961 = vpop.f32.mrf.mxu0
    %2962 = vmatprep.mubr.bf16.mxu0 0
    %2963 = vmatmul.mubr.bf16.gmra.mxu0 %v2821
    %v2964 = vpop.f32.mrf.mxu0
    %v2965 = vadd.f32 %v2864, %v2964
    %v2966 = vpop.f32.mrf.mxu0
    %v2967 = vpop.f32.mrf.mxu0
    %v2968 = vadd.f32 %v2864, %v2967
    %v2969 = vpop.f32.mrf.mxu0
    %2970 = vmatprep.mubr.bf16.mxu0 0
    %2971 = vmatmul.mubr.bf16.gmra.mxu0 %v2822
    %v2972 = vpop.f32.mrf.mxu0
    %v2973 = vadd.f32 %v2864, %v2972
    %v2974 = vpop.f32.mrf.mxu0
    %v2975 = vpop.f32.mrf.mxu0
    %v2976 = vadd.f32 %v2864, %v2975
    %v2977 = vpop.f32.mrf.mxu0
    %2978 = vmatprep.mubr.bf16.mxu0 0
    %2979 = vmatmul.mubr.bf16.gmra.mxu0 %v2823
    %v2980 = vpop.f32.mrf.mxu0
    %v2981 = vadd.f32 %v2864, %v2980
    %v2982 = vpop.f32.mrf.mxu0
    %v2983 = vpop.f32.mrf.mxu0
    %v2984 = vadd.f32 %v2864, %v2983
    %v2985 = vpop.f32.mrf.mxu0
    %2986 = vmatprep.mubr.bf16.mxu0 0
    %2987 = vmatmul.mubr.bf16.gmra.mxu0 %v2824
    %v2988 = vpop.f32.mrf.mxu0
    %v2989 = vadd.f32 %v2864, %v2988
    %v2990 = vpop.f32.mrf.mxu0
    %v2991 = vpop.f32.mrf.mxu0
    %v2992 = vadd.f32 %v2864, %v2991
    %v2993 = vpop.f32.mrf.mxu0
    %2994 = vmatprep.mubr.bf16.mxu0 0
    %2995 = vmatmul.mubr.bf16.gmra.mxu0 %v2825
    %v2996 = vpop.f32.mrf.mxu0
    %v2997 = vadd.f32 %v2864, %v2996
    %v2998 = vpop.f32.mrf.mxu0
    %v2999 = vpop.f32.mrf.mxu0
    %v3000 = vadd.f32 %v2864, %v2999
    %v3001 = vpop.f32.mrf.mxu0
    %3002 = vmatprep.mubr.bf16.mxu0 0
    %3003 = vmatmul.mubr.bf16.gmra.mxu0 %v2826
    %v3004 = vpop.f32.mrf.mxu0
    %v3005 = vadd.f32 %v2864, %v3004
    %v3006 = vpop.f32.mrf.mxu0
    %v3007 = vpop.f32.mrf.mxu0
    %v3008 = vadd.f32 %v2864, %v3007
    %v3009 = vpop.f32.mrf.mxu0
    %3010 = vmatprep.mubr.bf16.mxu0 0
    %3011 = vmatmul.mubr.bf16.gmra.mxu0 %v2827
    %v3012 = vpop.f32.mrf.mxu0
    %v3013 = vadd.f32 %v2864, %v3012
    %v3014 = vpop.f32.mrf.mxu0
    %v3015 = vpop.f32.mrf.mxu0
    %v3016 = vadd.f32 %v2864, %v3015
    %v3017 = vpop.f32.mrf.mxu0
    %3018 = vmatprep.mubr.bf16.mxu0 0
    %3019 = vmatmul.mubr.bf16.gmra.mxu0 %v2828
    %v3020 = vpop.f32.mrf.mxu0
    %v3021 = vadd.f32 %v2864, %v3020
    %v3022 = vpop.f32.mrf.mxu0
    %v3023 = vpop.f32.mrf.mxu0
    %v3024 = vadd.f32 %v2864, %v3023
    %v3025 = vpop.f32.mrf.mxu0
    %3026 = vmatprep.mubr.bf16.mxu0 0
    %3027 = vmatmul.mubr.bf16.gmra.mxu0 %v2829
    %v3028 = vpop.f32.mrf.mxu0
    %v3029 = vadd.f32 %v2864, %v3028
    %v3030 = vpop.f32.mrf.mxu0
    %v3031 = vpop.f32.mrf.mxu0
    %v3032 = vadd.f32 %v2864, %v3031
    %v3033 = vpop.f32.mrf.mxu0
    %3034 = vmatprep.mubr.bf16.mxu0 0
    %3035 = vmatmul.mubr.bf16.gmra.mxu0 %v2830
    %v3036 = vpop.f32.mrf.mxu0
    %v3037 = vadd.f32 %v2864, %v3036
    %v3038 = vpop.f32.mrf.mxu0
    %v3039 = vpop.f32.mrf.mxu0
    %v3040 = vadd.f32 %v2864, %v3039
    %v3041 = vpop.f32.mrf.mxu0
    %3042 = vmatprep.mubr.bf16.mxu0 0
    %3043 = vmatmul.mubr.bf16.gmra.mxu0 %v2831
    %v3044 = vpop.f32.mrf.mxu0
    %v3045 = vadd.f32 %v2864, %v3044
    %v3046 = vpop.f32.mrf.mxu0
    %v3047 = vpop.f32.mrf.mxu0
    %v3048 = vadd.f32 %v2864, %v3047
    %v3049 = vpop.f32.mrf.mxu0
    %3050 = vmatprep.mubr.bf16.mxu0 0
    %3051 = vmatmul.mubr.bf16.gmra.mxu0 %v2832
    %v3052 = vpop.f32.mrf.mxu0
    %v3053 = vadd.f32 %v2864, %v3052
    %v3054 = vpop.f32.mrf.mxu0
    %v3055 = vpop.f32.mrf.mxu0
    %v3056 = vadd.f32 %v2864, %v3055
    %v3057 = vpop.f32.mrf.mxu0
    %3058 = vmatprep.mubr.bf16.mxu0 0
    %3059 = vmatmul.mubr.bf16.gmra.mxu0 %v2833
    %v3060 = vpop.f32.mrf.mxu0
    %v3061 = vadd.f32 %v2864, %v3060
    %v3062 = vpop.f32.mrf.mxu0
    %v3063 = vpop.f32.mrf.mxu0
    %v3064 = vadd.f32 %v2864, %v3063
    %v3065 = vpop.f32.mrf.mxu0
    %3066 = vmatprep.mubr.bf16.mxu0 0
    %3067 = vmatmul.mubr.bf16.gmra.mxu0 %v2834
    %v3068 = vpop.f32.mrf.mxu0
    %v3069 = vadd.f32 %v2864, %v3068
    %v3070 = vpop.f32.mrf.mxu0
    %v3071 = vpop.f32.mrf.mxu0
    %v3072 = vadd.f32 %v2864, %v3071
    %v3073 = vpop.f32.mrf.mxu0
    %3074 = vmatprep.mubr.bf16.mxu0 0
    %3075 = vmatmul.mubr.bf16.gmra.mxu0 %v2835
    %v3076 = vpop.f32.mrf.mxu0
    %v3077 = vadd.f32 %v2864, %v3076
    %v3078 = vpop.f32.mrf.mxu0
    %v3079 = vpop.f32.mrf.mxu0
    %v3080 = vadd.f32 %v2864, %v3079
    %v3081 = vpop.f32.mrf.mxu0
    %3082 = vmatprep.mubr.bf16.mxu0 0
    %3083 = vmatmul.mubr.bf16.gmra.mxu0 %v2836
    %v3084 = vpop.f32.mrf.mxu0
    %v3085 = vadd.f32 %v2864, %v3084
    %v3086 = vpop.f32.mrf.mxu0
    %v3087 = vpop.f32.mrf.mxu0
    %v3088 = vadd.f32 %v2864, %v3087
    %v3089 = vpop.f32.mrf.mxu0
    %3090 = vmatprep.mubr.bf16.mxu0 0
    %3091 = vmatmul.mubr.bf16.gmra.mxu0 %v2837
    %v3092 = vpop.f32.mrf.mxu0
    %v3093 = vadd.f32 %v2864, %v3092
    %v3094 = vpop.f32.mrf.mxu0
    %v3095 = vpop.f32.mrf.mxu0
    %v3096 = vadd.f32 %v2864, %v3095
    %v3097 = vpop.f32.mrf.mxu0
    %3098 = vmatprep.mubr.bf16.mxu0 0
    %3099 = vmatmul.mubr.bf16.gmra.mxu0 %v2838
    %v3100 = vpop.f32.mrf.mxu0
    %v3101 = vadd.f32 %v2864, %v3100
    %v3102 = vpop.f32.mrf.mxu0
    %v3103 = vpop.f32.mrf.mxu0
    %v3104 = vadd.f32 %v2864, %v3103
    %v3105 = vpop.f32.mrf.mxu0
    %3106 = vmatprep.mubr.bf16.mxu0 0
    %3107 = vmatmul.mubr.bf16.gmra.mxu0 %v2839
    %v3108 = vpop.f32.mrf.mxu0
    %v3109 = vadd.f32 %v2864, %v3108
    %v3110 = vpop.f32.mrf.mxu0
    %v3111 = vpop.f32.mrf.mxu0
    %v3112 = vadd.f32 %v2864, %v3111
    %v3113 = vpop.f32.mrf.mxu0
    %3114 = vmatprep.mubr.bf16.mxu0 0
    %3115 = vmatmul.mubr.bf16.gmra.mxu0 %v2840
    %v3116 = vpop.f32.mrf.mxu0
    %v3117 = vadd.f32 %v2864, %v3116
    %v3118 = vpop.f32.mrf.mxu0
    %v3119 = vpop.f32.mrf.mxu0
    %v3120 = vadd.f32 %v2864, %v3119
    %v3121 = vpop.f32.mrf.mxu0
    %3122 = vmatprep.mubr.bf16.mxu0 0
    %3123 = vmatmul.mubr.bf16.gmra.mxu0 %v2841
    %v3124 = vpop.f32.mrf.mxu0
    %v3125 = vadd.f32 %v2864, %v3124
    %v3126 = vpop.f32.mrf.mxu0
    %v3127 = vpop.f32.mrf.mxu0
    %v3128 = vadd.f32 %v2864, %v3127
    %v3129 = vpop.f32.mrf.mxu0
    %3130 = vmatprep.mubr.bf16.mxu0 0
    %3131 = vmatmul.mubr.bf16.gmra.mxu0 %v2842
    %v3132 = vpop.f32.mrf.mxu0
    %v3133 = vadd.f32 %v2864, %v3132
    %v3134 = vpop.f32.mrf.mxu0
    %v3135 = vpop.f32.mrf.mxu0
    %v3136 = vadd.f32 %v2864, %v3135
    %v3137 = vpop.f32.mrf.mxu0
    %3138 = vdwg.mxu0
    %v3139 = vlaneseq
    %v3140 = vand.u32 %v3139, 127
    %vm3141 = vcmp.lt.s32.totalorder %v3140, 4
    %v3142 = vsel %vm3141, %v2949, -1e+30
    %v3143 = vsel %vm3141, %v2952, -1e+30
    %v3144 = vsel %vm3141, %v2957, -1e+30
    %v3145 = vsel %vm3141, %v2960, -1e+30
    %v3146 = vsel %vm3141, %v2965, -1e+30
    %v3147 = vsel %vm3141, %v2968, -1e+30
    %v3148 = vsel %vm3141, %v2973, -1e+30
    %v3149 = vsel %vm3141, %v2976, -1e+30
    %v3150 = vsel %vm3141, %v2981, -1e+30
    %v3151 = vsel %vm3141, %v2984, -1e+30
    %v3152 = vsel %vm3141, %v2989, -1e+30
    %v3153 = vsel %vm3141, %v2992, -1e+30
    %v3154 = vsel %vm3141, %v2997, -1e+30
    %v3155 = vsel %vm3141, %v3000, -1e+30
    %v3156 = vsel %vm3141, %v3005, -1e+30
    %v3157 = vsel %vm3141, %v3008, -1e+30
    %v3158 = vsel %vm3141, %v3013, -1e+30
    %v3159 = vsel %vm3141, %v3016, -1e+30
    %v3160 = vsel %vm3141, %v3021, -1e+30
    %v3161 = vsel %vm3141, %v3024, -1e+30
    %v3162 = vsel %vm3141, %v3029, -1e+30
    %v3163 = vsel %vm3141, %v3032, -1e+30
    %v3164 = vsel %vm3141, %v3037, -1e+30
    %v3165 = vsel %vm3141, %v3040, -1e+30
    %v3166 = vsel %vm3141, %v3045, -1e+30
    %v3167 = vsel %vm3141, %v3048, -1e+30
    %v3168 = vsel %vm3141, %v3053, -1e+30
    %v3169 = vsel %vm3141, %v3056, -1e+30
    %v3170 = vsel %vm3141, %v3061, -1e+30
    %v3171 = vsel %vm3141, %v3064, -1e+30
    %v3172 = vsel %vm3141, %v3069, -1e+30
    %v3173 = vsel %vm3141, %v3072, -1e+30
    %v3174 = vsel %vm3141, %v3077, -1e+30
    %v3175 = vsel %vm3141, %v3080, -1e+30
    %v3176 = vsel %vm3141, %v3085, -1e+30
    %v3177 = vsel %vm3141, %v3088, -1e+30
    %v3178 = vsel %vm3141, %v3093, -1e+30
    %v3179 = vsel %vm3141, %v3096, -1e+30
    %v3180 = vsel %vm3141, %v3101, -1e+30
    %v3181 = vsel %vm3141, %v3104, -1e+30
    %v3182 = vsel %vm3141, %v3109, -1e+30
    %v3183 = vsel %vm3141, %v3112, -1e+30
    %v3184 = vsel %vm3141, %v3117, -1e+30
    %v3185 = vsel %vm3141, %v3120, -1e+30
    %v3186 = vsel %vm3141, %v3125, -1e+30
    %v3187 = vsel %vm3141, %v3128, -1e+30
    %v3188 = vsel %vm3141, %v3133, -1e+30
    %v3189 = vsel %vm3141, %v3136, -1e+30
    %3190 = vmax.xlane.f32.xlu0 %v3142
    %v3191 = vpop.xlane.xlu0 %3190
    %3192 = vmax.xlane.f32.xlu0 %v3143
    %v3193 = vpop.xlane.xlu0 %3192
    %3194 = vmax.xlane.f32.xlu0 %v3144
    %v3195 = vpop.xlane.xlu0 %3194
    %3196 = vmax.xlane.f32.xlu0 %v3145
    %v3197 = vpop.xlane.xlu0 %3196
    %3198 = vmax.xlane.f32.xlu0 %v3146
    %v3199 = vpop.xlane.xlu0 %3198
    %3200 = vmax.xlane.f32.xlu0 %v3147
    %v3201 = vpop.xlane.xlu0 %3200
    %3202 = vmax.xlane.f32.xlu0 %v3148
    %v3203 = vpop.xlane.xlu0 %3202
    %3204 = vmax.xlane.f32.xlu0 %v3149
    %v3205 = vpop.xlane.xlu0 %3204
    %3206 = vmax.xlane.f32.xlu0 %v3150
    %v3207 = vpop.xlane.xlu0 %3206
    %3208 = vmax.xlane.f32.xlu0 %v3151
    %v3209 = vpop.xlane.xlu0 %3208
    %3210 = vmax.xlane.f32.xlu0 %v3152
    %v3211 = vpop.xlane.xlu0 %3210
    %3212 = vmax.xlane.f32.xlu0 %v3153
    %v3213 = vpop.xlane.xlu0 %3212
    %3214 = vmax.xlane.f32.xlu0 %v3154
    %v3215 = vpop.xlane.xlu0 %3214
    %3216 = vmax.xlane.f32.xlu0 %v3155
    %v3217 = vpop.xlane.xlu0 %3216
    %3218 = vmax.xlane.f32.xlu0 %v3156
    %v3219 = vpop.xlane.xlu0 %3218
    %3220 = vmax.xlane.f32.xlu0 %v3157
    %v3221 = vpop.xlane.xlu0 %3220
    %3222 = vmax.xlane.f32.xlu0 %v3158
    %v3223 = vpop.xlane.xlu0 %3222
    %3224 = vmax.xlane.f32.xlu0 %v3159
    %v3225 = vpop.xlane.xlu0 %3224
    %3226 = vmax.xlane.f32.xlu0 %v3160
    %v3227 = vpop.xlane.xlu0 %3226
    %3228 = vmax.xlane.f32.xlu0 %v3161
    %v3229 = vpop.xlane.xlu0 %3228
    %3230 = vmax.xlane.f32.xlu0 %v3162
    %v3231 = vpop.xlane.xlu0 %3230
    %3232 = vmax.xlane.f32.xlu0 %v3163
    %v3233 = vpop.xlane.xlu0 %3232
    %3234 = vmax.xlane.f32.xlu0 %v3164
    %v3235 = vpop.xlane.xlu0 %3234
    %3236 = vmax.xlane.f32.xlu0 %v3165
    %v3237 = vpop.xlane.xlu0 %3236
    %3238 = vmax.xlane.f32.xlu0 %v3166
    %v3239 = vpop.xlane.xlu0 %3238
    %3240 = vmax.xlane.f32.xlu0 %v3167
    %v3241 = vpop.xlane.xlu0 %3240
    %3242 = vmax.xlane.f32.xlu0 %v3168
    %v3243 = vpop.xlane.xlu0 %3242
    %3244 = vmax.xlane.f32.xlu0 %v3169
    %v3245 = vpop.xlane.xlu0 %3244
    %3246 = vmax.xlane.f32.xlu0 %v3170
    %v3247 = vpop.xlane.xlu0 %3246
    %3248 = vmax.xlane.f32.xlu0 %v3171
    %v3249 = vpop.xlane.xlu0 %3248
    %3250 = vmax.xlane.f32.xlu0 %v3172
    %v3251 = vpop.xlane.xlu0 %3250
    %3252 = vmax.xlane.f32.xlu0 %v3173
    %v3253 = vpop.xlane.xlu0 %3252
    %3254 = vmax.xlane.f32.xlu0 %v3174
    %v3255 = vpop.xlane.xlu0 %3254
    %3256 = vmax.xlane.f32.xlu0 %v3175
    %v3257 = vpop.xlane.xlu0 %3256
    %3258 = vmax.xlane.f32.xlu0 %v3176
    %v3259 = vpop.xlane.xlu0 %3258
    %3260 = vmax.xlane.f32.xlu0 %v3177
    %v3261 = vpop.xlane.xlu0 %3260
    %3262 = vmax.xlane.f32.xlu0 %v3178
    %v3263 = vpop.xlane.xlu0 %3262
    %3264 = vmax.xlane.f32.xlu0 %v3179
    %v3265 = vpop.xlane.xlu0 %3264
    %3266 = vmax.xlane.f32.xlu0 %v3180
    %v3267 = vpop.xlane.xlu0 %3266
    %3268 = vmax.xlane.f32.xlu0 %v3181
    %v3269 = vpop.xlane.xlu0 %3268
    %3270 = vmax.xlane.f32.xlu0 %v3182
    %v3271 = vpop.xlane.xlu0 %3270
    %3272 = vmax.xlane.f32.xlu0 %v3183
    %v3273 = vpop.xlane.xlu0 %3272
    %3274 = vmax.xlane.f32.xlu0 %v3184
    %v3275 = vpop.xlane.xlu0 %3274
    %3276 = vmax.xlane.f32.xlu0 %v3185
    %v3277 = vpop.xlane.xlu0 %3276
    %3278 = vmax.xlane.f32.xlu0 %v3186
    %v3279 = vpop.xlane.xlu0 %3278
    %3280 = vmax.xlane.f32.xlu0 %v3187
    %v3281 = vpop.xlane.xlu0 %3280
    %3282 = vmax.xlane.f32.xlu0 %v3188
    %v3283 = vpop.xlane.xlu0 %3282
    %3284 = vmax.xlane.f32.xlu0 %v3189
    %v3285 = vpop.xlane.xlu0 %3284
    %v3286 = vsub.f32 %v3142, %v3191
    %v3287 = vsub.f32 %v3143, %v3193
    %v3288 = vsub.f32 %v3144, %v3195
    %v3289 = vsub.f32 %v3145, %v3197
    %v3290 = vsub.f32 %v3146, %v3199
    %v3291 = vsub.f32 %v3147, %v3201
    %v3292 = vsub.f32 %v3148, %v3203
    %v3293 = vsub.f32 %v3149, %v3205
    %v3294 = vsub.f32 %v3150, %v3207
    %v3295 = vsub.f32 %v3151, %v3209
    %v3296 = vsub.f32 %v3152, %v3211
    %v3297 = vsub.f32 %v3153, %v3213
    %v3298 = vsub.f32 %v3154, %v3215
    %v3299 = vsub.f32 %v3155, %v3217
    %v3300 = vsub.f32 %v3156, %v3219
    %v3301 = vsub.f32 %v3157, %v3221
    %v3302 = vsub.f32 %v3158, %v3223
    %v3303 = vsub.f32 %v3159, %v3225
    %v3304 = vsub.f32 %v3160, %v3227
    %v3305 = vsub.f32 %v3161, %v3229
    %v3306 = vsub.f32 %v3162, %v3231
    %v3307 = vsub.f32 %v3163, %v3233
    %v3308 = vsub.f32 %v3164, %v3235
    %v3309 = vsub.f32 %v3165, %v3237
    %v3310 = vsub.f32 %v3166, %v3239
    %v3311 = vsub.f32 %v3167, %v3241
    %v3312 = vsub.f32 %v3168, %v3243
    %v3313 = vsub.f32 %v3169, %v3245
    %v3314 = vsub.f32 %v3170, %v3247
    %v3315 = vsub.f32 %v3171, %v3249
    %v3316 = vsub.f32 %v3172, %v3251
    %v3317 = vsub.f32 %v3173, %v3253
    %v3318 = vsub.f32 %v3174, %v3255
    %v3319 = vsub.f32 %v3175, %v3257
    %v3320 = vsub.f32 %v3176, %v3259
    %v3321 = vsub.f32 %v3177, %v3261
    %v3322 = vsub.f32 %v3178, %v3263
    %v3323 = vsub.f32 %v3179, %v3265
    %v3324 = vsub.f32 %v3180, %v3267
    %v3325 = vsub.f32 %v3181, %v3269
    %v3326 = vsub.f32 %v3182, %v3271
    %v3327 = vsub.f32 %v3183, %v3273
    %v3328 = vsub.f32 %v3184, %v3275
    %v3329 = vsub.f32 %v3185, %v3277
    %v3330 = vsub.f32 %v3186, %v3279
    %v3331 = vsub.f32 %v3187, %v3281
    %v3332 = vsub.f32 %v3188, %v3283
    %v3333 = vsub.f32 %v3189, %v3285
    %v3334 = vmul.f32 %v3286, 1.442695
    %v3335 = vpow.pop %v3334
    %v3336 = vmul.f32 %v3287, 1.442695
    %v3337 = vpow.pop %v3336
    %v3338 = vmul.f32 %v3288, 1.442695
    %v3339 = vpow.pop %v3338
    %v3340 = vmul.f32 %v3289, 1.442695
    %v3341 = vpow.pop %v3340
    %v3342 = vmul.f32 %v3290, 1.442695
    %v3343 = vpow.pop %v3342
    %v3344 = vmul.f32 %v3291, 1.442695
    %v3345 = vpow.pop %v3344
    %v3346 = vmul.f32 %v3292, 1.442695
    %v3347 = vpow.pop %v3346
    %v3348 = vmul.f32 %v3293, 1.442695
    %v3349 = vpow.pop %v3348
    %v3350 = vmul.f32 %v3294, 1.442695
    %v3351 = vpow.pop %v3350
    %v3352 = vmul.f32 %v3295, 1.442695
    %v3353 = vpow.pop %v3352
    %v3354 = vmul.f32 %v3296, 1.442695
    %v3355 = vpow.pop %v3354
    %v3356 = vmul.f32 %v3297, 1.442695
    %v3357 = vpow.pop %v3356
    %v3358 = vmul.f32 %v3298, 1.442695
    %v3359 = vpow.pop %v3358
    %v3360 = vmul.f32 %v3299, 1.442695
    %v3361 = vpow.pop %v3360
    %v3362 = vmul.f32 %v3300, 1.442695
    %v3363 = vpow.pop %v3362
    %v3364 = vmul.f32 %v3301, 1.442695
    %v3365 = vpow.pop %v3364
    %v3366 = vmul.f32 %v3302, 1.442695
    %v3367 = vpow.pop %v3366
    %v3368 = vmul.f32 %v3303, 1.442695
    %v3369 = vpow.pop %v3368
    %v3370 = vmul.f32 %v3304, 1.442695
    %v3371 = vpow.pop %v3370
    %v3372 = vmul.f32 %v3305, 1.442695
    %v3373 = vpow.pop %v3372
    %v3374 = vmul.f32 %v3306, 1.442695
    %v3375 = vpow.pop %v3374
    %v3376 = vmul.f32 %v3307, 1.442695
    %v3377 = vpow.pop %v3376
    %v3378 = vmul.f32 %v3308, 1.442695
    %v3379 = vpow.pop %v3378
    %v3380 = vmul.f32 %v3309, 1.442695
    %v3381 = vpow.pop %v3380
    %v3382 = vmul.f32 %v3310, 1.442695
    %v3383 = vpow.pop %v3382
    %v3384 = vmul.f32 %v3311, 1.442695
    %v3385 = vpow.pop %v3384
    %v3386 = vmul.f32 %v3312, 1.442695
    %v3387 = vpow.pop %v3386
    %v3388 = vmul.f32 %v3313, 1.442695
    %v3389 = vpow.pop %v3388
    %v3390 = vmul.f32 %v3314, 1.442695
    %v3391 = vpow.pop %v3390
    %v3392 = vmul.f32 %v3315, 1.442695
    %v3393 = vpow.pop %v3392
    %v3394 = vmul.f32 %v3316, 1.442695
    %v3395 = vpow.pop %v3394
    %v3396 = vmul.f32 %v3317, 1.442695
    %v3397 = vpow.pop %v3396
    %v3398 = vmul.f32 %v3318, 1.442695
    %v3399 = vpow.pop %v3398
    %v3400 = vmul.f32 %v3319, 1.442695
    %v3401 = vpow.pop %v3400
    %v3402 = vmul.f32 %v3320, 1.442695
    %v3403 = vpow.pop %v3402
    %v3404 = vmul.f32 %v3321, 1.442695
    %v3405 = vpow.pop %v3404
    %v3406 = vmul.f32 %v3322, 1.442695
    %v3407 = vpow.pop %v3406
    %v3408 = vmul.f32 %v3323, 1.442695
    %v3409 = vpow.pop %v3408
    %v3410 = vmul.f32 %v3324, 1.442695
    %v3411 = vpow.pop %v3410
    %v3412 = vmul.f32 %v3325, 1.442695
    %v3413 = vpow.pop %v3412
    %v3414 = vmul.f32 %v3326, 1.442695
    %v3415 = vpow.pop %v3414
    %v3416 = vmul.f32 %v3327, 1.442695
    %v3417 = vpow.pop %v3416
    %v3418 = vmul.f32 %v3328, 1.442695
    %v3419 = vpow.pop %v3418
    %v3420 = vmul.f32 %v3329, 1.442695
    %v3421 = vpow.pop %v3420
    %v3422 = vmul.f32 %v3330, 1.442695
    %v3423 = vpow.pop %v3422
    %v3424 = vmul.f32 %v3331, 1.442695
    %v3425 = vpow.pop %v3424
    %v3426 = vmul.f32 %v3332, 1.442695
    %v3427 = vpow.pop %v3426
    %v3428 = vmul.f32 %v3333, 1.442695
    %v3429 = vpow.pop %v3428
    %3430 = vadd.xlane.f32.xlu0 %v3335
    %v3431 = vpop.xlane.xlu0 %3430
    %3432 = vadd.xlane.f32.xlu0 %v3337
    %v3433 = vpop.xlane.xlu0 %3432
    %3434 = vadd.xlane.f32.xlu0 %v3339
    %v3435 = vpop.xlane.xlu0 %3434
    %3436 = vadd.xlane.f32.xlu0 %v3341
    %v3437 = vpop.xlane.xlu0 %3436
    %3438 = vadd.xlane.f32.xlu0 %v3343
    %v3439 = vpop.xlane.xlu0 %3438
    %3440 = vadd.xlane.f32.xlu0 %v3345
    %v3441 = vpop.xlane.xlu0 %3440
    %3442 = vadd.xlane.f32.xlu0 %v3347
    %v3443 = vpop.xlane.xlu0 %3442
    %3444 = vadd.xlane.f32.xlu0 %v3349
    %v3445 = vpop.xlane.xlu0 %3444
    %3446 = vadd.xlane.f32.xlu0 %v3351
    %v3447 = vpop.xlane.xlu0 %3446
    %3448 = vadd.xlane.f32.xlu0 %v3353
    %v3449 = vpop.xlane.xlu0 %3448
    %3450 = vadd.xlane.f32.xlu0 %v3355
    %v3451 = vpop.xlane.xlu0 %3450
    %3452 = vadd.xlane.f32.xlu0 %v3357
    %v3453 = vpop.xlane.xlu0 %3452
    %3454 = vadd.xlane.f32.xlu0 %v3359
    %v3455 = vpop.xlane.xlu0 %3454
    %3456 = vadd.xlane.f32.xlu0 %v3361
    %v3457 = vpop.xlane.xlu0 %3456
    %3458 = vadd.xlane.f32.xlu0 %v3363
    %v3459 = vpop.xlane.xlu0 %3458
    %3460 = vadd.xlane.f32.xlu0 %v3365
    %v3461 = vpop.xlane.xlu0 %3460
    %3462 = vadd.xlane.f32.xlu0 %v3367
    %v3463 = vpop.xlane.xlu0 %3462
    %3464 = vadd.xlane.f32.xlu0 %v3369
    %v3465 = vpop.xlane.xlu0 %3464
    %3466 = vadd.xlane.f32.xlu0 %v3371
    %v3467 = vpop.xlane.xlu0 %3466
    %3468 = vadd.xlane.f32.xlu0 %v3373
    %v3469 = vpop.xlane.xlu0 %3468
    %3470 = vadd.xlane.f32.xlu0 %v3375
    %v3471 = vpop.xlane.xlu0 %3470
    %3472 = vadd.xlane.f32.xlu0 %v3377
    %v3473 = vpop.xlane.xlu0 %3472
    %3474 = vadd.xlane.f32.xlu0 %v3379
    %v3475 = vpop.xlane.xlu0 %3474
    %3476 = vadd.xlane.f32.xlu0 %v3381
    %v3477 = vpop.xlane.xlu0 %3476
    %3478 = vadd.xlane.f32.xlu0 %v3383
    %v3479 = vpop.xlane.xlu0 %3478
    %3480 = vadd.xlane.f32.xlu0 %v3385
    %v3481 = vpop.xlane.xlu0 %3480
    %3482 = vadd.xlane.f32.xlu0 %v3387
    %v3483 = vpop.xlane.xlu0 %3482
    %3484 = vadd.xlane.f32.xlu0 %v3389
    %v3485 = vpop.xlane.xlu0 %3484
    %3486 = vadd.xlane.f32.xlu0 %v3391
    %v3487 = vpop.xlane.xlu0 %3486
    %3488 = vadd.xlane.f32.xlu0 %v3393
    %v3489 = vpop.xlane.xlu0 %3488
    %3490 = vadd.xlane.f32.xlu0 %v3395
    %v3491 = vpop.xlane.xlu0 %3490
    %3492 = vadd.xlane.f32.xlu0 %v3397
    %v3493 = vpop.xlane.xlu0 %3492
    %3494 = vadd.xlane.f32.xlu0 %v3399
    %v3495 = vpop.xlane.xlu0 %3494
    %3496 = vadd.xlane.f32.xlu0 %v3401
    %v3497 = vpop.xlane.xlu0 %3496
    %3498 = vadd.xlane.f32.xlu0 %v3403
    %v3499 = vpop.xlane.xlu0 %3498
    %3500 = vadd.xlane.f32.xlu0 %v3405
    %v3501 = vpop.xlane.xlu0 %3500
    %3502 = vadd.xlane.f32.xlu0 %v3407
    %v3503 = vpop.xlane.xlu0 %3502
    %3504 = vadd.xlane.f32.xlu0 %v3409
    %v3505 = vpop.xlane.xlu0 %3504
    %3506 = vadd.xlane.f32.xlu0 %v3411
    %v3507 = vpop.xlane.xlu0 %3506
    %3508 = vadd.xlane.f32.xlu0 %v3413
    %v3509 = vpop.xlane.xlu0 %3508
    %3510 = vadd.xlane.f32.xlu0 %v3415
    %v3511 = vpop.xlane.xlu0 %3510
    %3512 = vadd.xlane.f32.xlu0 %v3417
    %v3513 = vpop.xlane.xlu0 %3512
    %3514 = vadd.xlane.f32.xlu0 %v3419
    %v3515 = vpop.xlane.xlu0 %3514
    %3516 = vadd.xlane.f32.xlu0 %v3421
    %v3517 = vpop.xlane.xlu0 %3516
    %3518 = vadd.xlane.f32.xlu0 %v3423
    %v3519 = vpop.xlane.xlu0 %3518
    %3520 = vadd.xlane.f32.xlu0 %v3425
    %v3521 = vpop.xlane.xlu0 %3520
    %3522 = vadd.xlane.f32.xlu0 %v3427
    %v3523 = vpop.xlane.xlu0 %3522
    %3524 = vadd.xlane.f32.xlu0 %v3429
    %v3525 = vpop.xlane.xlu0 %3524
    %v3526 = vlog2.pop %v3431
    %v3527 = vmul.f32 %v3526, 0.6931472
    %v3528 = vlog2.pop %v3433
    %v3529 = vmul.f32 %v3528, 0.6931472
    %v3530 = vlog2.pop %v3435
    %v3531 = vmul.f32 %v3530, 0.6931472
    %v3532 = vlog2.pop %v3437
    %v3533 = vmul.f32 %v3532, 0.6931472
    %v3534 = vlog2.pop %v3439
    %v3535 = vmul.f32 %v3534, 0.6931472
    %v3536 = vlog2.pop %v3441
    %v3537 = vmul.f32 %v3536, 0.6931472
    %v3538 = vlog2.pop %v3443
    %v3539 = vmul.f32 %v3538, 0.6931472
    %v3540 = vlog2.pop %v3445
    %v3541 = vmul.f32 %v3540, 0.6931472
    %v3542 = vlog2.pop %v3447
    %v3543 = vmul.f32 %v3542, 0.6931472
    %v3544 = vlog2.pop %v3449
    %v3545 = vmul.f32 %v3544, 0.6931472
    %v3546 = vlog2.pop %v3451
    %v3547 = vmul.f32 %v3546, 0.6931472
    %v3548 = vlog2.pop %v3453
    %v3549 = vmul.f32 %v3548, 0.6931472
    %v3550 = vlog2.pop %v3455
    %v3551 = vmul.f32 %v3550, 0.6931472
    %v3552 = vlog2.pop %v3457
    %v3553 = vmul.f32 %v3552, 0.6931472
    %v3554 = vlog2.pop %v3459
    %v3555 = vmul.f32 %v3554, 0.6931472
    %v3556 = vlog2.pop %v3461
    %v3557 = vmul.f32 %v3556, 0.6931472
    %v3558 = vlog2.pop %v3463
    %v3559 = vmul.f32 %v3558, 0.6931472
    %v3560 = vlog2.pop %v3465
    %v3561 = vmul.f32 %v3560, 0.6931472
    %v3562 = vlog2.pop %v3467
    %v3563 = vmul.f32 %v3562, 0.6931472
    %v3564 = vlog2.pop %v3469
    %v3565 = vmul.f32 %v3564, 0.6931472
    %v3566 = vlog2.pop %v3471
    %v3567 = vmul.f32 %v3566, 0.6931472
    %v3568 = vlog2.pop %v3473
    %v3569 = vmul.f32 %v3568, 0.6931472
    %v3570 = vlog2.pop %v3475
    %v3571 = vmul.f32 %v3570, 0.6931472
    %v3572 = vlog2.pop %v3477
    %v3573 = vmul.f32 %v3572, 0.6931472
    %v3574 = vlog2.pop %v3479
    %v3575 = vmul.f32 %v3574, 0.6931472
    %v3576 = vlog2.pop %v3481
    %v3577 = vmul.f32 %v3576, 0.6931472
    %v3578 = vlog2.pop %v3483
    %v3579 = vmul.f32 %v3578, 0.6931472
    %v3580 = vlog2.pop %v3485
    %v3581 = vmul.f32 %v3580, 0.6931472
    %v3582 = vlog2.pop %v3487
    %v3583 = vmul.f32 %v3582, 0.6931472
    %v3584 = vlog2.pop %v3489
    %v3585 = vmul.f32 %v3584, 0.6931472
    %v3586 = vlog2.pop %v3491
    %v3587 = vmul.f32 %v3586, 0.6931472
    %v3588 = vlog2.pop %v3493
    %v3589 = vmul.f32 %v3588, 0.6931472
    %v3590 = vlog2.pop %v3495
    %v3591 = vmul.f32 %v3590, 0.6931472
    %v3592 = vlog2.pop %v3497
    %v3593 = vmul.f32 %v3592, 0.6931472
    %v3594 = vlog2.pop %v3499
    %v3595 = vmul.f32 %v3594, 0.6931472
    %v3596 = vlog2.pop %v3501
    %v3597 = vmul.f32 %v3596, 0.6931472
    %v3598 = vlog2.pop %v3503
    %v3599 = vmul.f32 %v3598, 0.6931472
    %v3600 = vlog2.pop %v3505
    %v3601 = vmul.f32 %v3600, 0.6931472
    %v3602 = vlog2.pop %v3507
    %v3603 = vmul.f32 %v3602, 0.6931472
    %v3604 = vlog2.pop %v3509
    %v3605 = vmul.f32 %v3604, 0.6931472
    %v3606 = vlog2.pop %v3511
    %v3607 = vmul.f32 %v3606, 0.6931472
    %v3608 = vlog2.pop %v3513
    %v3609 = vmul.f32 %v3608, 0.6931472
    %v3610 = vlog2.pop %v3515
    %v3611 = vmul.f32 %v3610, 0.6931472
    %v3612 = vlog2.pop %v3517
    %v3613 = vmul.f32 %v3612, 0.6931472
    %v3614 = vlog2.pop %v3519
    %v3615 = vmul.f32 %v3614, 0.6931472
    %v3616 = vlog2.pop %v3521
    %v3617 = vmul.f32 %v3616, 0.6931472
    %v3618 = vlog2.pop %v3523
    %v3619 = vmul.f32 %v3618, 0.6931472
    %v3620 = vlog2.pop %v3525
    %v3621 = vmul.f32 %v3620, 0.6931472
    %v3622 = vsub.f32 %v3286, %v3527
    %v3623 = vsub.f32 %v3287, %v3529
    %v3624 = vsub.f32 %v3288, %v3531
    %v3625 = vsub.f32 %v3289, %v3533
    %v3626 = vsub.f32 %v3290, %v3535
    %v3627 = vsub.f32 %v3291, %v3537
    %v3628 = vsub.f32 %v3292, %v3539
    %v3629 = vsub.f32 %v3293, %v3541
    %v3630 = vsub.f32 %v3294, %v3543
    %v3631 = vsub.f32 %v3295, %v3545
    %v3632 = vsub.f32 %v3296, %v3547
    %v3633 = vsub.f32 %v3297, %v3549
    %v3634 = vsub.f32 %v3298, %v3551
    %v3635 = vsub.f32 %v3299, %v3553
    %v3636 = vsub.f32 %v3300, %v3555
    %v3637 = vsub.f32 %v3301, %v3557
    %v3638 = vsub.f32 %v3302, %v3559
    %v3639 = vsub.f32 %v3303, %v3561
    %v3640 = vsub.f32 %v3304, %v3563
    %v3641 = vsub.f32 %v3305, %v3565
    %v3642 = vsub.f32 %v3306, %v3567
    %v3643 = vsub.f32 %v3307, %v3569
    %v3644 = vsub.f32 %v3308, %v3571
    %v3645 = vsub.f32 %v3309, %v3573
    %v3646 = vsub.f32 %v3310, %v3575
    %v3647 = vsub.f32 %v3311, %v3577
    %v3648 = vsub.f32 %v3312, %v3579
    %v3649 = vsub.f32 %v3313, %v3581
    %v3650 = vsub.f32 %v3314, %v3583
    %v3651 = vsub.f32 %v3315, %v3585
    %v3652 = vsub.f32 %v3316, %v3587
    %v3653 = vsub.f32 %v3317, %v3589
    %v3654 = vsub.f32 %v3318, %v3591
    %v3655 = vsub.f32 %v3319, %v3593
    %v3656 = vsub.f32 %v3320, %v3595
    %v3657 = vsub.f32 %v3321, %v3597
    %v3658 = vsub.f32 %v3322, %v3599
    %v3659 = vsub.f32 %v3323, %v3601
    %v3660 = vsub.f32 %v3324, %v3603
    %v3661 = vsub.f32 %v3325, %v3605
    %v3662 = vsub.f32 %v3326, %v3607
    %v3663 = vsub.f32 %v3327, %v3609
    %v3664 = vsub.f32 %v3328, %v3611
    %v3665 = vsub.f32 %v3329, %v3613
    %v3666 = vsub.f32 %v3330, %v3615
    %v3667 = vsub.f32 %v3331, %v3617
    %v3668 = vsub.f32 %v3332, %v3619
    %v3669 = vsub.f32 %v3333, %v3621
    %3670 = vst [vmem:[#allocation13] sm:$0xff] %v3622
    %3671 = vst [vmem:[#allocation13 + $0x8] sm:$0xff] %v3623
    %3672 = vst [vmem:[#allocation13 + $0x10] sm:$0xff] %v3624
    %3673 = vst [vmem:[#allocation13 + $0x18] sm:$0xff] %v3625
    %3674 = vst [vmem:[#allocation13 + $0x20] sm:$0xff] %v3626
    %3675 = vst [vmem:[#allocation13 + $0x28] sm:$0xff] %v3627
    %3676 = vst [vmem:[#allocation13 + $0x30] sm:$0xff] %v3628
    %3677 = vst [vmem:[#allocation13 + $0x38] sm:$0xff] %v3629
    %3678 = vst [vmem:[#allocation13 + $0x40] sm:$0xff] %v3630
    %3679 = vst [vmem:[#allocation13 + $0x48] sm:$0xff] %v3631
    %3680 = vst [vmem:[#allocation13 + $0x50] sm:$0xff] %v3632
    %3681 = vst [vmem:[#allocation13 + $0x58] sm:$0xff] %v3633
    %3682 = vst [vmem:[#allocation13 + $0x60] sm:$0xff] %v3634
    %3683 = vst [vmem:[#allocation13 + $0x68] sm:$0xff] %v3635
    %3684 = vst [vmem:[#allocation13 + $0x70] sm:$0xff] %v3636
    %3685 = vst [vmem:[#allocation13 + $0x78] sm:$0xff] %v3637
    %3686 = vst [vmem:[#allocation13 + $0x80] sm:$0xff] %v3638
    %3687 = vst [vmem:[#allocation13 + $0x88] sm:$0xff] %v3639
    %3688 = vst [vmem:[#allocation13 + $0x90] sm:$0xff] %v3640
    %3689 = vst [vmem:[#allocation13 + $0x98] sm:$0xff] %v3641
    %3690 = vst [vmem:[#allocation13 + $0xa0] sm:$0xff] %v3642
    %3691 = vst [vmem:[#allocation13 + $0xa8] sm:$0xff] %v3643
    %3692 = vst [vmem:[#allocation13 + $0xb0] sm:$0xff] %v3644
    %3693 = vst [vmem:[#allocation13 + $0xb8] sm:$0xff] %v3645
    %3694 = vst [vmem:[#allocation13 + $0xc0] sm:$0xff] %v3646
    %3695 = vst [vmem:[#allocation13 + $0xc8] sm:$0xff] %v3647
    %3696 = vst [vmem:[#allocation13 + $0xd0] sm:$0xff] %v3648
    %3697 = vst [vmem:[#allocation13 + $0xd8] sm:$0xff] %v3649
    %3698 = vst [vmem:[#allocation13 + $0xe0] sm:$0xff] %v3650
    %3699 = vst [vmem:[#allocation13 + $0xe8] sm:$0xff] %v3651
    %3700 = vst [vmem:[#allocation13 + $0xf0] sm:$0xff] %v3652
    %3701 = vst [vmem:[#allocation13 + $0xf8] sm:$0xff] %v3653
    %3702 = vst [vmem:[#allocation13 + $0x100] sm:$0xff] %v3654
    %3703 = vst [vmem:[#allocation13 + $0x108] sm:$0xff] %v3655
    %3704 = vst [vmem:[#allocation13 + $0x110] sm:$0xff] %v3656
    %3705 = vst [vmem:[#allocation13 + $0x118] sm:$0xff] %v3657
    %3706 = vst [vmem:[#allocation13 + $0x120] sm:$0xff] %v3658
    %3707 = vst [vmem:[#allocation13 + $0x128] sm:$0xff] %v3659
    %3708 = vst [vmem:[#allocation13 + $0x130] sm:$0xff] %v3660
    %3709 = vst [vmem:[#allocation13 + $0x138] sm:$0xff] %v3661
    %3710 = vst [vmem:[#allocation13 + $0x140] sm:$0xff] %v3662
    %3711 = vst [vmem:[#allocation13 + $0x148] sm:$0xff] %v3663
    %3712 = vst [vmem:[#allocation13 + $0x150] sm:$0xff] %v3664
    %3713 = vst [vmem:[#allocation13 + $0x158] sm:$0xff] %v3665
    %3714 = vst [vmem:[#allocation13 + $0x160] sm:$0xff] %v3666
    %3715 = vst [vmem:[#allocation13 + $0x168] sm:$0xff] %v3667
    %3716 = vst [vmem:[#allocation13 + $0x170] sm:$0xff] %v3668
    %3717 = vst [vmem:[#allocation13 + $0x178] sm:$0xff] %v3669
    // Predicated region
    $region66: #{tpu_custom_call.1} parent=1 // pred_check
      _
    $region67: #{tpu_custom_call.1} parent=1 // pred_check_branch
      %3719 = sbr.rel (0) target = $region69
    $region68: #{tpu_custom_call.1} parent=1 // pred_region
      %s3721 = ssub.s32 6144, 6144
      %3722 = vsyncadd [#allocation4], %s3721
      %s3723 = sshll.u32 [#allocation13], 4
      %s3724 = int_to_ptr.vmem [resolvable:$true] %s3723
      %3729 = dma.vmem_to_hbm [thread:$0]  %s3724, 6144, %s10, [#allocation4], 128, 128, 8
    $region69: #{tpu_custom_call.1} parent=1 // pred_fallthru
      _
    // Predicated region
    $region70: #{tpu_custom_call.1} parent=1 // pred_check
      _
    $region71: #{tpu_custom_call.1} parent=1 // pred_check_branch
      %3731 = sbr.rel (0) target = $region73
    $region72: #{tpu_custom_call.1} parent=1 // pred_region
      %3732 = dma.done [#allocation4], 6144
    $region73: #{tpu_custom_call.1} parent=1 // pred_fallthru
      _
    %3733 = vsyncpa [#allocation3], 1
    %3734 = vsyncpa [#allocation6], 1
    %3735 = vsyncpa [#allocation9], 1
    %3736 = vsyncpa [#allocation12], 1
    %3737 = vsyncpa [#allocation4], 1

</llo_original>
